<compile_context>
chip_gen: v5e
topology: v5e:2x2
jax: 0.10.0
libtpu: 0.0.40
codegen_flags: <defaults>
</compile_context>

<pallas_src>
import functools

import jax
import jax.numpy as jnp
from jax.experimental import pallas as pl
from jax.experimental.pallas import tpu as pltpu

L_IN = 64            # input length (fixed: Linear(2048) = 128 ch * 16 len after two /2 pools)
C_IN = 50            # input channels (Conv1d(50, 128, ...))
C_HID = 128
NUM_CLASSES = 18
FC1_OUT = 256
FEAT_L = 16          # length after the two maxpools
FEAT_DIM = C_HID * FEAT_L        # 2048
LOGIT_PAD = 128      # classes padded to a full lane register for a dense store


# --------------------------------- kernel ------------------------------------

def dcnn1d_kernel(x_ref,
                  wc1_ref, bc1_ref, wc2_ref, bc2_ref, wc3_ref, bc3_ref,
                  w1_ref, b1_ref, w2_ref, b2_ref,
                  feat_ref, out_ref,
                  pool_ref):
    TB = x_ref.shape[0]

    def conv1d_k3(h, w_ref, b_ref, L):
        """k=3 / stride=1 / pad=1 conv on batch-folded (N, Cin) f32 activations.

        Rows are sample-major (row = s*L + l, L a power of two).  The +/-1 row
        shifts are sublane rotates (XLU); the (N, 1) masks zero the l == 0 /
        l == L-1 positions so neither the roll wrap-around nor the neighbouring
        sample on adjacent rows leaks into this sample's zero padding.
        """
        N = h.shape[0]
        lpos = jax.lax.broadcasted_iota(jnp.int32, (N, 1), 0) & (L - 1)
        xm = jnp.where(lpos == 0, 0.0,
                       pltpu.roll(h, 1, axis=0)).astype(jnp.bfloat16)      # row r -> h[r-1]
        xp = jnp.where(lpos == L - 1, 0.0,
                       pltpu.roll(h, N - 1, axis=0)).astype(jnp.bfloat16)  # row r -> h[r+1]
        xc = h.astype(jnp.bfloat16)
        y = (jnp.dot(xm, w_ref[0], preferred_element_type=jnp.float32)
             + jnp.dot(xc, w_ref[1], preferred_element_type=jnp.float32)
             + jnp.dot(xp, w_ref[2], preferred_element_type=jnp.float32))
        return y + b_ref[...]

    def pool2_relu(h):
        """MaxPool1d(2, 2) along length then ReLU.

        Rows are sample-major so pooling pairs never cross samples.  The conv
        output is staged once into VMEM (f32) and the even / odd rows are read
        back as stride-2 sublane loads -- no (N//2, 2, C) sublane relayout.
        """
        N = h.shape[0]
        pool_ref[pl.ds(0, N), :] = h
        even = pool_ref[pl.ds(0, N // 2, stride=2), :]
        odd = pool_ref[pl.ds(1, N // 2, stride=2), :]
        return jnp.maximum(jnp.maximum(even, odd), 0.0)

    x = x_ref[...].reshape(TB * L_IN, C_IN).astype(jnp.float32)   # (TB*64, 50)

    h = conv1d_k3(x, wc1_ref, bc1_ref, L_IN)                      # (TB*64, 128) f32
    h = pool2_relu(h)                                             # (TB*32, 128)
    h = conv1d_k3(h, wc2_ref, bc2_ref, L_IN // 2)
    h = pool2_relu(h)                                             # (TB*16, 128)
    h = jnp.maximum(conv1d_k3(h, wc3_ref, bc3_ref, FEAT_L), 0.0)

    feat_ref[...] = h.reshape(TB, FEAT_L, C_HID).astype(feat_ref.dtype)   # bf16 out

    # TODO(synk): nn.Dropout is identity in eval mode; train-mode masking not implemented.
    f = h.astype(jnp.bfloat16).reshape(TB, FEAT_DIM)              # per sample: l-major, c-minor
    z = jnp.dot(f, w1_ref[...], preferred_element_type=jnp.float32) + b1_ref[...]
    z = jnp.maximum(z, 0.0)                                       # (TB, 256) f32
    o = jnp.dot(z.astype(jnp.bfloat16), w2_ref[...],
                preferred_element_type=jnp.float32) + b2_ref[...]
    out_ref[...] = o.astype(out_ref.dtype)                        # (TB, 128) lane-dense


# --------------------------------- wrapper -----------------------------------

def _pick_tb(B, tb):
    """Batch tile: >= 2 grid steps when B >= 16 (feeds both v7x TensorCores),
    multiples of 8 for multi-step runs (sublane-aligned 2-D logits blocks), and
    a divisor of B when possible (skips the jnp.pad HBM pass)."""
    cap = max(1, min(tb, B))
    if B >= 16:
        cap = min(cap, (B + 1) // 2)
    if cap >= B:
        return B                                # single grid step: block == full batch
    cap = max(8, (cap // 8) * 8)
    for d in range(cap, 7, -8):                 # largest non-tiny multiple-of-8 divisor
        if B % d == 0 and 2 * d >= cap:
            return d
    steps = -(-B // cap)                        # otherwise minimal padding at ~cap tiles
    per_step = -(-B // steps)
    return -(-per_step // 8) * 8


@functools.partial(jax.jit, static_argnames=("tb",))
def dcnn1d_forward(x, params, tb=128):
    """x: (B, 1, 50, 64) or (B, 50, 64); returns (feature (B, 2048), logits (B, 18))."""
    if x.ndim == 4:
        x = x[:, 0]                   # squeeze only the singleton dim (safe for B == 1)
    B = x.shape[0]
    # Cast BEFORE the transpose so the XLA relayout pass moves bf16, not f32.
    x_lc = jnp.transpose(x.astype(jnp.bfloat16), (0, 2, 1))       # (B, 64, 50) channels-last

    TB = _pick_tb(B, tb)
    n_steps = -(-B // TB)
    B_pad = n_steps * TB
    if B_pad > B:
        x_lc = jnp.pad(x_lc, ((0, B_pad - B), (0, 0), (0, 0)))

    bf16 = lambda a: a.astype(jnp.bfloat16)
    f32 = lambda a: a.astype(jnp.float32)
    # Conv weights: torch (Cout, Cin, 3) -> (3, Cin, Cout)
    wc1 = bf16(jnp.transpose(params["conv1_w"], (2, 1, 0)))
    wc2 = bf16(jnp.transpose(params["conv2_w"], (2, 1, 0)))
    wc3 = bf16(jnp.transpose(params["conv3_w"], (2, 1, 0)))
    bc1 = f32(params["conv1_b"]).reshape(1, C_HID)
    bc2 = f32(params["conv2_b"]).reshape(1, C_HID)
    bc3 = f32(params["conv3_b"]).reshape(1, C_HID)
    # fc1: torch (256, 2048) indexed [o, c*16+l]  ->  (2048, 256) indexed [l*128+c, o]
    w1r = bf16(jnp.transpose(params["fc1_w"].reshape(FC1_OUT, C_HID, FEAT_L),
                             (2, 1, 0)).reshape(FEAT_DIM, FC1_OUT))
    b1 = f32(params["fc1_b"]).reshape(1, FC1_OUT)
    # fc2: zero-pad 18 -> 128 output lanes so the logits store is lane-dense.
    w2p = bf16(jnp.zeros((FC1_OUT, LOGIT_PAD), jnp.float32)
               .at[:, :NUM_CLASSES].set(params["fc2_w"].T))
    b2p = (jnp.zeros((1, LOGIT_PAD), jnp.float32)
           .at[:, :NUM_CLASSES].set(params["fc2_b"][None, :]))

    def full(shape):
        n = len(shape)
        return pl.BlockSpec(shape, lambda b: (0,) * n)

    macs = (L_IN * C_IN * C_HID * 3 + (L_IN // 2) * C_HID * C_HID * 3
            + FEAT_L * C_HID * C_HID * 3 + FEAT_DIM * FC1_OUT + FC1_OUT * LOGIT_PAD)
    weight_bytes = 2 * (wc1.size + wc2.size + wc3.size + w1r.size + w2p.size) \
        + 4 * (bc1.size + bc2.size + bc3.size + b1.size + b2p.size)
    cost = pl.CostEstimate(
        flops=2 * macs * B_pad,
        transcendentals=0,
        bytes_accessed=B_pad * (L_IN * C_IN * 2 + FEAT_L * C_HID * 2 + LOGIT_PAD * 4)
        + weight_bytes)

    feat_lc, logits_pad = pl.pallas_call(
        dcnn1d_kernel,
        out_shape=(jax.ShapeDtypeStruct((B_pad, FEAT_L, C_HID), jnp.bfloat16),
                   jax.ShapeDtypeStruct((B_pad, LOGIT_PAD), jnp.float32)),
        grid=(B_pad // TB,),
        in_specs=[
            pl.BlockSpec((TB, L_IN, C_IN), lambda b: (b, 0, 0)),
            # Grid-invariant weight/bias blocks (index 0 every step): DMA'd once,
            # never re-fetched.  (pl.Buffered(1) single-buffering intentionally
            # skipped; the spare buffer fits inside the raised vmem limit.)
            full((3, C_IN, C_HID)), full((1, C_HID)),
            full((3, C_HID, C_HID)), full((1, C_HID)),
            full((3, C_HID, C_HID)), full((1, C_HID)),
            full((FEAT_DIM, FC1_OUT)), full((1, FC1_OUT)),
            full((FC1_OUT, LOGIT_PAD)), full((1, LOGIT_PAD)),
        ],
        out_specs=(pl.BlockSpec((TB, FEAT_L, C_HID), lambda b: (b, 0, 0)),
                   pl.BlockSpec((TB, LOGIT_PAD), lambda b: (b, 0))),
        scratch_shapes=[
            # maxpool staging for the largest conv output (f32 -> native strided loads)
            pltpu.VMEM((TB * L_IN, C_HID), jnp.float32),
        ],
        compiler_params=pltpu.CompilerParams(
            dimension_semantics=("parallel",),
            vmem_limit_bytes=48 * 1024 * 1024),
        cost_estimate=cost,
    )(x_lc, wc1, bc1, wc2, bc2, wc3, bc3, w1r, b1, w2p, b2p)

    # Back to the PyTorch flatten order: (B, L, C) -> (B, C, L) -> (B, C*L),
    # casting bf16 -> f32 inside the same pass.
    feature = jnp.transpose(feat_lc[:B], (0, 2, 1)).astype(jnp.float32).reshape(B, FEAT_DIM)
    logits = logits_pad[:B, :NUM_CLASSES]
    return feature, logits


# ------------------------- deterministic parameters --------------------------

def init_params(key):
    ks = jax.random.split(key, 10)

    def u(k, shape, fan_in):
        bound = 1.0 / jnp.sqrt(jnp.float32(fan_in))
        return jax.random.uniform(k, shape, jnp.float32, -bound, bound)

    return {
        "conv1_w": u(ks[0], (C_HID, C_IN, 3), C_IN * 3),
        "conv1_b": u(ks[1], (C_HID,), C_IN * 3),
        "conv2_w": u(ks[2], (C_HID, C_HID, 3), C_HID * 3),
        "conv2_b": u(ks[3], (C_HID,), C_HID * 3),
        "conv3_w": u(ks[4], (C_HID, C_HID, 3), C_HID * 3),
        "conv3_b": u(ks[5], (C_HID,), C_HID * 3),
        "fc1_w": u(ks[6], (FC1_OUT, FEAT_DIM), FEAT_DIM),
        "fc1_b": u(ks[7], (FC1_OUT,), FEAT_DIM),
        "fc2_w": u(ks[8], (NUM_CLASSES, FC1_OUT), FC1_OUT),
        "fc2_b": u(ks[9], (NUM_CLASSES,), FC1_OUT),
    }


# ------------------------------ pure-JAX reference ---------------------------

def reference_forward(x, params):
    if x.ndim == 4:
        x = x[:, 0]
    x = x.astype(jnp.float32)                                      # (B, 50, 64)

    def conv(h, w, b):
        y = jax.lax.conv_general_dilated(h, w, (1,), [(1, 1)],
                                         dimension_numbers=("NCH", "OIH", "NCH"))
        return y + b[None, :, None]

    def pool(h):
        B, C, Lh = h.shape
        return jnp.max(h.reshape(B, C, Lh // 2, 2), axis=-1)

    h = jnp.maximum(pool(conv(x, params["conv1_w"], params["conv1_b"])), 0.0)
    h = jnp.maximum(pool(conv(h, params["conv2_w"], params["conv2_b"])), 0.0)
    h = jnp.maximum(conv(h, params["conv3_w"], params["conv3_b"]), 0.0)
    feat = h.reshape(h.shape[0], -1)
    z = jnp.maximum(feat @ params["fc1_w"].T + params["fc1_b"], 0.0)
    out = z @ params["fc2_w"].T + params["fc2_b"]
    return feat, out


if __name__ == "__main__":
    key = jax.random.PRNGKey(0)
    kx, kx2, kp = jax.random.split(key, 3)
    params = init_params(kp)

    # bf16 matmul operands (f32 accumulation) => bf16-appropriate tolerance.
    ATOL = RTOL = 3e-2

    # Small batch: single grid step (TB = B = 4).
    x = jax.random.normal(kx, (4, 1, C_IN, L_IN), dtype=jnp.float32)
    feature, logits = dcnn1d_forward(x, params)
    feature = jax.block_until_ready(feature)
    logits = jax.block_until_ready(logits)
    assert feature.shape == (4, FEAT_DIM) and logits.shape == (4, NUM_CLASSES)
    ref_feat, ref_logits = reference_forward(x, params)
    assert jnp.allclose(feature, ref_feat, atol=ATOL, rtol=RTOL)
    assert jnp.allclose(logits, ref_logits, atol=ATOL, rtol=RTOL)

    # Multi-step grid: 16 samples, 8 per step — exercises the per-sample conv
    # boundary masking across batch-folded tiles and the >=2-step sharding path.
    x2 = jax.random.normal(kx2, (16, 1, C_IN, L_IN), dtype=jnp.float32)
    f2, l2 = dcnn1d_forward(x2, params, tb=8)
    f2 = jax.block_until_ready(f2)
    l2 = jax.block_until_ready(l2)
    rf2, rl2 = reference_forward(x2, params)
    assert jnp.allclose(f2, rf2, atol=ATOL, rtol=RTOL)
    assert jnp.allclose(l2, rl2, atol=ATOL, rtol=RTOL)

    print("KERNEL_OK")
</pallas_src>

<mosaic_0001>
module attributes {stable_mosaic.version = 11 : i64} {
  func.func @dcnn1d_kernel(%arg0: i32, %arg1: memref<4x64x50xbf16, #tpu.memory_space<vmem>>, %arg2: memref<3x50x128xbf16, #tpu.memory_space<vmem>>, %arg3: memref<1x128xf32, #tpu.memory_space<vmem>>, %arg4: memref<3x128x128xbf16, #tpu.memory_space<vmem>>, %arg5: memref<1x128xf32, #tpu.memory_space<vmem>>, %arg6: memref<3x128x128xbf16, #tpu.memory_space<vmem>>, %arg7: memref<1x128xf32, #tpu.memory_space<vmem>>, %arg8: memref<2048x256xbf16, #tpu.memory_space<vmem>>, %arg9: memref<1x256xf32, #tpu.memory_space<vmem>>, %arg10: memref<256x128xbf16, #tpu.memory_space<vmem>>, %arg11: memref<1x128xf32, #tpu.memory_space<vmem>>, %arg12: memref<4x16x128xbf16, #tpu.memory_space<vmem>>, %arg13: memref<4x128xf32, #tpu.memory_space<vmem>>, %arg14: memref<256x128xf32, #tpu.memory_space<vmem>>) attributes {dimension_semantics = [#tpu.dimension_semantics<parallel>], iteration_bounds = array<i64: 1>, scalar_prefetch = 0 : i64, scratch_operands = 1 : i64, tpu.core_type = #tpu.core_type<tc>, window_params = [{transform_indices = @transform_0, window_bounds = array<i64: 4, 64, 50>}, {pipeline_mode = #tpu.pipeline_mode<synchronous>, transform_indices = @transform_1, window_bounds = array<i64: 3, 50, 128>}, {pipeline_mode = #tpu.pipeline_mode<synchronous>, transform_indices = @transform_2, window_bounds = array<i64: 1, 128>}, {pipeline_mode = #tpu.pipeline_mode<synchronous>, transform_indices = @transform_3, window_bounds = array<i64: 3, 128, 128>}, {pipeline_mode = #tpu.pipeline_mode<synchronous>, transform_indices = @transform_4, window_bounds = array<i64: 1, 128>}, {pipeline_mode = #tpu.pipeline_mode<synchronous>, transform_indices = @transform_5, window_bounds = array<i64: 3, 128, 128>}, {pipeline_mode = #tpu.pipeline_mode<synchronous>, transform_indices = @transform_6, window_bounds = array<i64: 1, 128>}, {pipeline_mode = #tpu.pipeline_mode<synchronous>, transform_indices = @transform_7, window_bounds = array<i64: 2048, 256>}, {pipeline_mode = #tpu.pipeline_mode<synchronous>, transform_indices = @transform_8, window_bounds = array<i64: 1, 256>}, {pipeline_mode = #tpu.pipeline_mode<synchronous>, transform_indices = @transform_9, window_bounds = array<i64: 256, 128>}, {pipeline_mode = #tpu.pipeline_mode<synchronous>, transform_indices = @transform_10, window_bounds = array<i64: 1, 128>}, {transform_indices = @transform_11, window_bounds = array<i64: 4, 16, 128>}, {transform_indices = @transform_12, window_bounds = array<i64: 4, 128>}]} {
    %c0 = arith.constant 0 : index
    %c0_0 = arith.constant 0 : index
    %c0_1 = arith.constant 0 : index
    %0 = vector.load %arg1[%c0, %c0_0, %c0_1] : memref<4x64x50xbf16, #tpu.memory_space<vmem>>, vector<4x64x50xbf16>
    %1 = vector.shape_cast %0 : vector<4x64x50xbf16> to vector<256x50xbf16>
    %2 = arith.extf %1 : vector<256x50xbf16> to vector<256x50xf32>
    %3 = tpu.iota {dimensions = array<i32: 0>} : vector<256x1xi32>
    %c63_i32 = arith.constant 63 : i32
    %4 = vector.broadcast %c63_i32 : i32 to vector<256x1xi32>
    %5 = arith.andi %3, %4 : vector<256x1xi32>
    %c0_i32 = arith.constant 0 : i32
    %6 = vector.broadcast %c0_i32 : i32 to vector<256x1xi32>
    %7 = arith.cmpi eq, %5, %6 : vector<256x1xi32>
    %c1_i32 = arith.constant 1 : i32
    %8 = tpu.dynamic_rotate %2 by %c1_i32 dim 0 : vector<256x50xf32>, i32 -> vector<256x50xf32>
    %cst = arith.constant 0.000000e+00 : f32
    %9 = vector.shape_cast %7 : vector<256x1xi1> to vector<256x1xi1>
    %10 = vector.broadcast %9 : vector<256x1xi1> to vector<256x50xi1>
    %11 = vector.broadcast %cst : f32 to vector<256x50xf32>
    %12 = arith.select %10, %11, %8 : vector<256x50xi1>, vector<256x50xf32>
    %13 = arith.truncf %12 : vector<256x50xf32> to vector<256x50xbf16>
    %c63_i32_2 = arith.constant 63 : i32
    %14 = vector.broadcast %c63_i32_2 : i32 to vector<256x1xi32>
    %15 = arith.cmpi eq, %5, %14 : vector<256x1xi32>
    %c255_i32 = arith.constant 255 : i32
    %16 = tpu.dynamic_rotate %2 by %c255_i32 dim 0 : vector<256x50xf32>, i32 -> vector<256x50xf32>
    %cst_3 = arith.constant 0.000000e+00 : f32
    %17 = vector.shape_cast %15 : vector<256x1xi1> to vector<256x1xi1>
    %18 = vector.broadcast %17 : vector<256x1xi1> to vector<256x50xi1>
    %19 = vector.broadcast %cst_3 : f32 to vector<256x50xf32>
    %20 = arith.select %18, %19, %16 : vector<256x50xi1>, vector<256x50xf32>
    %21 = arith.truncf %20 : vector<256x50xf32> to vector<256x50xbf16>
    %22 = arith.truncf %2 : vector<256x50xf32> to vector<256x50xbf16>
    %c0_4 = arith.constant 0 : index
    %c0_5 = arith.constant 0 : index
    %c0_6 = arith.constant 0 : index
    %23 = vector.load %arg2[%c0_4, %c0_5, %c0_6] : memref<3x50x128xbf16, #tpu.memory_space<vmem>>, vector<1x50x128xbf16>
    %24 = vector.shape_cast %23 : vector<1x50x128xbf16> to vector<50x128xbf16>
    %cst_7 = arith.constant dense<0.000000e+00> : vector<256x128xf32>
    %25 = tpu.matmul %13, %24, %cst_7 {dimension_numbers = #tpu.dot_dimension_numbers<[1], [0], [0], [1], [0, 0, 1, 1], [], []>} : vector<256x50xbf16>, vector<50x128xbf16>, vector<256x128xf32> -> vector<256x128xf32>
    %c1 = arith.constant 1 : index
    %c0_8 = arith.constant 0 : index
    %c0_9 = arith.constant 0 : index
    %26 = vector.load %arg2[%c1, %c0_8, %c0_9] : memref<3x50x128xbf16, #tpu.memory_space<vmem>>, vector<1x50x128xbf16>
    %27 = vector.shape_cast %26 : vector<1x50x128xbf16> to vector<50x128xbf16>
    %cst_10 = arith.constant dense<0.000000e+00> : vector<256x128xf32>
    %28 = tpu.matmul %22, %27, %cst_10 {dimension_numbers = #tpu.dot_dimension_numbers<[1], [0], [0], [1], [0, 0, 1, 1], [], []>} : vector<256x50xbf16>, vector<50x128xbf16>, vector<256x128xf32> -> vector<256x128xf32>
    %29 = arith.addf %25, %28 : vector<256x128xf32>
    %c2 = arith.constant 2 : index
    %c0_11 = arith.constant 0 : index
    %c0_12 = arith.constant 0 : index
    %30 = vector.load %arg2[%c2, %c0_11, %c0_12] : memref<3x50x128xbf16, #tpu.memory_space<vmem>>, vector<1x50x128xbf16>
    %31 = vector.shape_cast %30 : vector<1x50x128xbf16> to vector<50x128xbf16>
    %cst_13 = arith.constant dense<0.000000e+00> : vector<256x128xf32>
    %32 = tpu.matmul %21, %31, %cst_13 {dimension_numbers = #tpu.dot_dimension_numbers<[1], [0], [0], [1], [0, 0, 1, 1], [], []>} : vector<256x50xbf16>, vector<50x128xbf16>, vector<256x128xf32> -> vector<256x128xf32>
    %33 = arith.addf %29, %32 : vector<256x128xf32>
    %c0_14 = arith.constant 0 : index
    %c0_15 = arith.constant 0 : index
    %34 = vector.load %arg3[%c0_14, %c0_15] : memref<1x128xf32, #tpu.memory_space<vmem>>, vector<1x128xf32>
    %35 = vector.broadcast %34 : vector<1x128xf32> to vector<256x128xf32>
    %36 = arith.addf %33, %35 : vector<256x128xf32>
    %c0_16 = arith.constant 0 : index
    %c0_17 = arith.constant 0 : index
    %37 = vector.load %arg14[%c0_16, %c0_17] : memref<256x128xf32, #tpu.memory_space<vmem>>, vector<256x128xf32>
    tpu.vector_store %arg14[%c0_16, %c0_17], %36 {strides = array<i32>} : memref<256x128xf32, #tpu.memory_space<vmem>>, vector<256x128xf32>,
    %c0_18 = arith.constant 0 : index
    %c0_19 = arith.constant 0 : index
    %38 = tpu.strided_load %arg14[%c0_18, %c0_19] {strides = array<i32: 2, 1>} : memref<256x128xf32, #tpu.memory_space<vmem>>, vector<128x128xf32>
    %c1_20 = arith.constant 1 : index
    %c0_21 = arith.constant 0 : index
    %39 = tpu.strided_load %arg14[%c1_20, %c0_21] {strides = array<i32: 2, 1>} : memref<256x128xf32, #tpu.memory_space<vmem>>, vector<128x128xf32>
    %40 = arith.maximumf %38, %39 : vector<128x128xf32>
    %cst_22 = arith.constant 0.000000e+00 : f32
    %41 = vector.broadcast %cst_22 : f32 to vector<128x128xf32>
    %42 = arith.maximumf %40, %41 : vector<128x128xf32>
    %43 = tpu.iota {dimensions = array<i32: 0>} : vector<128x1xi32>
    %c31_i32 = arith.constant 31 : i32
    %44 = vector.broadcast %c31_i32 : i32 to vector<128x1xi32>
    %45 = arith.andi %43, %44 : vector<128x1xi32>
    %c0_i32_23 = arith.constant 0 : i32
    %46 = vector.broadcast %c0_i32_23 : i32 to vector<128x1xi32>
    %47 = arith.cmpi eq, %45, %46 : vector<128x1xi32>
    %c1_i32_24 = arith.constant 1 : i32
    %48 = tpu.dynamic_rotate %42 by %c1_i32_24 dim 0 : vector<128x128xf32>, i32 -> vector<128x128xf32>
    %cst_25 = arith.constant 0.000000e+00 : f32
    %49 = vector.shape_cast %47 : vector<128x1xi1> to vector<128x1xi1>
    %50 = vector.broadcast %49 : vector<128x1xi1> to vector<128x128xi1>
    %51 = vector.broadcast %cst_25 : f32 to vector<128x128xf32>
    %52 = arith.select %50, %51, %48 : vector<128x128xi1>, vector<128x128xf32>
    %53 = arith.truncf %52 : vector<128x128xf32> to vector<128x128xbf16>
    %c31_i32_26 = arith.constant 31 : i32
    %54 = vector.broadcast %c31_i32_26 : i32 to vector<128x1xi32>
    %55 = arith.cmpi eq, %45, %54 : vector<128x1xi32>
    %c127_i32 = arith.constant 127 : i32
    %56 = tpu.dynamic_rotate %42 by %c127_i32 dim 0 : vector<128x128xf32>, i32 -> vector<128x128xf32>
    %cst_27 = arith.constant 0.000000e+00 : f32
    %57 = vector.shape_cast %55 : vector<128x1xi1> to vector<128x1xi1>
    %58 = vector.broadcast %57 : vector<128x1xi1> to vector<128x128xi1>
    %59 = vector.broadcast %cst_27 : f32 to vector<128x128xf32>
    %60 = arith.select %58, %59, %56 : vector<128x128xi1>, vector<128x128xf32>
    %61 = arith.truncf %60 : vector<128x128xf32> to vector<128x128xbf16>
    %62 = arith.truncf %42 : vector<128x128xf32> to vector<128x128xbf16>
    %c0_28 = arith.constant 0 : index
    %c0_29 = arith.constant 0 : index
    %c0_30 = arith.constant 0 : index
    %63 = vector.load %arg4[%c0_28, %c0_29, %c0_30] : memref<3x128x128xbf16, #tpu.memory_space<vmem>>, vector<1x128x128xbf16>
    %64 = vector.shape_cast %63 : vector<1x128x128xbf16> to vector<128x128xbf16>
    %cst_31 = arith.constant dense<0.000000e+00> : vector<128x128xf32>
    %65 = tpu.matmul %53, %64, %cst_31 {dimension_numbers = #tpu.dot_dimension_numbers<[1], [0], [0], [1], [0, 0, 1, 1], [], []>} : vector<128x128xbf16>, vector<128x128xbf16>, vector<128x128xf32> -> vector<128x128xf32>
    %c1_32 = arith.constant 1 : index
    %c0_33 = arith.constant 0 : index
    %c0_34 = arith.constant 0 : index
    %66 = vector.load %arg4[%c1_32, %c0_33, %c0_34] : memref<3x128x128xbf16, #tpu.memory_space<vmem>>, vector<1x128x128xbf16>
    %67 = vector.shape_cast %66 : vector<1x128x128xbf16> to vector<128x128xbf16>
    %cst_35 = arith.constant dense<0.000000e+00> : vector<128x128xf32>
    %68 = tpu.matmul %62, %67, %cst_35 {dimension_numbers = #tpu.dot_dimension_numbers<[1], [0], [0], [1], [0, 0, 1, 1], [], []>} : vector<128x128xbf16>, vector<128x128xbf16>, vector<128x128xf32> -> vector<128x128xf32>
    %69 = arith.addf %65, %68 : vector<128x128xf32>
    %c2_36 = arith.constant 2 : index
    %c0_37 = arith.constant 0 : index
    %c0_38 = arith.constant 0 : index
    %70 = vector.load %arg4[%c2_36, %c0_37, %c0_38] : memref<3x128x128xbf16, #tpu.memory_space<vmem>>, vector<1x128x128xbf16>
    %71 = vector.shape_cast %70 : vector<1x128x128xbf16> to vector<128x128xbf16>
    %cst_39 = arith.constant dense<0.000000e+00> : vector<128x128xf32>
    %72 = tpu.matmul %61, %71, %cst_39 {dimension_numbers = #tpu.dot_dimension_numbers<[1], [0], [0], [1], [0, 0, 1, 1], [], []>} : vector<128x128xbf16>, vector<128x128xbf16>, vector<128x128xf32> -> vector<128x128xf32>
    %73 = arith.addf %69, %72 : vector<128x128xf32>
    %c0_40 = arith.constant 0 : index
    %c0_41 = arith.constant 0 : index
    %74 = vector.load %arg5[%c0_40, %c0_41] : memref<1x128xf32, #tpu.memory_space<vmem>>, vector<1x128xf32>
    %75 = vector.broadcast %74 : vector<1x128xf32> to vector<128x128xf32>
    %76 = arith.addf %73, %75 : vector<128x128xf32>
    %c0_42 = arith.constant 0 : index
    %c0_43 = arith.constant 0 : index
    %77 = vector.load %arg14[%c0_42, %c0_43] : memref<256x128xf32, #tpu.memory_space<vmem>>, vector<128x128xf32>
    tpu.vector_store %arg14[%c0_42, %c0_43], %76 {strides = array<i32>} : memref<256x128xf32, #tpu.memory_space<vmem>>, vector<128x128xf32>,
    %c0_44 = arith.constant 0 : index
    %c0_45 = arith.constant 0 : index
    %78 = tpu.strided_load %arg14[%c0_44, %c0_45] {strides = array<i32: 2, 1>} : memref<256x128xf32, #tpu.memory_space<vmem>>, vector<64x128xf32>
    %c1_46 = arith.constant 1 : index
    %c0_47 = arith.constant 0 : index
    %79 = tpu.strided_load %arg14[%c1_46, %c0_47] {strides = array<i32: 2, 1>} : memref<256x128xf32, #tpu.memory_space<vmem>>, vector<64x128xf32>
    %80 = arith.maximumf %78, %79 : vector<64x128xf32>
    %cst_48 = arith.constant 0.000000e+00 : f32
    %81 = vector.broadcast %cst_48 : f32 to vector<64x128xf32>
    %82 = arith.maximumf %80, %81 : vector<64x128xf32>
    %83 = tpu.iota {dimensions = array<i32: 0>} : vector<64x1xi32>
    %c15_i32 = arith.constant 15 : i32
    %84 = vector.broadcast %c15_i32 : i32 to vector<64x1xi32>
    %85 = arith.andi %83, %84 : vector<64x1xi32>
    %c0_i32_49 = arith.constant 0 : i32
    %86 = vector.broadcast %c0_i32_49 : i32 to vector<64x1xi32>
    %87 = arith.cmpi eq, %85, %86 : vector<64x1xi32>
    %c1_i32_50 = arith.constant 1 : i32
    %88 = tpu.dynamic_rotate %82 by %c1_i32_50 dim 0 : vector<64x128xf32>, i32 -> vector<64x128xf32>
    %cst_51 = arith.constant 0.000000e+00 : f32
    %89 = vector.shape_cast %87 : vector<64x1xi1> to vector<64x1xi1>
    %90 = vector.broadcast %89 : vector<64x1xi1> to vector<64x128xi1>
    %91 = vector.broadcast %cst_51 : f32 to vector<64x128xf32>
    %92 = arith.select %90, %91, %88 : vector<64x128xi1>, vector<64x128xf32>
    %93 = arith.truncf %92 : vector<64x128xf32> to vector<64x128xbf16>
    %c15_i32_52 = arith.constant 15 : i32
    %94 = vector.broadcast %c15_i32_52 : i32 to vector<64x1xi32>
    %95 = arith.cmpi eq, %85, %94 : vector<64x1xi32>
    %c63_i32_53 = arith.constant 63 : i32
    %96 = tpu.dynamic_rotate %82 by %c63_i32_53 dim 0 : vector<64x128xf32>, i32 -> vector<64x128xf32>
    %cst_54 = arith.constant 0.000000e+00 : f32
    %97 = vector.shape_cast %95 : vector<64x1xi1> to vector<64x1xi1>
    %98 = vector.broadcast %97 : vector<64x1xi1> to vector<64x128xi1>
    %99 = vector.broadcast %cst_54 : f32 to vector<64x128xf32>
    %100 = arith.select %98, %99, %96 : vector<64x128xi1>, vector<64x128xf32>
    %101 = arith.truncf %100 : vector<64x128xf32> to vector<64x128xbf16>
    %102 = arith.truncf %82 : vector<64x128xf32> to vector<64x128xbf16>
    %c0_55 = arith.constant 0 : index
    %c0_56 = arith.constant 0 : index
    %c0_57 = arith.constant 0 : index
    %103 = vector.load %arg6[%c0_55, %c0_56, %c0_57] : memref<3x128x128xbf16, #tpu.memory_space<vmem>>, vector<1x128x128xbf16>
    %104 = vector.shape_cast %103 : vector<1x128x128xbf16> to vector<128x128xbf16>
    %cst_58 = arith.constant dense<0.000000e+00> : vector<64x128xf32>
    %105 = tpu.matmul %93, %104, %cst_58 {dimension_numbers = #tpu.dot_dimension_numbers<[1], [0], [0], [1], [0, 0, 1, 1], [], []>} : vector<64x128xbf16>, vector<128x128xbf16>, vector<64x128xf32> -> vector<64x128xf32>
    %c1_59 = arith.constant 1 : index
    %c0_60 = arith.constant 0 : index
    %c0_61 = arith.constant 0 : index
    %106 = vector.load %arg6[%c1_59, %c0_60, %c0_61] : memref<3x128x128xbf16, #tpu.memory_space<vmem>>, vector<1x128x128xbf16>
    %107 = vector.shape_cast %106 : vector<1x128x128xbf16> to vector<128x128xbf16>
    %cst_62 = arith.constant dense<0.000000e+00> : vector<64x128xf32>
    %108 = tpu.matmul %102, %107, %cst_62 {dimension_numbers = #tpu.dot_dimension_numbers<[1], [0], [0], [1], [0, 0, 1, 1], [], []>} : vector<64x128xbf16>, vector<128x128xbf16>, vector<64x128xf32> -> vector<64x128xf32>
    %109 = arith.addf %105, %108 : vector<64x128xf32>
    %c2_63 = arith.constant 2 : index
    %c0_64 = arith.constant 0 : index
    %c0_65 = arith.constant 0 : index
    %110 = vector.load %arg6[%c2_63, %c0_64, %c0_65] : memref<3x128x128xbf16, #tpu.memory_space<vmem>>, vector<1x128x128xbf16>
    %111 = vector.shape_cast %110 : vector<1x128x128xbf16> to vector<128x128xbf16>
    %cst_66 = arith.constant dense<0.000000e+00> : vector<64x128xf32>
    %112 = tpu.matmul %101, %111, %cst_66 {dimension_numbers = #tpu.dot_dimension_numbers<[1], [0], [0], [1], [0, 0, 1, 1], [], []>} : vector<64x128xbf16>, vector<128x128xbf16>, vector<64x128xf32> -> vector<64x128xf32>
    %113 = arith.addf %109, %112 : vector<64x128xf32>
    %c0_67 = arith.constant 0 : index
    %c0_68 = arith.constant 0 : index
    %114 = vector.load %arg7[%c0_67, %c0_68] : memref<1x128xf32, #tpu.memory_space<vmem>>, vector<1x128xf32>
    %115 = vector.broadcast %114 : vector<1x128xf32> to vector<64x128xf32>
    %116 = arith.addf %113, %115 : vector<64x128xf32>
    %cst_69 = arith.constant 0.000000e+00 : f32
    %117 = vector.broadcast %cst_69 : f32 to vector<64x128xf32>
    %118 = arith.maximumf %116, %117 : vector<64x128xf32>
    %119 = vector.shape_cast %118 : vector<64x128xf32> to vector<4x16x128xf32>
    %120 = arith.truncf %119 : vector<4x16x128xf32> to vector<4x16x128xbf16>
    %c0_70 = arith.constant 0 : index
    %c0_71 = arith.constant 0 : index
    %c0_72 = arith.constant 0 : index
    %121 = vector.load %arg12[%c0_70, %c0_71, %c0_72] : memref<4x16x128xbf16, #tpu.memory_space<vmem>>, vector<4x16x128xbf16>
    tpu.vector_store %arg12[%c0_70, %c0_71, %c0_72], %120 {strides = array<i32>} : memref<4x16x128xbf16, #tpu.memory_space<vmem>>, vector<4x16x128xbf16>,
    %122 = arith.truncf %118 : vector<64x128xf32> to vector<64x128xbf16>
    %123 = vector.shape_cast %122 : vector<64x128xbf16> to vector<4x2048xbf16>
    %c0_73 = arith.constant 0 : index
    %c0_74 = arith.constant 0 : index
    %124 = vector.load %arg8[%c0_73, %c0_74] : memref<2048x256xbf16, #tpu.memory_space<vmem>>, vector<2048x256xbf16>
    %cst_75 = arith.constant dense<0.000000e+00> : vector<4x256xf32>
    %125 = tpu.matmul %123, %124, %cst_75 {dimension_numbers = #tpu.dot_dimension_numbers<[1], [0], [0], [1], [0, 0, 1, 1], [], []>} : vector<4x2048xbf16>, vector<2048x256xbf16>, vector<4x256xf32> -> vector<4x256xf32>
    %c0_76 = arith.constant 0 : index
    %c0_77 = arith.constant 0 : index
    %126 = vector.load %arg9[%c0_76, %c0_77] : memref<1x256xf32, #tpu.memory_space<vmem>>, vector<1x256xf32>
    %127 = vector.broadcast %126 : vector<1x256xf32> to vector<4x256xf32>
    %128 = arith.addf %125, %127 : vector<4x256xf32>
    %cst_78 = arith.constant 0.000000e+00 : f32
    %129 = vector.broadcast %cst_78 : f32 to vector<4x256xf32>
    %130 = arith.maximumf %128, %129 : vector<4x256xf32>
    %131 = arith.truncf %130 : vector<4x256xf32> to vector<4x256xbf16>
    %c0_79 = arith.constant 0 : index
    %c0_80 = arith.constant 0 : index
    %132 = vector.load %arg10[%c0_79, %c0_80] : memref<256x128xbf16, #tpu.memory_space<vmem>>, vector<256x128xbf16>
    %cst_81 = arith.constant dense<0.000000e+00> : vector<4x128xf32>
    %133 = tpu.matmul %131, %132, %cst_81 {dimension_numbers = #tpu.dot_dimension_numbers<[1], [0], [0], [1], [0, 0, 1, 1], [], []>} : vector<4x256xbf16>, vector<256x128xbf16>, vector<4x128xf32> -> vector<4x128xf32>
    %c0_82 = arith.constant 0 : index
    %c0_83 = arith.constant 0 : index
    %134 = vector.load %arg11[%c0_82, %c0_83] : memref<1x128xf32, #tpu.memory_space<vmem>>, vector<1x128xf32>
    %135 = vector.broadcast %134 : vector<1x128xf32> to vector<4x128xf32>
    %136 = arith.addf %133, %135 : vector<4x128xf32>
    %c0_84 = arith.constant 0 : index
    %c0_85 = arith.constant 0 : index
    %137 = vector.load %arg13[%c0_84, %c0_85] : memref<4x128xf32, #tpu.memory_space<vmem>>, vector<4x128xf32>
    tpu.vector_store %arg13[%c0_84, %c0_85], %136 {strides = array<i32>} : memref<4x128xf32, #tpu.memory_space<vmem>>, vector<4x128xf32>,
    return
  }
  func.func @transform_0(%arg0: i32) -> (i32, i32, i32) {
    %c0_i32 = arith.constant 0 : i32
    %c0_i32_0 = arith.constant 0 : i32
    %c0_i32_1 = arith.constant 0 : i32
    return %arg0, %c0_i32, %c0_i32_0 : i32, i32, i32
  }
  func.func @transform_1(%arg0: i32) -> (i32, i32, i32) {
    %c0_i32 = arith.constant 0 : i32
    %c0_i32_0 = arith.constant 0 : i32
    %c0_i32_1 = arith.constant 0 : i32
    %c0_i32_2 = arith.constant 0 : i32
    return %c0_i32, %c0_i32_0, %c0_i32_1 : i32, i32, i32
  }
  func.func @transform_2(%arg0: i32) -> (i32, i32) {
    %c0_i32 = arith.constant 0 : i32
    %c0_i32_0 = arith.constant 0 : i32
    %c0_i32_1 = arith.constant 0 : i32
    return %c0_i32, %c0_i32_0 : i32, i32
  }
  func.func @transform_3(%arg0: i32) -> (i32, i32, i32) {
    %c0_i32 = arith.constant 0 : i32
    %c0_i32_0 = arith.constant 0 : i32
    %c0_i32_1 = arith.constant 0 : i32
    %c0_i32_2 = arith.constant 0 : i32
    return %c0_i32, %c0_i32_0, %c0_i32_1 : i32, i32, i32
  }
  func.func @transform_4(%arg0: i32) -> (i32, i32) {
    %c0_i32 = arith.constant 0 : i32
    %c0_i32_0 = arith.constant 0 : i32
    %c0_i32_1 = arith.constant 0 : i32
    return %c0_i32, %c0_i32_0 : i32, i32
  }
  func.func @transform_5(%arg0: i32) -> (i32, i32, i32) {
    %c0_i32 = arith.constant 0 : i32
    %c0_i32_0 = arith.constant 0 : i32
    %c0_i32_1 = arith.constant 0 : i32
    %c0_i32_2 = arith.constant 0 : i32
    return %c0_i32, %c0_i32_0, %c0_i32_1 : i32, i32, i32
  }
  func.func @transform_6(%arg0: i32) -> (i32, i32) {
    %c0_i32 = arith.constant 0 : i32
    %c0_i32_0 = arith.constant 0 : i32
    %c0_i32_1 = arith.constant 0 : i32
    return %c0_i32, %c0_i32_0 : i32, i32
  }
  func.func @transform_7(%arg0: i32) -> (i32, i32) {
    %c0_i32 = arith.constant 0 : i32
    %c0_i32_0 = arith.constant 0 : i32
    %c0_i32_1 = arith.constant 0 : i32
    return %c0_i32, %c0_i32_0 : i32, i32
  }
  func.func @transform_8(%arg0: i32) -> (i32, i32) {
    %c0_i32 = arith.constant 0 : i32
    %c0_i32_0 = arith.constant 0 : i32
    %c0_i32_1 = arith.constant 0 : i32
    return %c0_i32, %c0_i32_0 : i32, i32
  }
  func.func @transform_9(%arg0: i32) -> (i32, i32) {
    %c0_i32 = arith.constant 0 : i32
    %c0_i32_0 = arith.constant 0 : i32
    %c0_i32_1 = arith.constant 0 : i32
    return %c0_i32, %c0_i32_0 : i32, i32
  }
  func.func @transform_10(%arg0: i32) -> (i32, i32) {
    %c0_i32 = arith.constant 0 : i32
    %c0_i32_0 = arith.constant 0 : i32
    %c0_i32_1 = arith.constant 0 : i32
    return %c0_i32, %c0_i32_0 : i32, i32
  }
  func.func @transform_11(%arg0: i32) -> (i32, i32, i32) {
    %c0_i32 = arith.constant 0 : i32
    %c0_i32_0 = arith.constant 0 : i32
    %c0_i32_1 = arith.constant 0 : i32
    return %arg0, %c0_i32, %c0_i32_0 : i32, i32, i32
  }
  func.func @transform_12(%arg0: i32) -> (i32, i32) {
    %c0_i32 = arith.constant 0 : i32
    %c0_i32_0 = arith.constant 0 : i32
    return %arg0, %c0_i32 : i32, i32
  }
}

</mosaic_0001>

<llo_original>
// kernel: dcnn1d_forward.1
$region0: #{dcnn1d_forward.1}
  #allocation0 [shape = 'u32[]', space=smem, size = 0x4, offset = 0x4, fixed_abs, tag = 'smem constant byte address 0x4 - core index']
  #allocation1 [shape = 'u32[72,128]{1,0:T(1,128)}', space=vmem, size = 0x9000, scoped, tag = 'internal scratch']
  #allocation2 [shape = 'f32[256,128]{1,0:T(8,128)}', space=vmem, size = 0x20000, scoped, tag = 'scratch operand']
  %s0 = inlined_call_operand.vmem [shape: bf16[4,64,50], index: 0, kind: input, shape index: {}]
  %s1 = inlined_call_operand.vmem [shape: bf16[3,50,128], index: 1, kind: input, shape index: {}]
  %s2 = inlined_call_operand.vmem [shape: f32[1,128], index: 2, kind: input, shape index: {}]
  %s3 = inlined_call_operand.vmem [shape: bf16[3,128,128], index: 3, kind: input, shape index: {}]
  %s4 = inlined_call_operand.vmem [shape: f32[1,128], index: 4, kind: input, shape index: {}]
  %s5 = inlined_call_operand.vmem [shape: bf16[3,128,128], index: 5, kind: input, shape index: {}]
  %s6 = inlined_call_operand.vmem [shape: f32[1,128], index: 6, kind: input, shape index: {}]
  %s7 = inlined_call_operand.vmem [shape: bf16[2048,256], index: 7, kind: input, shape index: {}]
  %s8 = inlined_call_operand.vmem [shape: f32[1,256], index: 8, kind: input, shape index: {}]
  %s9 = inlined_call_operand.vmem [shape: bf16[256,128], index: 9, kind: input, shape index: {}]
  %s10 = inlined_call_operand.vmem [shape: f32[1,128], index: 10, kind: input, shape index: {}]
  %s11 = inlined_call_operand.vmem [shape: bf16[4,16,128], index: 11, kind: output, shape index: {0}]
  %s12 = inlined_call_operand.hbm [shape: f32[4,128], index: 12, kind: output, shape index: {1}]
  %13 = xla_tuple %s11, %s12
  %s14 = sld [smem:[#allocation0]]
  $region62: #{dcnn1d_forward.1} parent=0
    _
  %s16 = ssub.s32 1, %s14
  %s17 = scalar_select 0, %s16, %s14
  $region1: #{dcnn1d_forward.1} parent=0
    #allocation3 [shape = 'u8[2048]{0}', space=vmem, size = 0x800, scoped, tag = 'output window, operand 1, single buffered']
    #allocation4 [shape = 's32[1]{0}', space=sflag, size = 0x4, scoped, tag = 'scoped memory for dcnn1d_forward.1']
    %18 = vsyncpa [#allocation4], 0
    // Predicated region
    $region2: #{dcnn1d_forward.1} parent=1 // pred_check
      _
    $region3: #{dcnn1d_forward.1} parent=1 // pred_check_branch
      %20 = sbr.rel (0) target = $region5
    $region4: #{dcnn1d_forward.1} parent=1 // pred_region
      _
    $region5: #{dcnn1d_forward.1} parent=1 // pred_fallthru
      _
    // Predicated region
    $region6: #{dcnn1d_forward.1} parent=1 // pred_check
      _
    $region7: #{dcnn1d_forward.1} parent=1 // pred_check_branch
      %22 = sbr.rel (0) target = $region9
    $region8: #{dcnn1d_forward.1} parent=1 // pred_region
      _
    $region9: #{dcnn1d_forward.1} parent=1 // pred_fallthru
      _
    // Predicated region
    $region10: #{dcnn1d_forward.1} parent=1 // pred_check
      _
    $region11: #{dcnn1d_forward.1} parent=1 // pred_check_branch
      %24 = sbr.rel (0) target = $region13
    $region12: #{dcnn1d_forward.1} parent=1 // pred_region
      _
    $region13: #{dcnn1d_forward.1} parent=1 // pred_fallthru
      _
    // Predicated region
    $region14: #{dcnn1d_forward.1} parent=1 // pred_check
      _
    $region15: #{dcnn1d_forward.1} parent=1 // pred_check_branch
      %26 = sbr.rel (0) target = $region17
    $region16: #{dcnn1d_forward.1} parent=1 // pred_region
      _
    $region17: #{dcnn1d_forward.1} parent=1 // pred_fallthru
      _
    // Predicated region
    $region18: #{dcnn1d_forward.1} parent=1 // pred_check
      _
    $region19: #{dcnn1d_forward.1} parent=1 // pred_check_branch
      %28 = sbr.rel (0) target = $region21
    $region20: #{dcnn1d_forward.1} parent=1 // pred_region
      _
    $region21: #{dcnn1d_forward.1} parent=1 // pred_fallthru
      _
    // Predicated region
    $region22: #{dcnn1d_forward.1} parent=1 // pred_check
      _
    $region23: #{dcnn1d_forward.1} parent=1 // pred_check_branch
      %30 = sbr.rel (0) target = $region25
    $region24: #{dcnn1d_forward.1} parent=1 // pred_region
      _
    $region25: #{dcnn1d_forward.1} parent=1 // pred_fallthru
      _
    // Predicated region
    $region26: #{dcnn1d_forward.1} parent=1 // pred_check
      _
    $region27: #{dcnn1d_forward.1} parent=1 // pred_check_branch
      %32 = sbr.rel (0) target = $region29
    $region28: #{dcnn1d_forward.1} parent=1 // pred_region
      _
    $region29: #{dcnn1d_forward.1} parent=1 // pred_fallthru
      _
    // Predicated region
    $region30: #{dcnn1d_forward.1} parent=1 // pred_check
      _
    $region31: #{dcnn1d_forward.1} parent=1 // pred_check_branch
      %34 = sbr.rel (0) target = $region33
    $region32: #{dcnn1d_forward.1} parent=1 // pred_region
      _
    $region33: #{dcnn1d_forward.1} parent=1 // pred_fallthru
      _
    // Predicated region
    $region34: #{dcnn1d_forward.1} parent=1 // pred_check
      _
    $region35: #{dcnn1d_forward.1} parent=1 // pred_check_branch
      %36 = sbr.rel (0) target = $region37
    $region36: #{dcnn1d_forward.1} parent=1 // pred_region
      _
    $region37: #{dcnn1d_forward.1} parent=1 // pred_fallthru
      _
    // Predicated region
    $region38: #{dcnn1d_forward.1} parent=1 // pred_check
      _
    $region39: #{dcnn1d_forward.1} parent=1 // pred_check_branch
      %38 = sbr.rel (0) target = $region41
    $region40: #{dcnn1d_forward.1} parent=1 // pred_region
      _
    $region41: #{dcnn1d_forward.1} parent=1 // pred_fallthru
      _
    // Predicated region
    $region42: #{dcnn1d_forward.1} parent=1 // pred_check
      _
    $region43: #{dcnn1d_forward.1} parent=1 // pred_check_branch
      %40 = sbr.rel (0) target = $region45
    $region44: #{dcnn1d_forward.1} parent=1 // pred_region
      _
    $region45: #{dcnn1d_forward.1} parent=1 // pred_fallthru
      _
    %v42 = vld [vmem:[%s0] sm:$0xf]
    %v43 = vld [vmem:[%s0 + $0x4] sm:$0xf]
    %v44 = vld [vmem:[%s0 + $0x8] sm:$0xf]
    %v45 = vld [vmem:[%s0 + $0xc] sm:$0xf]
    %v46 = vld [vmem:[%s0 + $0x10] sm:$0xf]
    %v47 = vld [vmem:[%s0 + $0x14] sm:$0xf]
    %v48 = vld [vmem:[%s0 + $0x18] sm:$0xf]
    %v49 = vld [vmem:[%s0 + $0x1c] sm:$0xf]
    %v50 = vld [vmem:[%s0 + $0x20] sm:$0xf]
    %v51 = vld [vmem:[%s0 + $0x24] sm:$0xf]
    %v52 = vld [vmem:[%s0 + $0x28] sm:$0xf]
    %v53 = vld [vmem:[%s0 + $0x2c] sm:$0xf]
    %v54 = vld [vmem:[%s0 + $0x30] sm:$0xf]
    %v55 = vld [vmem:[%s0 + $0x34] sm:$0xf]
    %v56 = vld [vmem:[%s0 + $0x38] sm:$0xf]
    %v57 = vld [vmem:[%s0 + $0x3c] sm:$0xf]
    %v58 = vld [vmem:[%s0 + $0x40] sm:$0xf]
    %v59 = vld [vmem:[%s0 + $0x44] sm:$0xf]
    %v60 = vld [vmem:[%s0 + $0x48] sm:$0xf]
    %v61 = vld [vmem:[%s0 + $0x4c] sm:$0xf]
    %v62 = vld [vmem:[%s0 + $0x50] sm:$0xf]
    %v63 = vld [vmem:[%s0 + $0x54] sm:$0xf]
    %v64 = vld [vmem:[%s0 + $0x58] sm:$0xf]
    %v65 = vld [vmem:[%s0 + $0x5c] sm:$0xf]
    %v66 = vld [vmem:[%s0 + $0x60] sm:$0xf]
    %v67 = vld [vmem:[%s0 + $0x64] sm:$0xf]
    %v68 = vld [vmem:[%s0 + $0x68] sm:$0xf]
    %v69 = vld [vmem:[%s0 + $0x6c] sm:$0xf]
    %v70 = vld [vmem:[%s0 + $0x70] sm:$0xf]
    %v71 = vld [vmem:[%s0 + $0x74] sm:$0xf]
    %v72 = vld [vmem:[%s0 + $0x78] sm:$0xf]
    %v73 = vld [vmem:[%s0 + $0x7c] sm:$0xf]
    %v74 = vunpack.c.l.bf16 %v42
    %v75 = vunpack.c.l.bf16 %v43
    %v76 = vunpack.c.l.bf16 %v44
    %v77 = vunpack.c.l.bf16 %v45
    %v78 = vunpack.c.l.bf16 %v46
    %v79 = vunpack.c.l.bf16 %v47
    %v80 = vunpack.c.l.bf16 %v48
    %v81 = vunpack.c.l.bf16 %v49
    %v82 = vunpack.c.l.bf16 %v50
    %v83 = vunpack.c.l.bf16 %v51
    %v84 = vunpack.c.l.bf16 %v52
    %v85 = vunpack.c.l.bf16 %v53
    %v86 = vunpack.c.l.bf16 %v54
    %v87 = vunpack.c.l.bf16 %v55
    %v88 = vunpack.c.l.bf16 %v56
    %v89 = vunpack.c.l.bf16 %v57
    %v90 = vunpack.c.l.bf16 %v58
    %v91 = vunpack.c.l.bf16 %v59
    %v92 = vunpack.c.l.bf16 %v60
    %v93 = vunpack.c.l.bf16 %v61
    %v94 = vunpack.c.l.bf16 %v62
    %v95 = vunpack.c.l.bf16 %v63
    %v96 = vunpack.c.l.bf16 %v64
    %v97 = vunpack.c.l.bf16 %v65
    %v98 = vunpack.c.l.bf16 %v66
    %v99 = vunpack.c.l.bf16 %v67
    %v100 = vunpack.c.l.bf16 %v68
    %v101 = vunpack.c.l.bf16 %v69
    %v102 = vunpack.c.l.bf16 %v70
    %v103 = vunpack.c.l.bf16 %v71
    %v104 = vunpack.c.l.bf16 %v72
    %v105 = vunpack.c.l.bf16 %v73
    %v106 = vlaneseq
    %v107 = vshrl.u32 %v106, 7
    %v108 = vadd.s32 %v107, 8
    %v109 = vadd.s32 %v107, 16
    %v110 = vadd.s32 %v107, 24
    %v111 = vadd.s32 %v107, 32
    %v112 = vadd.s32 %v107, 40
    %v113 = vadd.s32 %v107, 48
    %v114 = vadd.s32 %v107, 56
    %v115 = vadd.s32 %v107, 64
    %v116 = vadd.s32 %v107, 72
    %v117 = vadd.s32 %v107, 80
    %v118 = vadd.s32 %v107, 88
    %v119 = vadd.s32 %v107, 96
    %v120 = vadd.s32 %v107, 104
    %v121 = vadd.s32 %v107, 112
    %v122 = vadd.s32 %v107, 120
    %v123 = vadd.s32 %v107, 128
    %v124 = vadd.s32 %v107, 136
    %v125 = vadd.s32 %v107, 144
    %v126 = vadd.s32 %v107, 152
    %v127 = vadd.s32 %v107, 160
    %v128 = vadd.s32 %v107, 168
    %v129 = vadd.s32 %v107, 176
    %v130 = vadd.s32 %v107, 184
    %v131 = vadd.s32 %v107, 192
    %v132 = vadd.s32 %v107, 200
    %v133 = vadd.s32 %v107, 208
    %v134 = vadd.s32 %v107, 216
    %v135 = vadd.s32 %v107, 224
    %v136 = vadd.s32 %v107, 232
    %v137 = vadd.s32 %v107, 240
    %v138 = vadd.s32 %v107, 248
    %v139 = vand.u32 %v107, 63
    %v140 = vand.u32 %v108, 63
    %v141 = vand.u32 %v109, 63
    %v142 = vand.u32 %v110, 63
    %v143 = vand.u32 %v111, 63
    %v144 = vand.u32 %v112, 63
    %v145 = vand.u32 %v113, 63
    %v146 = vand.u32 %v114, 63
    %v147 = vand.u32 %v115, 63
    %v148 = vand.u32 %v116, 63
    %v149 = vand.u32 %v117, 63
    %v150 = vand.u32 %v118, 63
    %v151 = vand.u32 %v119, 63
    %v152 = vand.u32 %v120, 63
    %v153 = vand.u32 %v121, 63
    %v154 = vand.u32 %v122, 63
    %v155 = vand.u32 %v123, 63
    %v156 = vand.u32 %v124, 63
    %v157 = vand.u32 %v125, 63
    %v158 = vand.u32 %v126, 63
    %v159 = vand.u32 %v127, 63
    %v160 = vand.u32 %v128, 63
    %v161 = vand.u32 %v129, 63
    %v162 = vand.u32 %v130, 63
    %v163 = vand.u32 %v131, 63
    %v164 = vand.u32 %v132, 63
    %v165 = vand.u32 %v133, 63
    %v166 = vand.u32 %v134, 63
    %v167 = vand.u32 %v135, 63
    %v168 = vand.u32 %v136, 63
    %v169 = vand.u32 %v137, 63
    %v170 = vand.u32 %v138, 63
    %vm171 = vcmp.eq.s32.totalorder %v139, 0
    %vm172 = vcmp.eq.s32.totalorder %v140, 0
    %vm173 = vcmp.eq.s32.totalorder %v141, 0
    %vm174 = vcmp.eq.s32.totalorder %v142, 0
    %vm175 = vcmp.eq.s32.totalorder %v143, 0
    %vm176 = vcmp.eq.s32.totalorder %v144, 0
    %vm177 = vcmp.eq.s32.totalorder %v145, 0
    %vm178 = vcmp.eq.s32.totalorder %v146, 0
    %vm179 = vcmp.eq.s32.totalorder %v147, 0
    %vm180 = vcmp.eq.s32.totalorder %v148, 0
    %vm181 = vcmp.eq.s32.totalorder %v149, 0
    %vm182 = vcmp.eq.s32.totalorder %v150, 0
    %vm183 = vcmp.eq.s32.totalorder %v151, 0
    %vm184 = vcmp.eq.s32.totalorder %v152, 0
    %vm185 = vcmp.eq.s32.totalorder %v153, 0
    %vm186 = vcmp.eq.s32.totalorder %v154, 0
    %vm187 = vcmp.eq.s32.totalorder %v155, 0
    %vm188 = vcmp.eq.s32.totalorder %v156, 0
    %vm189 = vcmp.eq.s32.totalorder %v157, 0
    %vm190 = vcmp.eq.s32.totalorder %v158, 0
    %vm191 = vcmp.eq.s32.totalorder %v159, 0
    %vm192 = vcmp.eq.s32.totalorder %v160, 0
    %vm193 = vcmp.eq.s32.totalorder %v161, 0
    %vm194 = vcmp.eq.s32.totalorder %v162, 0
    %vm195 = vcmp.eq.s32.totalorder %v163, 0
    %vm196 = vcmp.eq.s32.totalorder %v164, 0
    %vm197 = vcmp.eq.s32.totalorder %v165, 0
    %vm198 = vcmp.eq.s32.totalorder %v166, 0
    %vm199 = vcmp.eq.s32.totalorder %v167, 0
    %vm200 = vcmp.eq.s32.totalorder %v168, 0
    %vm201 = vcmp.eq.s32.totalorder %v169, 0
    %vm202 = vcmp.eq.s32.totalorder %v170, 0
    %v203 = vrot.slane %v74, 7
    %v204 = vrot.slane %v75, 7
    %v205 = vrot.slane %v76, 7
    %v206 = vrot.slane %v77, 7
    %v207 = vrot.slane %v78, 7
    %v208 = vrot.slane %v79, 7
    %v209 = vrot.slane %v80, 7
    %v210 = vrot.slane %v81, 7
    %v211 = vrot.slane %v82, 7
    %v212 = vrot.slane %v83, 7
    %v213 = vrot.slane %v84, 7
    %v214 = vrot.slane %v85, 7
    %v215 = vrot.slane %v86, 7
    %v216 = vrot.slane %v87, 7
    %v217 = vrot.slane %v88, 7
    %v218 = vrot.slane %v89, 7
    %v219 = vrot.slane %v90, 7
    %v220 = vrot.slane %v91, 7
    %v221 = vrot.slane %v92, 7
    %v222 = vrot.slane %v93, 7
    %v223 = vrot.slane %v94, 7
    %v224 = vrot.slane %v95, 7
    %v225 = vrot.slane %v96, 7
    %v226 = vrot.slane %v97, 7
    %v227 = vrot.slane %v98, 7
    %v228 = vrot.slane %v99, 7
    %v229 = vrot.slane %v100, 7
    %v230 = vrot.slane %v101, 7
    %v231 = vrot.slane %v102, 7
    %v232 = vrot.slane %v103, 7
    %v233 = vrot.slane %v104, 7
    %v234 = vrot.slane %v105, 7
    %vm235 = vcmp.lt.s32.totalorder %v107, 1
    %v236 = vsel %vm235, %v233, %v234
    %v237 = vsel %vm235, %v232, %v233
    %v238 = vsel %vm235, %v231, %v232
    %v239 = vsel %vm235, %v230, %v231
    %v240 = vsel %vm235, %v229, %v230
    %v241 = vsel %vm235, %v228, %v229
    %v242 = vsel %vm235, %v227, %v228
    %v243 = vsel %vm235, %v226, %v227
    %v244 = vsel %vm235, %v225, %v226
    %v245 = vsel %vm235, %v224, %v225
    %v246 = vsel %vm235, %v223, %v224
    %v247 = vsel %vm235, %v222, %v223
    %v248 = vsel %vm235, %v221, %v222
    %v249 = vsel %vm235, %v220, %v221
    %v250 = vsel %vm235, %v219, %v220
    %v251 = vsel %vm235, %v218, %v219
    %v252 = vsel %vm235, %v217, %v218
    %v253 = vsel %vm235, %v216, %v217
    %v254 = vsel %vm235, %v215, %v216
    %v255 = vsel %vm235, %v214, %v215
    %v256 = vsel %vm235, %v213, %v214
    %v257 = vsel %vm235, %v212, %v213
    %v258 = vsel %vm235, %v211, %v212
    %v259 = vsel %vm235, %v210, %v211
    %v260 = vsel %vm235, %v209, %v210
    %v261 = vsel %vm235, %v208, %v209
    %v262 = vsel %vm235, %v207, %v208
    %v263 = vsel %vm235, %v206, %v207
    %v264 = vsel %vm235, %v205, %v206
    %v265 = vsel %vm235, %v204, %v205
    %v266 = vsel %vm235, %v203, %v204
    %v267 = vsel %vm235, %v234, %v203
    %v268 = vsel %vm171, 1, 0
    %v269 = vsel %vm172, 1, 0
    %v270 = vsel %vm173, 1, 0
    %v271 = vsel %vm174, 1, 0
    %v272 = vsel %vm175, 1, 0
    %v273 = vsel %vm176, 1, 0
    %v274 = vsel %vm177, 1, 0
    %v275 = vsel %vm178, 1, 0
    %v276 = vsel %vm179, 1, 0
    %v277 = vsel %vm180, 1, 0
    %v278 = vsel %vm181, 1, 0
    %v279 = vsel %vm182, 1, 0
    %v280 = vsel %vm183, 1, 0
    %v281 = vsel %vm184, 1, 0
    %v282 = vsel %vm185, 1, 0
    %v283 = vsel %vm186, 1, 0
    %v284 = vsel %vm187, 1, 0
    %v285 = vsel %vm188, 1, 0
    %v286 = vsel %vm189, 1, 0
    %v287 = vsel %vm190, 1, 0
    %v288 = vsel %vm191, 1, 0
    %v289 = vsel %vm192, 1, 0
    %v290 = vsel %vm193, 1, 0
    %v291 = vsel %vm194, 1, 0
    %v292 = vsel %vm195, 1, 0
    %v293 = vsel %vm196, 1, 0
    %v294 = vsel %vm197, 1, 0
    %v295 = vsel %vm198, 1, 0
    %v296 = vsel %vm199, 1, 0
    %v297 = vsel %vm200, 1, 0
    %v298 = vsel %vm201, 1, 0
    %v299 = vsel %vm202, 1, 0
    %vm300 = vcmp.eq.s32.totalorder %v268, 1
    %vm301 = vcmp.eq.s32.totalorder %v269, 1
    %vm302 = vcmp.eq.s32.totalorder %v270, 1
    %vm303 = vcmp.eq.s32.totalorder %v271, 1
    %vm304 = vcmp.eq.s32.totalorder %v272, 1
    %vm305 = vcmp.eq.s32.totalorder %v273, 1
    %vm306 = vcmp.eq.s32.totalorder %v274, 1
    %vm307 = vcmp.eq.s32.totalorder %v275, 1
    %vm308 = vcmp.eq.s32.totalorder %v276, 1
    %vm309 = vcmp.eq.s32.totalorder %v277, 1
    %vm310 = vcmp.eq.s32.totalorder %v278, 1
    %vm311 = vcmp.eq.s32.totalorder %v279, 1
    %vm312 = vcmp.eq.s32.totalorder %v280, 1
    %vm313 = vcmp.eq.s32.totalorder %v281, 1
    %vm314 = vcmp.eq.s32.totalorder %v282, 1
    %vm315 = vcmp.eq.s32.totalorder %v283, 1
    %vm316 = vcmp.eq.s32.totalorder %v284, 1
    %vm317 = vcmp.eq.s32.totalorder %v285, 1
    %vm318 = vcmp.eq.s32.totalorder %v286, 1
    %vm319 = vcmp.eq.s32.totalorder %v287, 1
    %vm320 = vcmp.eq.s32.totalorder %v288, 1
    %vm321 = vcmp.eq.s32.totalorder %v289, 1
    %vm322 = vcmp.eq.s32.totalorder %v290, 1
    %vm323 = vcmp.eq.s32.totalorder %v291, 1
    %vm324 = vcmp.eq.s32.totalorder %v292, 1
    %vm325 = vcmp.eq.s32.totalorder %v293, 1
    %vm326 = vcmp.eq.s32.totalorder %v294, 1
    %vm327 = vcmp.eq.s32.totalorder %v295, 1
    %vm328 = vcmp.eq.s32.totalorder %v296, 1
    %vm329 = vcmp.eq.s32.totalorder %v297, 1
    %vm330 = vcmp.eq.s32.totalorder %v298, 1
    %vm331 = vcmp.eq.s32.totalorder %v299, 1
    %v332 = vsel %vm300, 0.0, %v267
    %v333 = vsel %vm301, 0.0, %v266
    %v334 = vsel %vm302, 0.0, %v265
    %v335 = vsel %vm303, 0.0, %v264
    %v336 = vsel %vm304, 0.0, %v263
    %v337 = vsel %vm305, 0.0, %v262
    %v338 = vsel %vm306, 0.0, %v261
    %v339 = vsel %vm307, 0.0, %v260
    %v340 = vsel %vm308, 0.0, %v259
    %v341 = vsel %vm309, 0.0, %v258
    %v342 = vsel %vm310, 0.0, %v257
    %v343 = vsel %vm311, 0.0, %v256
    %v344 = vsel %vm312, 0.0, %v255
    %v345 = vsel %vm313, 0.0, %v254
    %v346 = vsel %vm314, 0.0, %v253
    %v347 = vsel %vm315, 0.0, %v252
    %v348 = vsel %vm316, 0.0, %v251
    %v349 = vsel %vm317, 0.0, %v250
    %v350 = vsel %vm318, 0.0, %v249
    %v351 = vsel %vm319, 0.0, %v248
    %v352 = vsel %vm320, 0.0, %v247
    %v353 = vsel %vm321, 0.0, %v246
    %v354 = vsel %vm322, 0.0, %v245
    %v355 = vsel %vm323, 0.0, %v244
    %v356 = vsel %vm324, 0.0, %v243
    %v357 = vsel %vm325, 0.0, %v242
    %v358 = vsel %vm326, 0.0, %v241
    %v359 = vsel %vm327, 0.0, %v240
    %v360 = vsel %vm328, 0.0, %v239
    %v361 = vsel %vm329, 0.0, %v238
    %v362 = vsel %vm330, 0.0, %v237
    %v363 = vsel %vm331, 0.0, %v236
    %v364 = vpack.c.bf16 %v333, %v332
    %v365 = vpack.c.bf16 %v335, %v334
    %v366 = vpack.c.bf16 %v337, %v336
    %v367 = vpack.c.bf16 %v339, %v338
    %v368 = vpack.c.bf16 %v341, %v340
    %v369 = vpack.c.bf16 %v343, %v342
    %v370 = vpack.c.bf16 %v345, %v344
    %v371 = vpack.c.bf16 %v347, %v346
    %v372 = vpack.c.bf16 %v349, %v348
    %v373 = vpack.c.bf16 %v351, %v350
    %v374 = vpack.c.bf16 %v353, %v352
    %v375 = vpack.c.bf16 %v355, %v354
    %v376 = vpack.c.bf16 %v357, %v356
    %v377 = vpack.c.bf16 %v359, %v358
    %v378 = vpack.c.bf16 %v361, %v360
    %v379 = vpack.c.bf16 %v363, %v362
    %vm380 = vcmp.eq.s32.totalorder %v139, 63
    %vm381 = vcmp.eq.s32.totalorder %v140, 63
    %vm382 = vcmp.eq.s32.totalorder %v141, 63
    %vm383 = vcmp.eq.s32.totalorder %v142, 63
    %vm384 = vcmp.eq.s32.totalorder %v143, 63
    %vm385 = vcmp.eq.s32.totalorder %v144, 63
    %vm386 = vcmp.eq.s32.totalorder %v145, 63
    %vm387 = vcmp.eq.s32.totalorder %v146, 63
    %vm388 = vcmp.eq.s32.totalorder %v147, 63
    %vm389 = vcmp.eq.s32.totalorder %v148, 63
    %vm390 = vcmp.eq.s32.totalorder %v149, 63
    %vm391 = vcmp.eq.s32.totalorder %v150, 63
    %vm392 = vcmp.eq.s32.totalorder %v151, 63
    %vm393 = vcmp.eq.s32.totalorder %v152, 63
    %vm394 = vcmp.eq.s32.totalorder %v153, 63
    %vm395 = vcmp.eq.s32.totalorder %v154, 63
    %vm396 = vcmp.eq.s32.totalorder %v155, 63
    %vm397 = vcmp.eq.s32.totalorder %v156, 63
    %vm398 = vcmp.eq.s32.totalorder %v157, 63
    %vm399 = vcmp.eq.s32.totalorder %v158, 63
    %vm400 = vcmp.eq.s32.totalorder %v159, 63
    %vm401 = vcmp.eq.s32.totalorder %v160, 63
    %vm402 = vcmp.eq.s32.totalorder %v161, 63
    %vm403 = vcmp.eq.s32.totalorder %v162, 63
    %vm404 = vcmp.eq.s32.totalorder %v163, 63
    %vm405 = vcmp.eq.s32.totalorder %v164, 63
    %vm406 = vcmp.eq.s32.totalorder %v165, 63
    %vm407 = vcmp.eq.s32.totalorder %v166, 63
    %vm408 = vcmp.eq.s32.totalorder %v167, 63
    %vm409 = vcmp.eq.s32.totalorder %v168, 63
    %vm410 = vcmp.eq.s32.totalorder %v169, 63
    %vm411 = vcmp.eq.s32.totalorder %v170, 63
    %v412 = vrot.slane %v74, 1
    %v413 = vrot.slane %v75, 1
    %v414 = vrot.slane %v76, 1
    %v415 = vrot.slane %v77, 1
    %v416 = vrot.slane %v78, 1
    %v417 = vrot.slane %v79, 1
    %v418 = vrot.slane %v80, 1
    %v419 = vrot.slane %v81, 1
    %v420 = vrot.slane %v82, 1
    %v421 = vrot.slane %v83, 1
    %v422 = vrot.slane %v84, 1
    %v423 = vrot.slane %v85, 1
    %v424 = vrot.slane %v86, 1
    %v425 = vrot.slane %v87, 1
    %v426 = vrot.slane %v88, 1
    %v427 = vrot.slane %v89, 1
    %v428 = vrot.slane %v90, 1
    %v429 = vrot.slane %v91, 1
    %v430 = vrot.slane %v92, 1
    %v431 = vrot.slane %v93, 1
    %v432 = vrot.slane %v94, 1
    %v433 = vrot.slane %v95, 1
    %v434 = vrot.slane %v96, 1
    %v435 = vrot.slane %v97, 1
    %v436 = vrot.slane %v98, 1
    %v437 = vrot.slane %v99, 1
    %v438 = vrot.slane %v100, 1
    %v439 = vrot.slane %v101, 1
    %v440 = vrot.slane %v102, 1
    %v441 = vrot.slane %v103, 1
    %v442 = vrot.slane %v104, 1
    %v443 = vrot.slane %v105, 1
    %vm444 = vcmp.lt.s32.totalorder %v107, 7
    %v445 = vsel %vm444, %v442, %v443
    %v446 = vsel %vm444, %v441, %v442
    %v447 = vsel %vm444, %v440, %v441
    %v448 = vsel %vm444, %v439, %v440
    %v449 = vsel %vm444, %v438, %v439
    %v450 = vsel %vm444, %v437, %v438
    %v451 = vsel %vm444, %v436, %v437
    %v452 = vsel %vm444, %v435, %v436
    %v453 = vsel %vm444, %v434, %v435
    %v454 = vsel %vm444, %v433, %v434
    %v455 = vsel %vm444, %v432, %v433
    %v456 = vsel %vm444, %v431, %v432
    %v457 = vsel %vm444, %v430, %v431
    %v458 = vsel %vm444, %v429, %v430
    %v459 = vsel %vm444, %v428, %v429
    %v460 = vsel %vm444, %v427, %v428
    %v461 = vsel %vm444, %v426, %v427
    %v462 = vsel %vm444, %v425, %v426
    %v463 = vsel %vm444, %v424, %v425
    %v464 = vsel %vm444, %v423, %v424
    %v465 = vsel %vm444, %v422, %v423
    %v466 = vsel %vm444, %v421, %v422
    %v467 = vsel %vm444, %v420, %v421
    %v468 = vsel %vm444, %v419, %v420
    %v469 = vsel %vm444, %v418, %v419
    %v470 = vsel %vm444, %v417, %v418
    %v471 = vsel %vm444, %v416, %v417
    %v472 = vsel %vm444, %v415, %v416
    %v473 = vsel %vm444, %v414, %v415
    %v474 = vsel %vm444, %v413, %v414
    %v475 = vsel %vm444, %v412, %v413
    %v476 = vsel %vm444, %v443, %v412
    %v477 = vsel %vm380, 1, 0
    %v478 = vsel %vm381, 1, 0
    %v479 = vsel %vm382, 1, 0
    %v480 = vsel %vm383, 1, 0
    %v481 = vsel %vm384, 1, 0
    %v482 = vsel %vm385, 1, 0
    %v483 = vsel %vm386, 1, 0
    %v484 = vsel %vm387, 1, 0
    %v485 = vsel %vm388, 1, 0
    %v486 = vsel %vm389, 1, 0
    %v487 = vsel %vm390, 1, 0
    %v488 = vsel %vm391, 1, 0
    %v489 = vsel %vm392, 1, 0
    %v490 = vsel %vm393, 1, 0
    %v491 = vsel %vm394, 1, 0
    %v492 = vsel %vm395, 1, 0
    %v493 = vsel %vm396, 1, 0
    %v494 = vsel %vm397, 1, 0
    %v495 = vsel %vm398, 1, 0
    %v496 = vsel %vm399, 1, 0
    %v497 = vsel %vm400, 1, 0
    %v498 = vsel %vm401, 1, 0
    %v499 = vsel %vm402, 1, 0
    %v500 = vsel %vm403, 1, 0
    %v501 = vsel %vm404, 1, 0
    %v502 = vsel %vm405, 1, 0
    %v503 = vsel %vm406, 1, 0
    %v504 = vsel %vm407, 1, 0
    %v505 = vsel %vm408, 1, 0
    %v506 = vsel %vm409, 1, 0
    %v507 = vsel %vm410, 1, 0
    %v508 = vsel %vm411, 1, 0
    %vm509 = vcmp.eq.s32.totalorder %v477, 1
    %vm510 = vcmp.eq.s32.totalorder %v478, 1
    %vm511 = vcmp.eq.s32.totalorder %v479, 1
    %vm512 = vcmp.eq.s32.totalorder %v480, 1
    %vm513 = vcmp.eq.s32.totalorder %v481, 1
    %vm514 = vcmp.eq.s32.totalorder %v482, 1
    %vm515 = vcmp.eq.s32.totalorder %v483, 1
    %vm516 = vcmp.eq.s32.totalorder %v484, 1
    %vm517 = vcmp.eq.s32.totalorder %v485, 1
    %vm518 = vcmp.eq.s32.totalorder %v486, 1
    %vm519 = vcmp.eq.s32.totalorder %v487, 1
    %vm520 = vcmp.eq.s32.totalorder %v488, 1
    %vm521 = vcmp.eq.s32.totalorder %v489, 1
    %vm522 = vcmp.eq.s32.totalorder %v490, 1
    %vm523 = vcmp.eq.s32.totalorder %v491, 1
    %vm524 = vcmp.eq.s32.totalorder %v492, 1
    %vm525 = vcmp.eq.s32.totalorder %v493, 1
    %vm526 = vcmp.eq.s32.totalorder %v494, 1
    %vm527 = vcmp.eq.s32.totalorder %v495, 1
    %vm528 = vcmp.eq.s32.totalorder %v496, 1
    %vm529 = vcmp.eq.s32.totalorder %v497, 1
    %vm530 = vcmp.eq.s32.totalorder %v498, 1
    %vm531 = vcmp.eq.s32.totalorder %v499, 1
    %vm532 = vcmp.eq.s32.totalorder %v500, 1
    %vm533 = vcmp.eq.s32.totalorder %v501, 1
    %vm534 = vcmp.eq.s32.totalorder %v502, 1
    %vm535 = vcmp.eq.s32.totalorder %v503, 1
    %vm536 = vcmp.eq.s32.totalorder %v504, 1
    %vm537 = vcmp.eq.s32.totalorder %v505, 1
    %vm538 = vcmp.eq.s32.totalorder %v506, 1
    %vm539 = vcmp.eq.s32.totalorder %v507, 1
    %vm540 = vcmp.eq.s32.totalorder %v508, 1
    %v541 = vsel %vm509, 0.0, %v475
    %v542 = vsel %vm510, 0.0, %v474
    %v543 = vsel %vm511, 0.0, %v473
    %v544 = vsel %vm512, 0.0, %v472
    %v545 = vsel %vm513, 0.0, %v471
    %v546 = vsel %vm514, 0.0, %v470
    %v547 = vsel %vm515, 0.0, %v469
    %v548 = vsel %vm516, 0.0, %v468
    %v549 = vsel %vm517, 0.0, %v467
    %v550 = vsel %vm518, 0.0, %v466
    %v551 = vsel %vm519, 0.0, %v465
    %v552 = vsel %vm520, 0.0, %v464
    %v553 = vsel %vm521, 0.0, %v463
    %v554 = vsel %vm522, 0.0, %v462
    %v555 = vsel %vm523, 0.0, %v461
    %v556 = vsel %vm524, 0.0, %v460
    %v557 = vsel %vm525, 0.0, %v459
    %v558 = vsel %vm526, 0.0, %v458
    %v559 = vsel %vm527, 0.0, %v457
    %v560 = vsel %vm528, 0.0, %v456
    %v561 = vsel %vm529, 0.0, %v455
    %v562 = vsel %vm530, 0.0, %v454
    %v563 = vsel %vm531, 0.0, %v453
    %v564 = vsel %vm532, 0.0, %v452
    %v565 = vsel %vm533, 0.0, %v451
    %v566 = vsel %vm534, 0.0, %v450
    %v567 = vsel %vm535, 0.0, %v449
    %v568 = vsel %vm536, 0.0, %v448
    %v569 = vsel %vm537, 0.0, %v447
    %v570 = vsel %vm538, 0.0, %v446
    %v571 = vsel %vm539, 0.0, %v445
    %v572 = vsel %vm540, 0.0, %v476
    %v573 = vpack.c.bf16 %v542, %v541
    %v574 = vpack.c.bf16 %v544, %v543
    %v575 = vpack.c.bf16 %v546, %v545
    %v576 = vpack.c.bf16 %v548, %v547
    %v577 = vpack.c.bf16 %v550, %v549
    %v578 = vpack.c.bf16 %v552, %v551
    %v579 = vpack.c.bf16 %v554, %v553
    %v580 = vpack.c.bf16 %v556, %v555
    %v581 = vpack.c.bf16 %v558, %v557
    %v582 = vpack.c.bf16 %v560, %v559
    %v583 = vpack.c.bf16 %v562, %v561
    %v584 = vpack.c.bf16 %v564, %v563
    %v585 = vpack.c.bf16 %v566, %v565
    %v586 = vpack.c.bf16 %v568, %v567
    %v587 = vpack.c.bf16 %v570, %v569
    %v588 = vpack.c.bf16 %v572, %v571
    %v589 = vld [vmem:[%s1] sm:$0xf]
    %v590 = vld [vmem:[%s1 + $0x4] sm:$0xf]
    %v591 = vld [vmem:[%s1 + $0x8] sm:$0xf]
    %v592 = vld [vmem:[%s1 + $0xc] sm:$0xf]
    %v593 = vld [vmem:[%s1 + $0x10] sm:$0xf]
    %v594 = vld [vmem:[%s1 + $0x14] sm:$0xf]
    %v595 = vld [vmem:[%s1 + $0x18] sm:$0x1]
    %s596 = scalar_lea.vmem %s1, 28
    %v597 = vld [vmem:[%s596] sm:$0xf]
    %v598 = vld [vmem:[%s596 + $0x4] sm:$0xf]
    %v599 = vld [vmem:[%s596 + $0x8] sm:$0xf]
    %v600 = vld [vmem:[%s596 + $0xc] sm:$0xf]
    %v601 = vld [vmem:[%s596 + $0x10] sm:$0xf]
    %v602 = vld [vmem:[%s596 + $0x14] sm:$0xf]
    %v603 = vld [vmem:[%s596 + $0x18] sm:$0x1]
    %v636 = vunpack.c.l.b16 %v42
    %v637 = vunpack.c.l.b16 %v43
    %v638 = vunpack.c.l.b16 %v44
    %v639 = vunpack.c.l.b16 %v45
    %v640 = vunpack.c.l.b16 %v46
    %v641 = vunpack.c.l.b16 %v47
    %v642 = vunpack.c.l.b16 %v48
    %v643 = vunpack.c.l.b16 %v49
    %v644 = vunpack.c.l.b16 %v50
    %v645 = vunpack.c.l.b16 %v51
    %v646 = vunpack.c.l.b16 %v52
    %v647 = vunpack.c.l.b16 %v53
    %v648 = vunpack.c.l.b16 %v54
    %v649 = vunpack.c.l.b16 %v55
    %v650 = vunpack.c.l.b16 %v56
    %v651 = vunpack.c.l.b16 %v57
    %v652 = vunpack.c.l.b16 %v58
    %v653 = vunpack.c.l.b16 %v59
    %v654 = vunpack.c.l.b16 %v60
    %v655 = vunpack.c.l.b16 %v61
    %v656 = vunpack.c.l.b16 %v62
    %v657 = vunpack.c.l.b16 %v63
    %v658 = vunpack.c.l.b16 %v64
    %v659 = vunpack.c.l.b16 %v65
    %v660 = vunpack.c.l.b16 %v66
    %v661 = vunpack.c.l.b16 %v67
    %v662 = vunpack.c.l.b16 %v68
    %v663 = vunpack.c.l.b16 %v69
    %v664 = vunpack.c.l.b16 %v70
    %v665 = vunpack.c.l.b16 %v71
    %v666 = vunpack.c.l.b16 %v72
    %v667 = vunpack.c.l.b16 %v73
    %v668 = vpack.c.b16 %v637, %v636
    %v669 = vpack.c.b16 %v639, %v638
    %v670 = vpack.c.b16 %v641, %v640
    %v671 = vpack.c.b16 %v643, %v642
    %v672 = vpack.c.b16 %v645, %v644
    %v673 = vpack.c.b16 %v647, %v646
    %v674 = vpack.c.b16 %v649, %v648
    %v675 = vpack.c.b16 %v651, %v650
    %v676 = vpack.c.b16 %v653, %v652
    %v677 = vpack.c.b16 %v655, %v654
    %v678 = vpack.c.b16 %v657, %v656
    %v679 = vpack.c.b16 %v659, %v658
    %v680 = vpack.c.b16 %v661, %v660
    %v681 = vpack.c.b16 %v663, %v662
    %v682 = vpack.c.b16 %v665, %v664
    %v683 = vpack.c.b16 %v667, %v666
    %v691 = vunpack.c.l.b16 %v597
    %v692 = vunpack.c.l.b16 %v598
    %v693 = vunpack.c.l.b16 %v599
    %v694 = vunpack.c.l.b16 %v600
    %v695 = vunpack.c.l.b16 %v601
    %v696 = vunpack.c.l.b16 %v602
    %v697 = vunpack.c.l.b16 %v603
    %v698 = vpack.c.b16 %v692, %v691
    %v699 = vpack.c.b16 %v694, %v693
    %v700 = vpack.c.b16 %v696, %v695
    %v701 = vpack.c.b16 %v697, %v697
    %vm705 = vcmask 408576
    %v707 = vsel %vm705, %v668, 0
    %v710 = vsel %vm705, %v669, 0
    %v713 = vsel %vm705, %v670, 0
    %v716 = vsel %vm705, %v671, 0
    %v719 = vsel %vm705, %v672, 0
    %v722 = vsel %vm705, %v673, 0
    %v725 = vsel %vm705, %v674, 0
    %v728 = vsel %vm705, %v675, 0
    %v731 = vsel %vm705, %v676, 0
    %v734 = vsel %vm705, %v677, 0
    %v737 = vsel %vm705, %v678, 0
    %v740 = vsel %vm705, %v679, 0
    %v743 = vsel %vm705, %v680, 0
    %v746 = vsel %vm705, %v681, 0
    %v749 = vsel %vm705, %v682, 0
    %v752 = vsel %vm705, %v683, 0
    %vm754 = vcmask 1040384
    %v756 = vsel %vm754, %v701, 0
    %758 = vmatpush.bf16.msra.mxu0 0
    %759 = vmatpush.bf16.msra.mxu0 0
    %760 = vmatpush.bf16.msra.mxu0 0
    %761 = vmatpush.bf16.msra.mxu0 0
    %762 = vmatpush.bf16.msra.mxu0 %v756
    %763 = vmatpush.bf16.msra.mxu0 %v700
    %764 = vmatpush.bf16.msra.mxu0 %v699
    %765 = vmatpush.bf16.msra.mxu0 %v698
    %766 = vmatmul.bf16.gmra.mxu0 %v707
    %v767 = vpop.f32.mrf.mxu0
    %v768 = vadd.f32 0.0, %v767
    %v769 = vpop.f32.mrf.mxu0
    %v770 = vadd.f32 0.0, %v769
    %771 = vmatmul.bf16.gmra.mxu0 %v710
    %v772 = vpop.f32.mrf.mxu0
    %v773 = vadd.f32 0.0, %v772
    %v774 = vpop.f32.mrf.mxu0
    %v775 = vadd.f32 0.0, %v774
    %776 = vmatmul.bf16.gmra.mxu0 %v713
    %v777 = vpop.f32.mrf.mxu0
    %v778 = vadd.f32 0.0, %v777
    %v779 = vpop.f32.mrf.mxu0
    %v780 = vadd.f32 0.0, %v779
    %781 = vmatmul.bf16.gmra.mxu0 %v716
    %v782 = vpop.f32.mrf.mxu0
    %v783 = vadd.f32 0.0, %v782
    %v784 = vpop.f32.mrf.mxu0
    %v785 = vadd.f32 0.0, %v784
    %786 = vmatmul.bf16.gmra.mxu0 %v719
    %v787 = vpop.f32.mrf.mxu0
    %v788 = vadd.f32 0.0, %v787
    %v789 = vpop.f32.mrf.mxu0
    %v790 = vadd.f32 0.0, %v789
    %791 = vmatmul.bf16.gmra.mxu0 %v722
    %v792 = vpop.f32.mrf.mxu0
    %v793 = vadd.f32 0.0, %v792
    %v794 = vpop.f32.mrf.mxu0
    %v795 = vadd.f32 0.0, %v794
    %796 = vmatmul.bf16.gmra.mxu0 %v725
    %v797 = vpop.f32.mrf.mxu0
    %v798 = vadd.f32 0.0, %v797
    %v799 = vpop.f32.mrf.mxu0
    %v800 = vadd.f32 0.0, %v799
    %801 = vmatmul.bf16.gmra.mxu0 %v728
    %v802 = vpop.f32.mrf.mxu0
    %v803 = vadd.f32 0.0, %v802
    %v804 = vpop.f32.mrf.mxu0
    %v805 = vadd.f32 0.0, %v804
    %806 = vmatmul.bf16.gmra.mxu0 %v731
    %v807 = vpop.f32.mrf.mxu0
    %v808 = vadd.f32 0.0, %v807
    %v809 = vpop.f32.mrf.mxu0
    %v810 = vadd.f32 0.0, %v809
    %811 = vmatmul.bf16.gmra.mxu0 %v734
    %v812 = vpop.f32.mrf.mxu0
    %v813 = vadd.f32 0.0, %v812
    %v814 = vpop.f32.mrf.mxu0
    %v815 = vadd.f32 0.0, %v814
    %816 = vmatmul.bf16.gmra.mxu0 %v737
    %v817 = vpop.f32.mrf.mxu0
    %v818 = vadd.f32 0.0, %v817
    %v819 = vpop.f32.mrf.mxu0
    %v820 = vadd.f32 0.0, %v819
    %821 = vmatmul.bf16.gmra.mxu0 %v740
    %v822 = vpop.f32.mrf.mxu0
    %v823 = vadd.f32 0.0, %v822
    %v824 = vpop.f32.mrf.mxu0
    %v825 = vadd.f32 0.0, %v824
    %826 = vmatmul.bf16.gmra.mxu0 %v743
    %v827 = vpop.f32.mrf.mxu0
    %v828 = vadd.f32 0.0, %v827
    %v829 = vpop.f32.mrf.mxu0
    %v830 = vadd.f32 0.0, %v829
    %831 = vmatmul.bf16.gmra.mxu0 %v746
    %v832 = vpop.f32.mrf.mxu0
    %v833 = vadd.f32 0.0, %v832
    %v834 = vpop.f32.mrf.mxu0
    %v835 = vadd.f32 0.0, %v834
    %836 = vmatmul.bf16.gmra.mxu0 %v749
    %v837 = vpop.f32.mrf.mxu0
    %v838 = vadd.f32 0.0, %v837
    %v839 = vpop.f32.mrf.mxu0
    %v840 = vadd.f32 0.0, %v839
    %841 = vmatmul.bf16.gmra.mxu0 %v752
    %v842 = vpop.f32.mrf.mxu0
    %v843 = vadd.f32 0.0, %v842
    %v844 = vpop.f32.mrf.mxu0
    %v845 = vadd.f32 0.0, %v844
    %846 = vdwg.mxu0
    %v854 = vunpack.c.l.b16 %v589
    %v855 = vunpack.c.l.b16 %v590
    %v856 = vunpack.c.l.b16 %v591
    %v857 = vunpack.c.l.b16 %v592
    %v858 = vunpack.c.l.b16 %v593
    %v859 = vunpack.c.l.b16 %v594
    %v860 = vunpack.c.l.b16 %v595
    %v861 = vpack.c.b16 %v855, %v854
    %v862 = vpack.c.b16 %v857, %v856
    %v863 = vpack.c.b16 %v859, %v858
    %v864 = vpack.c.b16 %v860, %v860
    %v869 = vsel %vm705, %v364, 0
    %v872 = vsel %vm705, %v365, 0
    %v875 = vsel %vm705, %v366, 0
    %v878 = vsel %vm705, %v367, 0
    %v881 = vsel %vm705, %v368, 0
    %v884 = vsel %vm705, %v369, 0
    %v887 = vsel %vm705, %v370, 0
    %v890 = vsel %vm705, %v371, 0
    %v893 = vsel %vm705, %v372, 0
    %v896 = vsel %vm705, %v373, 0
    %v899 = vsel %vm705, %v374, 0
    %v902 = vsel %vm705, %v375, 0
    %v905 = vsel %vm705, %v376, 0
    %v908 = vsel %vm705, %v377, 0
    %v911 = vsel %vm705, %v378, 0
    %v914 = vsel %vm705, %v379, 0
    %v917 = vsel %vm754, %v864, 0
    %919 = vmatpush.bf16.msra.mxu0 0
    %920 = vmatpush.bf16.msra.mxu0 0
    %921 = vmatpush.bf16.msra.mxu0 0
    %922 = vmatpush.bf16.msra.mxu0 0
    %923 = vmatpush.bf16.msra.mxu0 %v917
    %924 = vmatpush.bf16.msra.mxu0 %v863
    %925 = vmatpush.bf16.msra.mxu0 %v862
    %926 = vmatpush.bf16.msra.mxu0 %v861
    %927 = vmatmul.bf16.gmra.mxu0 %v869
    %v928 = vpop.f32.mrf.mxu0
    %v929 = vadd.f32 %v768, %v928
    %v930 = vpop.f32.mrf.mxu0
    %v931 = vadd.f32 %v770, %v930
    %932 = vmatmul.bf16.gmra.mxu0 %v872
    %v933 = vpop.f32.mrf.mxu0
    %v934 = vadd.f32 %v773, %v933
    %v935 = vpop.f32.mrf.mxu0
    %v936 = vadd.f32 %v775, %v935
    %937 = vmatmul.bf16.gmra.mxu0 %v875
    %v938 = vpop.f32.mrf.mxu0
    %v939 = vadd.f32 %v778, %v938
    %v940 = vpop.f32.mrf.mxu0
    %v941 = vadd.f32 %v780, %v940
    %942 = vmatmul.bf16.gmra.mxu0 %v878
    %v943 = vpop.f32.mrf.mxu0
    %v944 = vadd.f32 %v783, %v943
    %v945 = vpop.f32.mrf.mxu0
    %v946 = vadd.f32 %v785, %v945
    %947 = vmatmul.bf16.gmra.mxu0 %v881
    %v948 = vpop.f32.mrf.mxu0
    %v949 = vadd.f32 %v788, %v948
    %v950 = vpop.f32.mrf.mxu0
    %v951 = vadd.f32 %v790, %v950
    %952 = vmatmul.bf16.gmra.mxu0 %v884
    %v953 = vpop.f32.mrf.mxu0
    %v954 = vadd.f32 %v793, %v953
    %v955 = vpop.f32.mrf.mxu0
    %v956 = vadd.f32 %v795, %v955
    %957 = vmatmul.bf16.gmra.mxu0 %v887
    %v958 = vpop.f32.mrf.mxu0
    %v959 = vadd.f32 %v798, %v958
    %v960 = vpop.f32.mrf.mxu0
    %v961 = vadd.f32 %v800, %v960
    %962 = vmatmul.bf16.gmra.mxu0 %v890
    %v963 = vpop.f32.mrf.mxu0
    %v964 = vadd.f32 %v803, %v963
    %v965 = vpop.f32.mrf.mxu0
    %v966 = vadd.f32 %v805, %v965
    %967 = vmatmul.bf16.gmra.mxu0 %v893
    %v968 = vpop.f32.mrf.mxu0
    %v969 = vadd.f32 %v808, %v968
    %v970 = vpop.f32.mrf.mxu0
    %v971 = vadd.f32 %v810, %v970
    %972 = vmatmul.bf16.gmra.mxu0 %v896
    %v973 = vpop.f32.mrf.mxu0
    %v974 = vadd.f32 %v813, %v973
    %v975 = vpop.f32.mrf.mxu0
    %v976 = vadd.f32 %v815, %v975
    %977 = vmatmul.bf16.gmra.mxu0 %v899
    %v978 = vpop.f32.mrf.mxu0
    %v979 = vadd.f32 %v818, %v978
    %v980 = vpop.f32.mrf.mxu0
    %v981 = vadd.f32 %v820, %v980
    %982 = vmatmul.bf16.gmra.mxu0 %v902
    %v983 = vpop.f32.mrf.mxu0
    %v984 = vadd.f32 %v823, %v983
    %v985 = vpop.f32.mrf.mxu0
    %v986 = vadd.f32 %v825, %v985
    %987 = vmatmul.bf16.gmra.mxu0 %v905
    %v988 = vpop.f32.mrf.mxu0
    %v989 = vadd.f32 %v828, %v988
    %v990 = vpop.f32.mrf.mxu0
    %v991 = vadd.f32 %v830, %v990
    %992 = vmatmul.bf16.gmra.mxu0 %v908
    %v993 = vpop.f32.mrf.mxu0
    %v994 = vadd.f32 %v833, %v993
    %v995 = vpop.f32.mrf.mxu0
    %v996 = vadd.f32 %v835, %v995
    %997 = vmatmul.bf16.gmra.mxu0 %v911
    %v998 = vpop.f32.mrf.mxu0
    %v999 = vadd.f32 %v838, %v998
    %v1000 = vpop.f32.mrf.mxu0
    %v1001 = vadd.f32 %v840, %v1000
    %1002 = vmatmul.bf16.gmra.mxu0 %v914
    %v1003 = vpop.f32.mrf.mxu0
    %v1004 = vadd.f32 %v843, %v1003
    %v1005 = vpop.f32.mrf.mxu0
    %v1006 = vadd.f32 %v845, %v1005
    %1007 = vdwg.mxu0
    %s1008 = scalar_lea.vmem %s1, 56
    %v1009 = vld [vmem:[%s1008] sm:$0xf]
    %v1010 = vld [vmem:[%s1008 + $0x4] sm:$0xf]
    %v1011 = vld [vmem:[%s1008 + $0x8] sm:$0xf]
    %v1012 = vld [vmem:[%s1008 + $0xc] sm:$0xf]
    %v1013 = vld [vmem:[%s1008 + $0x10] sm:$0xf]
    %v1014 = vld [vmem:[%s1008 + $0x14] sm:$0xf]
    %v1015 = vld [vmem:[%s1008 + $0x18] sm:$0x1]
    %v1023 = vunpack.c.l.b16 %v1009
    %v1024 = vunpack.c.l.b16 %v1010
    %v1025 = vunpack.c.l.b16 %v1011
    %v1026 = vunpack.c.l.b16 %v1012
    %v1027 = vunpack.c.l.b16 %v1013
    %v1028 = vunpack.c.l.b16 %v1014
    %v1029 = vunpack.c.l.b16 %v1015
    %v1030 = vpack.c.b16 %v1024, %v1023
    %v1031 = vpack.c.b16 %v1026, %v1025
    %v1032 = vpack.c.b16 %v1028, %v1027
    %v1033 = vpack.c.b16 %v1029, %v1029
    %v1038 = vsel %vm705, %v573, 0
    %v1041 = vsel %vm705, %v574, 0
    %v1044 = vsel %vm705, %v575, 0
    %v1047 = vsel %vm705, %v576, 0
    %v1050 = vsel %vm705, %v577, 0
    %v1053 = vsel %vm705, %v578, 0
    %v1056 = vsel %vm705, %v579, 0
    %v1059 = vsel %vm705, %v580, 0
    %v1062 = vsel %vm705, %v581, 0
    %v1065 = vsel %vm705, %v582, 0
    %v1068 = vsel %vm705, %v583, 0
    %v1071 = vsel %vm705, %v584, 0
    %v1074 = vsel %vm705, %v585, 0
    %v1077 = vsel %vm705, %v586, 0
    %v1080 = vsel %vm705, %v587, 0
    %v1083 = vsel %vm705, %v588, 0
    %v1086 = vsel %vm754, %v1033, 0
    %1088 = vmatpush.bf16.msra.mxu0 0
    %1089 = vmatpush.bf16.msra.mxu0 0
    %1090 = vmatpush.bf16.msra.mxu0 0
    %1091 = vmatpush.bf16.msra.mxu0 0
    %1092 = vmatpush.bf16.msra.mxu0 %v1086
    %1093 = vmatpush.bf16.msra.mxu0 %v1032
    %1094 = vmatpush.bf16.msra.mxu0 %v1031
    %1095 = vmatpush.bf16.msra.mxu0 %v1030
    %1096 = vmatmul.bf16.gmra.mxu0 %v1038
    %v1097 = vpop.f32.mrf.mxu0
    %v1098 = vadd.f32 0.0, %v1097
    %v1099 = vpop.f32.mrf.mxu0
    %v1100 = vadd.f32 0.0, %v1099
    %1101 = vmatmul.bf16.gmra.mxu0 %v1041
    %v1102 = vpop.f32.mrf.mxu0
    %v1103 = vadd.f32 0.0, %v1102
    %v1104 = vpop.f32.mrf.mxu0
    %v1105 = vadd.f32 0.0, %v1104
    %1106 = vmatmul.bf16.gmra.mxu0 %v1044
    %v1107 = vpop.f32.mrf.mxu0
    %v1108 = vadd.f32 0.0, %v1107
    %v1109 = vpop.f32.mrf.mxu0
    %v1110 = vadd.f32 0.0, %v1109
    %1111 = vmatmul.bf16.gmra.mxu0 %v1047
    %v1112 = vpop.f32.mrf.mxu0
    %v1113 = vadd.f32 0.0, %v1112
    %v1114 = vpop.f32.mrf.mxu0
    %v1115 = vadd.f32 0.0, %v1114
    %1116 = vmatmul.bf16.gmra.mxu0 %v1050
    %v1117 = vpop.f32.mrf.mxu0
    %v1118 = vadd.f32 0.0, %v1117
    %v1119 = vpop.f32.mrf.mxu0
    %v1120 = vadd.f32 0.0, %v1119
    %1121 = vmatmul.bf16.gmra.mxu0 %v1053
    %v1122 = vpop.f32.mrf.mxu0
    %v1123 = vadd.f32 0.0, %v1122
    %v1124 = vpop.f32.mrf.mxu0
    %v1125 = vadd.f32 0.0, %v1124
    %1126 = vmatmul.bf16.gmra.mxu0 %v1056
    %v1127 = vpop.f32.mrf.mxu0
    %v1128 = vadd.f32 0.0, %v1127
    %v1129 = vpop.f32.mrf.mxu0
    %v1130 = vadd.f32 0.0, %v1129
    %1131 = vmatmul.bf16.gmra.mxu0 %v1059
    %v1132 = vpop.f32.mrf.mxu0
    %v1133 = vadd.f32 0.0, %v1132
    %v1134 = vpop.f32.mrf.mxu0
    %v1135 = vadd.f32 0.0, %v1134
    %1136 = vmatmul.bf16.gmra.mxu0 %v1062
    %v1137 = vpop.f32.mrf.mxu0
    %v1138 = vadd.f32 0.0, %v1137
    %v1139 = vpop.f32.mrf.mxu0
    %v1140 = vadd.f32 0.0, %v1139
    %1141 = vmatmul.bf16.gmra.mxu0 %v1065
    %v1142 = vpop.f32.mrf.mxu0
    %v1143 = vadd.f32 0.0, %v1142
    %v1144 = vpop.f32.mrf.mxu0
    %v1145 = vadd.f32 0.0, %v1144
    %1146 = vmatmul.bf16.gmra.mxu0 %v1068
    %v1147 = vpop.f32.mrf.mxu0
    %v1148 = vadd.f32 0.0, %v1147
    %v1149 = vpop.f32.mrf.mxu0
    %v1150 = vadd.f32 0.0, %v1149
    %1151 = vmatmul.bf16.gmra.mxu0 %v1071
    %v1152 = vpop.f32.mrf.mxu0
    %v1153 = vadd.f32 0.0, %v1152
    %v1154 = vpop.f32.mrf.mxu0
    %v1155 = vadd.f32 0.0, %v1154
    %1156 = vmatmul.bf16.gmra.mxu0 %v1074
    %v1157 = vpop.f32.mrf.mxu0
    %v1158 = vadd.f32 0.0, %v1157
    %v1159 = vpop.f32.mrf.mxu0
    %v1160 = vadd.f32 0.0, %v1159
    %1161 = vmatmul.bf16.gmra.mxu0 %v1077
    %v1162 = vpop.f32.mrf.mxu0
    %v1163 = vadd.f32 0.0, %v1162
    %v1164 = vpop.f32.mrf.mxu0
    %v1165 = vadd.f32 0.0, %v1164
    %1166 = vmatmul.bf16.gmra.mxu0 %v1080
    %v1167 = vpop.f32.mrf.mxu0
    %v1168 = vadd.f32 0.0, %v1167
    %v1169 = vpop.f32.mrf.mxu0
    %v1170 = vadd.f32 0.0, %v1169
    %1171 = vmatmul.bf16.gmra.mxu0 %v1083
    %v1172 = vpop.f32.mrf.mxu0
    %v1173 = vadd.f32 0.0, %v1172
    %v1174 = vpop.f32.mrf.mxu0
    %v1175 = vadd.f32 0.0, %v1174
    %1176 = vdwg.mxu0
    %v1177 = vadd.f32 %v929, %v1098
    %v1178 = vadd.f32 %v931, %v1100
    %v1179 = vadd.f32 %v934, %v1103
    %v1180 = vadd.f32 %v936, %v1105
    %v1181 = vadd.f32 %v939, %v1108
    %v1182 = vadd.f32 %v941, %v1110
    %v1183 = vadd.f32 %v944, %v1113
    %v1184 = vadd.f32 %v946, %v1115
    %v1185 = vadd.f32 %v949, %v1118
    %v1186 = vadd.f32 %v951, %v1120
    %v1187 = vadd.f32 %v954, %v1123
    %v1188 = vadd.f32 %v956, %v1125
    %v1189 = vadd.f32 %v959, %v1128
    %v1190 = vadd.f32 %v961, %v1130
    %v1191 = vadd.f32 %v964, %v1133
    %v1192 = vadd.f32 %v966, %v1135
    %v1193 = vadd.f32 %v969, %v1138
    %v1194 = vadd.f32 %v971, %v1140
    %v1195 = vadd.f32 %v974, %v1143
    %v1196 = vadd.f32 %v976, %v1145
    %v1197 = vadd.f32 %v979, %v1148
    %v1198 = vadd.f32 %v981, %v1150
    %v1199 = vadd.f32 %v984, %v1153
    %v1200 = vadd.f32 %v986, %v1155
    %v1201 = vadd.f32 %v989, %v1158
    %v1202 = vadd.f32 %v991, %v1160
    %v1203 = vadd.f32 %v994, %v1163
    %v1204 = vadd.f32 %v996, %v1165
    %v1205 = vadd.f32 %v999, %v1168
    %v1206 = vadd.f32 %v1001, %v1170
    %v1207 = vadd.f32 %v1004, %v1173
    %v1208 = vadd.f32 %v1006, %v1175
    %v1209 = vld [vmem:[%s2] sm:$0x1]
    %v1211 = vperm.slane %v1209, 0
    %v1213 = vadd.f32 %v1177, %v1211
    %v1214 = vadd.f32 %v1178, %v1211
    %v1215 = vadd.f32 %v1179, %v1211
    %v1216 = vadd.f32 %v1180, %v1211
    %v1217 = vadd.f32 %v1181, %v1211
    %v1218 = vadd.f32 %v1182, %v1211
    %v1219 = vadd.f32 %v1183, %v1211
    %v1220 = vadd.f32 %v1184, %v1211
    %v1221 = vadd.f32 %v1185, %v1211
    %v1222 = vadd.f32 %v1186, %v1211
    %v1223 = vadd.f32 %v1187, %v1211
    %v1224 = vadd.f32 %v1188, %v1211
    %v1225 = vadd.f32 %v1189, %v1211
    %v1226 = vadd.f32 %v1190, %v1211
    %v1227 = vadd.f32 %v1191, %v1211
    %v1228 = vadd.f32 %v1192, %v1211
    %v1229 = vadd.f32 %v1193, %v1211
    %v1230 = vadd.f32 %v1194, %v1211
    %v1231 = vadd.f32 %v1195, %v1211
    %v1232 = vadd.f32 %v1196, %v1211
    %v1233 = vadd.f32 %v1197, %v1211
    %v1234 = vadd.f32 %v1198, %v1211
    %v1235 = vadd.f32 %v1199, %v1211
    %v1236 = vadd.f32 %v1200, %v1211
    %v1237 = vadd.f32 %v1201, %v1211
    %v1238 = vadd.f32 %v1202, %v1211
    %v1239 = vadd.f32 %v1203, %v1211
    %v1240 = vadd.f32 %v1204, %v1211
    %v1241 = vadd.f32 %v1205, %v1211
    %v1242 = vadd.f32 %v1206, %v1211
    %v1243 = vadd.f32 %v1207, %v1211
    %v1244 = vadd.f32 %v1208, %v1211
    %1245 = vst [vmem:[#allocation2] sm:$0xff] %v1213
    %1246 = vst [vmem:[#allocation2 + $0x8] sm:$0xff] %v1214
    %1247 = vst [vmem:[#allocation2 + $0x10] sm:$0xff] %v1215
    %1248 = vst [vmem:[#allocation2 + $0x18] sm:$0xff] %v1216
    %1249 = vst [vmem:[#allocation2 + $0x20] sm:$0xff] %v1217
    %1250 = vst [vmem:[#allocation2 + $0x28] sm:$0xff] %v1218
    %1251 = vst [vmem:[#allocation2 + $0x30] sm:$0xff] %v1219
    %1252 = vst [vmem:[#allocation2 + $0x38] sm:$0xff] %v1220
    %1253 = vst [vmem:[#allocation2 + $0x40] sm:$0xff] %v1221
    %1254 = vst [vmem:[#allocation2 + $0x48] sm:$0xff] %v1222
    %1255 = vst [vmem:[#allocation2 + $0x50] sm:$0xff] %v1223
    %1256 = vst [vmem:[#allocation2 + $0x58] sm:$0xff] %v1224
    %1257 = vst [vmem:[#allocation2 + $0x60] sm:$0xff] %v1225
    %1258 = vst [vmem:[#allocation2 + $0x68] sm:$0xff] %v1226
    %1259 = vst [vmem:[#allocation2 + $0x70] sm:$0xff] %v1227
    %1260 = vst [vmem:[#allocation2 + $0x78] sm:$0xff] %v1228
    %1261 = vst [vmem:[#allocation2 + $0x80] sm:$0xff] %v1229
    %1262 = vst [vmem:[#allocation2 + $0x88] sm:$0xff] %v1230
    %1263 = vst [vmem:[#allocation2 + $0x90] sm:$0xff] %v1231
    %1264 = vst [vmem:[#allocation2 + $0x98] sm:$0xff] %v1232
    %1265 = vst [vmem:[#allocation2 + $0xa0] sm:$0xff] %v1233
    %1266 = vst [vmem:[#allocation2 + $0xa8] sm:$0xff] %v1234
    %1267 = vst [vmem:[#allocation2 + $0xb0] sm:$0xff] %v1235
    %1268 = vst [vmem:[#allocation2 + $0xb8] sm:$0xff] %v1236
    %1269 = vst [vmem:[#allocation2 + $0xc0] sm:$0xff] %v1237
    %1270 = vst [vmem:[#allocation2 + $0xc8] sm:$0xff] %v1238
    %1271 = vst [vmem:[#allocation2 + $0xd0] sm:$0xff] %v1239
    %1272 = vst [vmem:[#allocation2 + $0xd8] sm:$0xff] %v1240
    %1273 = vst [vmem:[#allocation2 + $0xe0] sm:$0xff] %v1241
    %1274 = vst [vmem:[#allocation2 + $0xe8] sm:$0xff] %v1242
    %1275 = vst [vmem:[#allocation2 + $0xf0] sm:$0xff] %v1243
    %1276 = vst [vmem:[#allocation2 + $0xf8] sm:$0xff] %v1244
    %v1277 = vld [vmem:[#allocation2] ss:$2 sm:$0xff]
    %s1278 = scalar_lea.vmem [#allocation2], 16
    %v1279 = vld [vmem:[%s1278] ss:$2 sm:$0xff]
    %s1280 = scalar_lea.vmem [#allocation2], 32
    %v1281 = vld [vmem:[%s1280] ss:$2 sm:$0xff]
    %s1282 = scalar_lea.vmem [#allocation2], 48
    %v1283 = vld [vmem:[%s1282] ss:$2 sm:$0xff]
    %s1284 = scalar_lea.vmem [#allocation2], 64
    %v1285 = vld [vmem:[%s1284] ss:$2 sm:$0xff]
    %s1286 = scalar_lea.vmem [#allocation2], 80
    %v1287 = vld [vmem:[%s1286] ss:$2 sm:$0xff]
    %s1288 = scalar_lea.vmem [#allocation2], 96
    %v1289 = vld [vmem:[%s1288] ss:$2 sm:$0xff]
    %s1290 = scalar_lea.vmem [#allocation2], 112
    %v1291 = vld [vmem:[%s1290] ss:$2 sm:$0xff]
    %s1292 = scalar_lea.vmem [#allocation2], 128
    %v1293 = vld [vmem:[%s1292] ss:$2 sm:$0xff]
    %s1294 = scalar_lea.vmem [#allocation2], 144
    %v1295 = vld [vmem:[%s1294] ss:$2 sm:$0xff]
    %s1296 = scalar_lea.vmem [#allocation2], 160
    %v1297 = vld [vmem:[%s1296] ss:$2 sm:$0xff]
    %s1298 = scalar_lea.vmem [#allocation2], 176
    %v1299 = vld [vmem:[%s1298] ss:$2 sm:$0xff]
    %s1300 = scalar_lea.vmem [#allocation2], 192
    %v1301 = vld [vmem:[%s1300] ss:$2 sm:$0xff]
    %s1302 = scalar_lea.vmem [#allocation2], 208
    %v1303 = vld [vmem:[%s1302] ss:$2 sm:$0xff]
    %s1304 = scalar_lea.vmem [#allocation2], 224
    %v1305 = vld [vmem:[%s1304] ss:$2 sm:$0xff]
    %s1306 = scalar_lea.vmem [#allocation2], 240
    %v1307 = vld [vmem:[%s1306] ss:$2 sm:$0xff]
    %s1308 = scalar_lea.vmem [#allocation2], 1
    %v1309 = vld [vmem:[%s1308] ss:$2 sm:$0xff]
    %s1310 = scalar_lea.vmem [#allocation2], 17
    %v1311 = vld [vmem:[%s1310] ss:$2 sm:$0xff]
    %s1312 = scalar_lea.vmem [#allocation2], 33
    %v1313 = vld [vmem:[%s1312] ss:$2 sm:$0xff]
    %s1314 = scalar_lea.vmem [#allocation2], 49
    %v1315 = vld [vmem:[%s1314] ss:$2 sm:$0xff]
    %s1316 = scalar_lea.vmem [#allocation2], 65
    %v1317 = vld [vmem:[%s1316] ss:$2 sm:$0xff]
    %s1318 = scalar_lea.vmem [#allocation2], 81
    %v1319 = vld [vmem:[%s1318] ss:$2 sm:$0xff]
    %s1320 = scalar_lea.vmem [#allocation2], 97
    %v1321 = vld [vmem:[%s1320] ss:$2 sm:$0xff]
    %s1322 = scalar_lea.vmem [#allocation2], 113
    %v1323 = vld [vmem:[%s1322] ss:$2 sm:$0xff]
    %s1324 = scalar_lea.vmem [#allocation2], 129
    %v1325 = vld [vmem:[%s1324] ss:$2 sm:$0xff]
    %s1326 = scalar_lea.vmem [#allocation2], 145
    %v1327 = vld [vmem:[%s1326] ss:$2 sm:$0xff]
    %s1328 = scalar_lea.vmem [#allocation2], 161
    %v1329 = vld [vmem:[%s1328] ss:$2 sm:$0xff]
    %s1330 = scalar_lea.vmem [#allocation2], 177
    %v1331 = vld [vmem:[%s1330] ss:$2 sm:$0xff]
    %s1332 = scalar_lea.vmem [#allocation2], 193
    %v1333 = vld [vmem:[%s1332] ss:$2 sm:$0xff]
    %s1334 = scalar_lea.vmem [#allocation2], 209
    %v1335 = vld [vmem:[%s1334] ss:$2 sm:$0xff]
    %s1336 = scalar_lea.vmem [#allocation2], 225
    %v1337 = vld [vmem:[%s1336] ss:$2 sm:$0xff]
    %s1338 = scalar_lea.vmem [#allocation2], 241
    %v1339 = vld [vmem:[%s1338] ss:$2 sm:$0xff]
    %v1340 = vmax.f32 %v1277, %v1309
    %v1341 = vmax.f32 %v1279, %v1311
    %v1342 = vmax.f32 %v1281, %v1313
    %v1343 = vmax.f32 %v1283, %v1315
    %v1344 = vmax.f32 %v1285, %v1317
    %v1345 = vmax.f32 %v1287, %v1319
    %v1346 = vmax.f32 %v1289, %v1321
    %v1347 = vmax.f32 %v1291, %v1323
    %v1348 = vmax.f32 %v1293, %v1325
    %v1349 = vmax.f32 %v1295, %v1327
    %v1350 = vmax.f32 %v1297, %v1329
    %v1351 = vmax.f32 %v1299, %v1331
    %v1352 = vmax.f32 %v1301, %v1333
    %v1353 = vmax.f32 %v1303, %v1335
    %v1354 = vmax.f32 %v1305, %v1337
    %v1355 = vmax.f32 %v1307, %v1339
    %v1356 = vmax.f32 %v1340, 0.0
    %v1357 = vmax.f32 %v1341, 0.0
    %v1358 = vmax.f32 %v1342, 0.0
    %v1359 = vmax.f32 %v1343, 0.0
    %v1360 = vmax.f32 %v1344, 0.0
    %v1361 = vmax.f32 %v1345, 0.0
    %v1362 = vmax.f32 %v1346, 0.0
    %v1363 = vmax.f32 %v1347, 0.0
    %v1364 = vmax.f32 %v1348, 0.0
    %v1365 = vmax.f32 %v1349, 0.0
    %v1366 = vmax.f32 %v1350, 0.0
    %v1367 = vmax.f32 %v1351, 0.0
    %v1368 = vmax.f32 %v1352, 0.0
    %v1369 = vmax.f32 %v1353, 0.0
    %v1370 = vmax.f32 %v1354, 0.0
    %v1371 = vmax.f32 %v1355, 0.0
    %v1372 = vand.u32 %v107, 31
    %v1373 = vand.u32 %v108, 31
    %v1374 = vand.u32 %v109, 31
    %v1375 = vand.u32 %v110, 31
    %v1376 = vand.u32 %v111, 31
    %v1377 = vand.u32 %v112, 31
    %v1378 = vand.u32 %v113, 31
    %v1379 = vand.u32 %v114, 31
    %v1380 = vand.u32 %v115, 31
    %v1381 = vand.u32 %v116, 31
    %v1382 = vand.u32 %v117, 31
    %v1383 = vand.u32 %v118, 31
    %v1384 = vand.u32 %v119, 31
    %v1385 = vand.u32 %v120, 31
    %v1386 = vand.u32 %v121, 31
    %v1387 = vand.u32 %v122, 31
    %vm1388 = vcmp.eq.s32.totalorder %v1372, 0
    %vm1389 = vcmp.eq.s32.totalorder %v1373, 0
    %vm1390 = vcmp.eq.s32.totalorder %v1374, 0
    %vm1391 = vcmp.eq.s32.totalorder %v1375, 0
    %vm1392 = vcmp.eq.s32.totalorder %v1376, 0
    %vm1393 = vcmp.eq.s32.totalorder %v1377, 0
    %vm1394 = vcmp.eq.s32.totalorder %v1378, 0
    %vm1395 = vcmp.eq.s32.totalorder %v1379, 0
    %vm1396 = vcmp.eq.s32.totalorder %v1380, 0
    %vm1397 = vcmp.eq.s32.totalorder %v1381, 0
    %vm1398 = vcmp.eq.s32.totalorder %v1382, 0
    %vm1399 = vcmp.eq.s32.totalorder %v1383, 0
    %vm1400 = vcmp.eq.s32.totalorder %v1384, 0
    %vm1401 = vcmp.eq.s32.totalorder %v1385, 0
    %vm1402 = vcmp.eq.s32.totalorder %v1386, 0
    %vm1403 = vcmp.eq.s32.totalorder %v1387, 0
    %v1404 = vrot.slane %v1356, 7
    %v1405 = vrot.slane %v1357, 7
    %v1406 = vrot.slane %v1358, 7
    %v1407 = vrot.slane %v1359, 7
    %v1408 = vrot.slane %v1360, 7
    %v1409 = vrot.slane %v1361, 7
    %v1410 = vrot.slane %v1362, 7
    %v1411 = vrot.slane %v1363, 7
    %v1412 = vrot.slane %v1364, 7
    %v1413 = vrot.slane %v1365, 7
    %v1414 = vrot.slane %v1366, 7
    %v1415 = vrot.slane %v1367, 7
    %v1416 = vrot.slane %v1368, 7
    %v1417 = vrot.slane %v1369, 7
    %v1418 = vrot.slane %v1370, 7
    %v1419 = vrot.slane %v1371, 7
    %v1420 = vsel %vm235, %v1418, %v1419
    %v1421 = vsel %vm235, %v1417, %v1418
    %v1422 = vsel %vm235, %v1416, %v1417
    %v1423 = vsel %vm235, %v1415, %v1416
    %v1424 = vsel %vm235, %v1414, %v1415
    %v1425 = vsel %vm235, %v1413, %v1414
    %v1426 = vsel %vm235, %v1412, %v1413
    %v1427 = vsel %vm235, %v1411, %v1412
    %v1428 = vsel %vm235, %v1410, %v1411
    %v1429 = vsel %vm235, %v1409, %v1410
    %v1430 = vsel %vm235, %v1408, %v1409
    %v1431 = vsel %vm235, %v1407, %v1408
    %v1432 = vsel %vm235, %v1406, %v1407
    %v1433 = vsel %vm235, %v1405, %v1406
    %v1434 = vsel %vm235, %v1404, %v1405
    %v1435 = vsel %vm235, %v1419, %v1404
    %v1436 = vsel %vm1388, 1, 0
    %v1437 = vsel %vm1389, 1, 0
    %v1438 = vsel %vm1390, 1, 0
    %v1439 = vsel %vm1391, 1, 0
    %v1440 = vsel %vm1392, 1, 0
    %v1441 = vsel %vm1393, 1, 0
    %v1442 = vsel %vm1394, 1, 0
    %v1443 = vsel %vm1395, 1, 0
    %v1444 = vsel %vm1396, 1, 0
    %v1445 = vsel %vm1397, 1, 0
    %v1446 = vsel %vm1398, 1, 0
    %v1447 = vsel %vm1399, 1, 0
    %v1448 = vsel %vm1400, 1, 0
    %v1449 = vsel %vm1401, 1, 0
    %v1450 = vsel %vm1402, 1, 0
    %v1451 = vsel %vm1403, 1, 0
    %vm1452 = vcmp.eq.s32.totalorder %v1436, 1
    %vm1453 = vcmp.eq.s32.totalorder %v1437, 1
    %vm1454 = vcmp.eq.s32.totalorder %v1438, 1
    %vm1455 = vcmp.eq.s32.totalorder %v1439, 1
    %vm1456 = vcmp.eq.s32.totalorder %v1440, 1
    %vm1457 = vcmp.eq.s32.totalorder %v1441, 1
    %vm1458 = vcmp.eq.s32.totalorder %v1442, 1
    %vm1459 = vcmp.eq.s32.totalorder %v1443, 1
    %vm1460 = vcmp.eq.s32.totalorder %v1444, 1
    %vm1461 = vcmp.eq.s32.totalorder %v1445, 1
    %vm1462 = vcmp.eq.s32.totalorder %v1446, 1
    %vm1463 = vcmp.eq.s32.totalorder %v1447, 1
    %vm1464 = vcmp.eq.s32.totalorder %v1448, 1
    %vm1465 = vcmp.eq.s32.totalorder %v1449, 1
    %vm1466 = vcmp.eq.s32.totalorder %v1450, 1
    %vm1467 = vcmp.eq.s32.totalorder %v1451, 1
    %v1468 = vsel %vm1452, 0.0, %v1435
    %v1469 = vsel %vm1453, 0.0, %v1434
    %v1470 = vsel %vm1454, 0.0, %v1433
    %v1471 = vsel %vm1455, 0.0, %v1432
    %v1472 = vsel %vm1456, 0.0, %v1431
    %v1473 = vsel %vm1457, 0.0, %v1430
    %v1474 = vsel %vm1458, 0.0, %v1429
    %v1475 = vsel %vm1459, 0.0, %v1428
    %v1476 = vsel %vm1460, 0.0, %v1427
    %v1477 = vsel %vm1461, 0.0, %v1426
    %v1478 = vsel %vm1462, 0.0, %v1425
    %v1479 = vsel %vm1463, 0.0, %v1424
    %v1480 = vsel %vm1464, 0.0, %v1423
    %v1481 = vsel %vm1465, 0.0, %v1422
    %v1482 = vsel %vm1466, 0.0, %v1421
    %v1483 = vsel %vm1467, 0.0, %v1420
    %v1484 = vpack.c.bf16 %v1469, %v1468
    %v1485 = vpack.c.bf16 %v1471, %v1470
    %v1486 = vpack.c.bf16 %v1473, %v1472
    %v1487 = vpack.c.bf16 %v1475, %v1474
    %v1488 = vpack.c.bf16 %v1477, %v1476
    %v1489 = vpack.c.bf16 %v1479, %v1478
    %v1490 = vpack.c.bf16 %v1481, %v1480
    %v1491 = vpack.c.bf16 %v1483, %v1482
    %vm1492 = vcmp.eq.s32.totalorder %v1372, 31
    %vm1493 = vcmp.eq.s32.totalorder %v1373, 31
    %vm1494 = vcmp.eq.s32.totalorder %v1374, 31
    %vm1495 = vcmp.eq.s32.totalorder %v1375, 31
    %vm1496 = vcmp.eq.s32.totalorder %v1376, 31
    %vm1497 = vcmp.eq.s32.totalorder %v1377, 31
    %vm1498 = vcmp.eq.s32.totalorder %v1378, 31
    %vm1499 = vcmp.eq.s32.totalorder %v1379, 31
    %vm1500 = vcmp.eq.s32.totalorder %v1380, 31
    %vm1501 = vcmp.eq.s32.totalorder %v1381, 31
    %vm1502 = vcmp.eq.s32.totalorder %v1382, 31
    %vm1503 = vcmp.eq.s32.totalorder %v1383, 31
    %vm1504 = vcmp.eq.s32.totalorder %v1384, 31
    %vm1505 = vcmp.eq.s32.totalorder %v1385, 31
    %vm1506 = vcmp.eq.s32.totalorder %v1386, 31
    %vm1507 = vcmp.eq.s32.totalorder %v1387, 31
    %v1508 = vrot.slane %v1356, 1
    %v1509 = vrot.slane %v1357, 1
    %v1510 = vrot.slane %v1358, 1
    %v1511 = vrot.slane %v1359, 1
    %v1512 = vrot.slane %v1360, 1
    %v1513 = vrot.slane %v1361, 1
    %v1514 = vrot.slane %v1362, 1
    %v1515 = vrot.slane %v1363, 1
    %v1516 = vrot.slane %v1364, 1
    %v1517 = vrot.slane %v1365, 1
    %v1518 = vrot.slane %v1366, 1
    %v1519 = vrot.slane %v1367, 1
    %v1520 = vrot.slane %v1368, 1
    %v1521 = vrot.slane %v1369, 1
    %v1522 = vrot.slane %v1370, 1
    %v1523 = vrot.slane %v1371, 1
    %v1524 = vsel %vm444, %v1522, %v1523
    %v1525 = vsel %vm444, %v1521, %v1522
    %v1526 = vsel %vm444, %v1520, %v1521
    %v1527 = vsel %vm444, %v1519, %v1520
    %v1528 = vsel %vm444, %v1518, %v1519
    %v1529 = vsel %vm444, %v1517, %v1518
    %v1530 = vsel %vm444, %v1516, %v1517
    %v1531 = vsel %vm444, %v1515, %v1516
    %v1532 = vsel %vm444, %v1514, %v1515
    %v1533 = vsel %vm444, %v1513, %v1514
    %v1534 = vsel %vm444, %v1512, %v1513
    %v1535 = vsel %vm444, %v1511, %v1512
    %v1536 = vsel %vm444, %v1510, %v1511
    %v1537 = vsel %vm444, %v1509, %v1510
    %v1538 = vsel %vm444, %v1508, %v1509
    %v1539 = vsel %vm444, %v1523, %v1508
    %v1540 = vsel %vm1492, 1, 0
    %v1541 = vsel %vm1493, 1, 0
    %v1542 = vsel %vm1494, 1, 0
    %v1543 = vsel %vm1495, 1, 0
    %v1544 = vsel %vm1496, 1, 0
    %v1545 = vsel %vm1497, 1, 0
    %v1546 = vsel %vm1498, 1, 0
    %v1547 = vsel %vm1499, 1, 0
    %v1548 = vsel %vm1500, 1, 0
    %v1549 = vsel %vm1501, 1, 0
    %v1550 = vsel %vm1502, 1, 0
    %v1551 = vsel %vm1503, 1, 0
    %v1552 = vsel %vm1504, 1, 0
    %v1553 = vsel %vm1505, 1, 0
    %v1554 = vsel %vm1506, 1, 0
    %v1555 = vsel %vm1507, 1, 0
    %vm1556 = vcmp.eq.s32.totalorder %v1540, 1
    %vm1557 = vcmp.eq.s32.totalorder %v1541, 1
    %vm1558 = vcmp.eq.s32.totalorder %v1542, 1
    %vm1559 = vcmp.eq.s32.totalorder %v1543, 1
    %vm1560 = vcmp.eq.s32.totalorder %v1544, 1
    %vm1561 = vcmp.eq.s32.totalorder %v1545, 1
    %vm1562 = vcmp.eq.s32.totalorder %v1546, 1
    %vm1563 = vcmp.eq.s32.totalorder %v1547, 1
    %vm1564 = vcmp.eq.s32.totalorder %v1548, 1
    %vm1565 = vcmp.eq.s32.totalorder %v1549, 1
    %vm1566 = vcmp.eq.s32.totalorder %v1550, 1
    %vm1567 = vcmp.eq.s32.totalorder %v1551, 1
    %vm1568 = vcmp.eq.s32.totalorder %v1552, 1
    %vm1569 = vcmp.eq.s32.totalorder %v1553, 1
    %vm1570 = vcmp.eq.s32.totalorder %v1554, 1
    %vm1571 = vcmp.eq.s32.totalorder %v1555, 1
    %v1572 = vsel %vm1556, 0.0, %v1538
    %v1573 = vsel %vm1557, 0.0, %v1537
    %v1574 = vsel %vm1558, 0.0, %v1536
    %v1575 = vsel %vm1559, 0.0, %v1535
    %v1576 = vsel %vm1560, 0.0, %v1534
    %v1577 = vsel %vm1561, 0.0, %v1533
    %v1578 = vsel %vm1562, 0.0, %v1532
    %v1579 = vsel %vm1563, 0.0, %v1531
    %v1580 = vsel %vm1564, 0.0, %v1530
    %v1581 = vsel %vm1565, 0.0, %v1529
    %v1582 = vsel %vm1566, 0.0, %v1528
    %v1583 = vsel %vm1567, 0.0, %v1527
    %v1584 = vsel %vm1568, 0.0, %v1526
    %v1585 = vsel %vm1569, 0.0, %v1525
    %v1586 = vsel %vm1570, 0.0, %v1524
    %v1587 = vsel %vm1571, 0.0, %v1539
    %v1588 = vpack.c.bf16 %v1573, %v1572
    %v1589 = vpack.c.bf16 %v1575, %v1574
    %v1590 = vpack.c.bf16 %v1577, %v1576
    %v1591 = vpack.c.bf16 %v1579, %v1578
    %v1592 = vpack.c.bf16 %v1581, %v1580
    %v1593 = vpack.c.bf16 %v1583, %v1582
    %v1594 = vpack.c.bf16 %v1585, %v1584
    %v1595 = vpack.c.bf16 %v1587, %v1586
    %v1596 = vpack.c.bf16 %v1357, %v1356
    %v1597 = vpack.c.bf16 %v1359, %v1358
    %v1598 = vpack.c.bf16 %v1361, %v1360
    %v1599 = vpack.c.bf16 %v1363, %v1362
    %v1600 = vpack.c.bf16 %v1365, %v1364
    %v1601 = vpack.c.bf16 %v1367, %v1366
    %v1602 = vpack.c.bf16 %v1369, %v1368
    %v1603 = vpack.c.bf16 %v1371, %v1370
    %v1604 = vld [vmem:[%s3] sm:$0xf]
    %v1605 = vld [vmem:[%s3 + $0x4] sm:$0xf]
    %v1606 = vld [vmem:[%s3 + $0x8] sm:$0xf]
    %v1607 = vld [vmem:[%s3 + $0xc] sm:$0xf]
    %v1608 = vld [vmem:[%s3 + $0x10] sm:$0xf]
    %v1609 = vld [vmem:[%s3 + $0x14] sm:$0xf]
    %v1610 = vld [vmem:[%s3 + $0x18] sm:$0xf]
    %v1611 = vld [vmem:[%s3 + $0x1c] sm:$0xf]
    %v1612 = vld [vmem:[%s3 + $0x20] sm:$0xf]
    %v1613 = vld [vmem:[%s3 + $0x24] sm:$0xf]
    %v1614 = vld [vmem:[%s3 + $0x28] sm:$0xf]
    %v1615 = vld [vmem:[%s3 + $0x2c] sm:$0xf]
    %v1616 = vld [vmem:[%s3 + $0x30] sm:$0xf]
    %v1617 = vld [vmem:[%s3 + $0x34] sm:$0xf]
    %v1618 = vld [vmem:[%s3 + $0x38] sm:$0xf]
    %v1619 = vld [vmem:[%s3 + $0x3c] sm:$0xf]
    %s1620 = scalar_lea.vmem %s3, 64
    %v1621 = vld [vmem:[%s1620] sm:$0xf]
    %v1622 = vld [vmem:[%s1620 + $0x4] sm:$0xf]
    %v1623 = vld [vmem:[%s1620 + $0x8] sm:$0xf]
    %v1624 = vld [vmem:[%s1620 + $0xc] sm:$0xf]
    %v1625 = vld [vmem:[%s1620 + $0x10] sm:$0xf]
    %v1626 = vld [vmem:[%s1620 + $0x14] sm:$0xf]
    %v1627 = vld [vmem:[%s1620 + $0x18] sm:$0xf]
    %v1628 = vld [vmem:[%s1620 + $0x1c] sm:$0xf]
    %v1629 = vld [vmem:[%s1620 + $0x20] sm:$0xf]
    %v1630 = vld [vmem:[%s1620 + $0x24] sm:$0xf]
    %v1631 = vld [vmem:[%s1620 + $0x28] sm:$0xf]
    %v1632 = vld [vmem:[%s1620 + $0x2c] sm:$0xf]
    %v1633 = vld [vmem:[%s1620 + $0x30] sm:$0xf]
    %v1634 = vld [vmem:[%s1620 + $0x34] sm:$0xf]
    %v1635 = vld [vmem:[%s1620 + $0x38] sm:$0xf]
    %v1636 = vld [vmem:[%s1620 + $0x3c] sm:$0xf]
    %v1653 = vunpack.c.l.b16 %v1621
    %v1654 = vunpack.c.l.b16 %v1622
    %v1655 = vunpack.c.l.b16 %v1623
    %v1656 = vunpack.c.l.b16 %v1624
    %v1657 = vunpack.c.l.b16 %v1625
    %v1658 = vunpack.c.l.b16 %v1626
    %v1659 = vunpack.c.l.b16 %v1627
    %v1660 = vunpack.c.l.b16 %v1628
    %v1661 = vunpack.c.l.b16 %v1629
    %v1662 = vunpack.c.l.b16 %v1630
    %v1663 = vunpack.c.l.b16 %v1631
    %v1664 = vunpack.c.l.b16 %v1632
    %v1665 = vunpack.c.l.b16 %v1633
    %v1666 = vunpack.c.l.b16 %v1634
    %v1667 = vunpack.c.l.b16 %v1635
    %v1668 = vunpack.c.l.b16 %v1636
    %v1669 = vpack.c.b16 %v1654, %v1653
    %v1670 = vpack.c.b16 %v1656, %v1655
    %v1671 = vpack.c.b16 %v1658, %v1657
    %v1672 = vpack.c.b16 %v1660, %v1659
    %v1673 = vpack.c.b16 %v1662, %v1661
    %v1674 = vpack.c.b16 %v1664, %v1663
    %v1675 = vpack.c.b16 %v1666, %v1665
    %v1676 = vpack.c.b16 %v1668, %v1667
    %1685 = vmatpush.bf16.msra.mxu0 %v1676
    %1686 = vmatpush.bf16.msra.mxu0 %v1675
    %1687 = vmatpush.bf16.msra.mxu0 %v1674
    %1688 = vmatpush.bf16.msra.mxu0 %v1673
    %1689 = vmatpush.bf16.msra.mxu0 %v1672
    %1690 = vmatpush.bf16.msra.mxu0 %v1671
    %1691 = vmatpush.bf16.msra.mxu0 %v1670
    %1692 = vmatpush.bf16.msra.mxu0 %v1669
    %1693 = vmatmul.bf16.gmra.mxu0 %v1596
    %v1694 = vpop.f32.mrf.mxu0
    %v1695 = vadd.f32 0.0, %v1694
    %v1696 = vpop.f32.mrf.mxu0
    %v1697 = vadd.f32 0.0, %v1696
    %1698 = vmatmul.bf16.gmra.mxu0 %v1597
    %v1699 = vpop.f32.mrf.mxu0
    %v1700 = vadd.f32 0.0, %v1699
    %v1701 = vpop.f32.mrf.mxu0
    %v1702 = vadd.f32 0.0, %v1701
    %1703 = vmatmul.bf16.gmra.mxu0 %v1598
    %v1704 = vpop.f32.mrf.mxu0
    %v1705 = vadd.f32 0.0, %v1704
    %v1706 = vpop.f32.mrf.mxu0
    %v1707 = vadd.f32 0.0, %v1706
    %1708 = vmatmul.bf16.gmra.mxu0 %v1599
    %v1709 = vpop.f32.mrf.mxu0
    %v1710 = vadd.f32 0.0, %v1709
    %v1711 = vpop.f32.mrf.mxu0
    %v1712 = vadd.f32 0.0, %v1711
    %1713 = vmatmul.bf16.gmra.mxu0 %v1600
    %v1714 = vpop.f32.mrf.mxu0
    %v1715 = vadd.f32 0.0, %v1714
    %v1716 = vpop.f32.mrf.mxu0
    %v1717 = vadd.f32 0.0, %v1716
    %1718 = vmatmul.bf16.gmra.mxu0 %v1601
    %v1719 = vpop.f32.mrf.mxu0
    %v1720 = vadd.f32 0.0, %v1719
    %v1721 = vpop.f32.mrf.mxu0
    %v1722 = vadd.f32 0.0, %v1721
    %1723 = vmatmul.bf16.gmra.mxu0 %v1602
    %v1724 = vpop.f32.mrf.mxu0
    %v1725 = vadd.f32 0.0, %v1724
    %v1726 = vpop.f32.mrf.mxu0
    %v1727 = vadd.f32 0.0, %v1726
    %1728 = vmatmul.bf16.gmra.mxu0 %v1603
    %v1729 = vpop.f32.mrf.mxu0
    %v1730 = vadd.f32 0.0, %v1729
    %v1731 = vpop.f32.mrf.mxu0
    %v1732 = vadd.f32 0.0, %v1731
    %1733 = vdwg.mxu0
    %v1750 = vunpack.c.l.b16 %v1604
    %v1751 = vunpack.c.l.b16 %v1605
    %v1752 = vunpack.c.l.b16 %v1606
    %v1753 = vunpack.c.l.b16 %v1607
    %v1754 = vunpack.c.l.b16 %v1608
    %v1755 = vunpack.c.l.b16 %v1609
    %v1756 = vunpack.c.l.b16 %v1610
    %v1757 = vunpack.c.l.b16 %v1611
    %v1758 = vunpack.c.l.b16 %v1612
    %v1759 = vunpack.c.l.b16 %v1613
    %v1760 = vunpack.c.l.b16 %v1614
    %v1761 = vunpack.c.l.b16 %v1615
    %v1762 = vunpack.c.l.b16 %v1616
    %v1763 = vunpack.c.l.b16 %v1617
    %v1764 = vunpack.c.l.b16 %v1618
    %v1765 = vunpack.c.l.b16 %v1619
    %v1766 = vpack.c.b16 %v1751, %v1750
    %v1767 = vpack.c.b16 %v1753, %v1752
    %v1768 = vpack.c.b16 %v1755, %v1754
    %v1769 = vpack.c.b16 %v1757, %v1756
    %v1770 = vpack.c.b16 %v1759, %v1758
    %v1771 = vpack.c.b16 %v1761, %v1760
    %v1772 = vpack.c.b16 %v1763, %v1762
    %v1773 = vpack.c.b16 %v1765, %v1764
    %1782 = vmatpush.bf16.msra.mxu0 %v1773
    %1783 = vmatpush.bf16.msra.mxu0 %v1772
    %1784 = vmatpush.bf16.msra.mxu0 %v1771
    %1785 = vmatpush.bf16.msra.mxu0 %v1770
    %1786 = vmatpush.bf16.msra.mxu0 %v1769
    %1787 = vmatpush.bf16.msra.mxu0 %v1768
    %1788 = vmatpush.bf16.msra.mxu0 %v1767
    %1789 = vmatpush.bf16.msra.mxu0 %v1766
    %1790 = vmatmul.bf16.gmra.mxu0 %v1484
    %v1791 = vpop.f32.mrf.mxu0
    %v1792 = vadd.f32 %v1695, %v1791
    %v1793 = vpop.f32.mrf.mxu0
    %v1794 = vadd.f32 %v1697, %v1793
    %1795 = vmatmul.bf16.gmra.mxu0 %v1485
    %v1796 = vpop.f32.mrf.mxu0
    %v1797 = vadd.f32 %v1700, %v1796
    %v1798 = vpop.f32.mrf.mxu0
    %v1799 = vadd.f32 %v1702, %v1798
    %1800 = vmatmul.bf16.gmra.mxu0 %v1486
    %v1801 = vpop.f32.mrf.mxu0
    %v1802 = vadd.f32 %v1705, %v1801
    %v1803 = vpop.f32.mrf.mxu0
    %v1804 = vadd.f32 %v1707, %v1803
    %1805 = vmatmul.bf16.gmra.mxu0 %v1487
    %v1806 = vpop.f32.mrf.mxu0
    %v1807 = vadd.f32 %v1710, %v1806
    %v1808 = vpop.f32.mrf.mxu0
    %v1809 = vadd.f32 %v1712, %v1808
    %1810 = vmatmul.bf16.gmra.mxu0 %v1488
    %v1811 = vpop.f32.mrf.mxu0
    %v1812 = vadd.f32 %v1715, %v1811
    %v1813 = vpop.f32.mrf.mxu0
    %v1814 = vadd.f32 %v1717, %v1813
    %1815 = vmatmul.bf16.gmra.mxu0 %v1489
    %v1816 = vpop.f32.mrf.mxu0
    %v1817 = vadd.f32 %v1720, %v1816
    %v1818 = vpop.f32.mrf.mxu0
    %v1819 = vadd.f32 %v1722, %v1818
    %1820 = vmatmul.bf16.gmra.mxu0 %v1490
    %v1821 = vpop.f32.mrf.mxu0
    %v1822 = vadd.f32 %v1725, %v1821
    %v1823 = vpop.f32.mrf.mxu0
    %v1824 = vadd.f32 %v1727, %v1823
    %1825 = vmatmul.bf16.gmra.mxu0 %v1491
    %v1826 = vpop.f32.mrf.mxu0
    %v1827 = vadd.f32 %v1730, %v1826
    %v1828 = vpop.f32.mrf.mxu0
    %v1829 = vadd.f32 %v1732, %v1828
    %1830 = vdwg.mxu0
    %s1831 = scalar_lea.vmem %s3, 128
    %v1832 = vld [vmem:[%s1831] sm:$0xf]
    %v1833 = vld [vmem:[%s1831 + $0x4] sm:$0xf]
    %v1834 = vld [vmem:[%s1831 + $0x8] sm:$0xf]
    %v1835 = vld [vmem:[%s1831 + $0xc] sm:$0xf]
    %v1836 = vld [vmem:[%s1831 + $0x10] sm:$0xf]
    %v1837 = vld [vmem:[%s1831 + $0x14] sm:$0xf]
    %v1838 = vld [vmem:[%s1831 + $0x18] sm:$0xf]
    %v1839 = vld [vmem:[%s1831 + $0x1c] sm:$0xf]
    %v1840 = vld [vmem:[%s1831 + $0x20] sm:$0xf]
    %v1841 = vld [vmem:[%s1831 + $0x24] sm:$0xf]
    %v1842 = vld [vmem:[%s1831 + $0x28] sm:$0xf]
    %v1843 = vld [vmem:[%s1831 + $0x2c] sm:$0xf]
    %v1844 = vld [vmem:[%s1831 + $0x30] sm:$0xf]
    %v1845 = vld [vmem:[%s1831 + $0x34] sm:$0xf]
    %v1846 = vld [vmem:[%s1831 + $0x38] sm:$0xf]
    %v1847 = vld [vmem:[%s1831 + $0x3c] sm:$0xf]
    %v1864 = vunpack.c.l.b16 %v1832
    %v1865 = vunpack.c.l.b16 %v1833
    %v1866 = vunpack.c.l.b16 %v1834
    %v1867 = vunpack.c.l.b16 %v1835
    %v1868 = vunpack.c.l.b16 %v1836
    %v1869 = vunpack.c.l.b16 %v1837
    %v1870 = vunpack.c.l.b16 %v1838
    %v1871 = vunpack.c.l.b16 %v1839
    %v1872 = vunpack.c.l.b16 %v1840
    %v1873 = vunpack.c.l.b16 %v1841
    %v1874 = vunpack.c.l.b16 %v1842
    %v1875 = vunpack.c.l.b16 %v1843
    %v1876 = vunpack.c.l.b16 %v1844
    %v1877 = vunpack.c.l.b16 %v1845
    %v1878 = vunpack.c.l.b16 %v1846
    %v1879 = vunpack.c.l.b16 %v1847
    %v1880 = vpack.c.b16 %v1865, %v1864
    %v1881 = vpack.c.b16 %v1867, %v1866
    %v1882 = vpack.c.b16 %v1869, %v1868
    %v1883 = vpack.c.b16 %v1871, %v1870
    %v1884 = vpack.c.b16 %v1873, %v1872
    %v1885 = vpack.c.b16 %v1875, %v1874
    %v1886 = vpack.c.b16 %v1877, %v1876
    %v1887 = vpack.c.b16 %v1879, %v1878
    %1896 = vmatpush.bf16.msra.mxu0 %v1887
    %1897 = vmatpush.bf16.msra.mxu0 %v1886
    %1898 = vmatpush.bf16.msra.mxu0 %v1885
    %1899 = vmatpush.bf16.msra.mxu0 %v1884
    %1900 = vmatpush.bf16.msra.mxu0 %v1883
    %1901 = vmatpush.bf16.msra.mxu0 %v1882
    %1902 = vmatpush.bf16.msra.mxu0 %v1881
    %1903 = vmatpush.bf16.msra.mxu0 %v1880
    %1904 = vmatmul.bf16.gmra.mxu0 %v1588
    %v1905 = vpop.f32.mrf.mxu0
    %v1906 = vadd.f32 0.0, %v1905
    %v1907 = vpop.f32.mrf.mxu0
    %v1908 = vadd.f32 0.0, %v1907
    %1909 = vmatmul.bf16.gmra.mxu0 %v1589
    %v1910 = vpop.f32.mrf.mxu0
    %v1911 = vadd.f32 0.0, %v1910
    %v1912 = vpop.f32.mrf.mxu0
    %v1913 = vadd.f32 0.0, %v1912
    %1914 = vmatmul.bf16.gmra.mxu0 %v1590
    %v1915 = vpop.f32.mrf.mxu0
    %v1916 = vadd.f32 0.0, %v1915
    %v1917 = vpop.f32.mrf.mxu0
    %v1918 = vadd.f32 0.0, %v1917
    %1919 = vmatmul.bf16.gmra.mxu0 %v1591
    %v1920 = vpop.f32.mrf.mxu0
    %v1921 = vadd.f32 0.0, %v1920
    %v1922 = vpop.f32.mrf.mxu0
    %v1923 = vadd.f32 0.0, %v1922
    %1924 = vmatmul.bf16.gmra.mxu0 %v1592
    %v1925 = vpop.f32.mrf.mxu0
    %v1926 = vadd.f32 0.0, %v1925
    %v1927 = vpop.f32.mrf.mxu0
    %v1928 = vadd.f32 0.0, %v1927
    %1929 = vmatmul.bf16.gmra.mxu0 %v1593
    %v1930 = vpop.f32.mrf.mxu0
    %v1931 = vadd.f32 0.0, %v1930
    %v1932 = vpop.f32.mrf.mxu0
    %v1933 = vadd.f32 0.0, %v1932
    %1934 = vmatmul.bf16.gmra.mxu0 %v1594
    %v1935 = vpop.f32.mrf.mxu0
    %v1936 = vadd.f32 0.0, %v1935
    %v1937 = vpop.f32.mrf.mxu0
    %v1938 = vadd.f32 0.0, %v1937
    %1939 = vmatmul.bf16.gmra.mxu0 %v1595
    %v1940 = vpop.f32.mrf.mxu0
    %v1941 = vadd.f32 0.0, %v1940
    %v1942 = vpop.f32.mrf.mxu0
    %v1943 = vadd.f32 0.0, %v1942
    %1944 = vdwg.mxu0
    %v1945 = vadd.f32 %v1792, %v1906
    %v1946 = vadd.f32 %v1794, %v1908
    %v1947 = vadd.f32 %v1797, %v1911
    %v1948 = vadd.f32 %v1799, %v1913
    %v1949 = vadd.f32 %v1802, %v1916
    %v1950 = vadd.f32 %v1804, %v1918
    %v1951 = vadd.f32 %v1807, %v1921
    %v1952 = vadd.f32 %v1809, %v1923
    %v1953 = vadd.f32 %v1812, %v1926
    %v1954 = vadd.f32 %v1814, %v1928
    %v1955 = vadd.f32 %v1817, %v1931
    %v1956 = vadd.f32 %v1819, %v1933
    %v1957 = vadd.f32 %v1822, %v1936
    %v1958 = vadd.f32 %v1824, %v1938
    %v1959 = vadd.f32 %v1827, %v1941
    %v1960 = vadd.f32 %v1829, %v1943
    %v1961 = vld [vmem:[%s4] sm:$0x1]
    %v1963 = vperm.slane %v1961, 0
    %v1965 = vadd.f32 %v1945, %v1963
    %v1966 = vadd.f32 %v1946, %v1963
    %v1967 = vadd.f32 %v1947, %v1963
    %v1968 = vadd.f32 %v1948, %v1963
    %v1969 = vadd.f32 %v1949, %v1963
    %v1970 = vadd.f32 %v1950, %v1963
    %v1971 = vadd.f32 %v1951, %v1963
    %v1972 = vadd.f32 %v1952, %v1963
    %v1973 = vadd.f32 %v1953, %v1963
    %v1974 = vadd.f32 %v1954, %v1963
    %v1975 = vadd.f32 %v1955, %v1963
    %v1976 = vadd.f32 %v1956, %v1963
    %v1977 = vadd.f32 %v1957, %v1963
    %v1978 = vadd.f32 %v1958, %v1963
    %v1979 = vadd.f32 %v1959, %v1963
    %v1980 = vadd.f32 %v1960, %v1963
    %1981 = vst [vmem:[#allocation2] sm:$0xff] %v1965
    %1982 = vst [vmem:[#allocation2 + $0x8] sm:$0xff] %v1966
    %1983 = vst [vmem:[#allocation2 + $0x10] sm:$0xff] %v1967
    %1984 = vst [vmem:[#allocation2 + $0x18] sm:$0xff] %v1968
    %1985 = vst [vmem:[#allocation2 + $0x20] sm:$0xff] %v1969
    %1986 = vst [vmem:[#allocation2 + $0x28] sm:$0xff] %v1970
    %1987 = vst [vmem:[#allocation2 + $0x30] sm:$0xff] %v1971
    %1988 = vst [vmem:[#allocation2 + $0x38] sm:$0xff] %v1972
    %1989 = vst [vmem:[#allocation2 + $0x40] sm:$0xff] %v1973
    %1990 = vst [vmem:[#allocation2 + $0x48] sm:$0xff] %v1974
    %1991 = vst [vmem:[#allocation2 + $0x50] sm:$0xff] %v1975
    %1992 = vst [vmem:[#allocation2 + $0x58] sm:$0xff] %v1976
    %1993 = vst [vmem:[#allocation2 + $0x60] sm:$0xff] %v1977
    %1994 = vst [vmem:[#allocation2 + $0x68] sm:$0xff] %v1978
    %1995 = vst [vmem:[#allocation2 + $0x70] sm:$0xff] %v1979
    %1996 = vst [vmem:[#allocation2 + $0x78] sm:$0xff] %v1980
    %v1997 = vld [vmem:[#allocation2] ss:$2 sm:$0xff]
    %s1998 = scalar_lea.vmem [#allocation2], 16
    %v1999 = vld [vmem:[%s1998] ss:$2 sm:$0xff]
    %s2000 = scalar_lea.vmem [#allocation2], 32
    %v2001 = vld [vmem:[%s2000] ss:$2 sm:$0xff]
    %s2002 = scalar_lea.vmem [#allocation2], 48
    %v2003 = vld [vmem:[%s2002] ss:$2 sm:$0xff]
    %s2004 = scalar_lea.vmem [#allocation2], 64
    %v2005 = vld [vmem:[%s2004] ss:$2 sm:$0xff]
    %s2006 = scalar_lea.vmem [#allocation2], 80
    %v2007 = vld [vmem:[%s2006] ss:$2 sm:$0xff]
    %s2008 = scalar_lea.vmem [#allocation2], 96
    %v2009 = vld [vmem:[%s2008] ss:$2 sm:$0xff]
    %s2010 = scalar_lea.vmem [#allocation2], 112
    %v2011 = vld [vmem:[%s2010] ss:$2 sm:$0xff]
    %v2012 = vld [vmem:[%s1308] ss:$2 sm:$0xff]
    %v2013 = vld [vmem:[%s1310] ss:$2 sm:$0xff]
    %v2014 = vld [vmem:[%s1312] ss:$2 sm:$0xff]
    %v2015 = vld [vmem:[%s1314] ss:$2 sm:$0xff]
    %v2016 = vld [vmem:[%s1316] ss:$2 sm:$0xff]
    %v2017 = vld [vmem:[%s1318] ss:$2 sm:$0xff]
    %v2018 = vld [vmem:[%s1320] ss:$2 sm:$0xff]
    %v2019 = vld [vmem:[%s1322] ss:$2 sm:$0xff]
    %v2020 = vmax.f32 %v1997, %v2012
    %v2021 = vmax.f32 %v1999, %v2013
    %v2022 = vmax.f32 %v2001, %v2014
    %v2023 = vmax.f32 %v2003, %v2015
    %v2024 = vmax.f32 %v2005, %v2016
    %v2025 = vmax.f32 %v2007, %v2017
    %v2026 = vmax.f32 %v2009, %v2018
    %v2027 = vmax.f32 %v2011, %v2019
    %v2028 = vmax.f32 %v2020, 0.0
    %v2029 = vmax.f32 %v2021, 0.0
    %v2030 = vmax.f32 %v2022, 0.0
    %v2031 = vmax.f32 %v2023, 0.0
    %v2032 = vmax.f32 %v2024, 0.0
    %v2033 = vmax.f32 %v2025, 0.0
    %v2034 = vmax.f32 %v2026, 0.0
    %v2035 = vmax.f32 %v2027, 0.0
    %v2036 = vand.u32 %v107, 15
    %v2037 = vand.u32 %v108, 15
    %v2038 = vand.u32 %v109, 15
    %v2039 = vand.u32 %v110, 15
    %v2040 = vand.u32 %v111, 15
    %v2041 = vand.u32 %v112, 15
    %v2042 = vand.u32 %v113, 15
    %v2043 = vand.u32 %v114, 15
    %vm2044 = vcmp.eq.s32.totalorder %v2036, 0
    %vm2045 = vcmp.eq.s32.totalorder %v2037, 0
    %vm2046 = vcmp.eq.s32.totalorder %v2038, 0
    %vm2047 = vcmp.eq.s32.totalorder %v2039, 0
    %vm2048 = vcmp.eq.s32.totalorder %v2040, 0
    %vm2049 = vcmp.eq.s32.totalorder %v2041, 0
    %vm2050 = vcmp.eq.s32.totalorder %v2042, 0
    %vm2051 = vcmp.eq.s32.totalorder %v2043, 0
    %v2052 = vrot.slane %v2028, 7
    %v2053 = vrot.slane %v2029, 7
    %v2054 = vrot.slane %v2030, 7
    %v2055 = vrot.slane %v2031, 7
    %v2056 = vrot.slane %v2032, 7
    %v2057 = vrot.slane %v2033, 7
    %v2058 = vrot.slane %v2034, 7
    %v2059 = vrot.slane %v2035, 7
    %v2060 = vsel %vm235, %v2058, %v2059
    %v2061 = vsel %vm235, %v2057, %v2058
    %v2062 = vsel %vm235, %v2056, %v2057
    %v2063 = vsel %vm235, %v2055, %v2056
    %v2064 = vsel %vm235, %v2054, %v2055
    %v2065 = vsel %vm235, %v2053, %v2054
    %v2066 = vsel %vm235, %v2052, %v2053
    %v2067 = vsel %vm235, %v2059, %v2052
    %v2068 = vsel %vm2044, 1, 0
    %v2069 = vsel %vm2045, 1, 0
    %v2070 = vsel %vm2046, 1, 0
    %v2071 = vsel %vm2047, 1, 0
    %v2072 = vsel %vm2048, 1, 0
    %v2073 = vsel %vm2049, 1, 0
    %v2074 = vsel %vm2050, 1, 0
    %v2075 = vsel %vm2051, 1, 0
    %vm2076 = vcmp.eq.s32.totalorder %v2068, 1
    %vm2077 = vcmp.eq.s32.totalorder %v2069, 1
    %vm2078 = vcmp.eq.s32.totalorder %v2070, 1
    %vm2079 = vcmp.eq.s32.totalorder %v2071, 1
    %vm2080 = vcmp.eq.s32.totalorder %v2072, 1
    %vm2081 = vcmp.eq.s32.totalorder %v2073, 1
    %vm2082 = vcmp.eq.s32.totalorder %v2074, 1
    %vm2083 = vcmp.eq.s32.totalorder %v2075, 1
    %v2084 = vsel %vm2076, 0.0, %v2067
    %v2085 = vsel %vm2077, 0.0, %v2066
    %v2086 = vsel %vm2078, 0.0, %v2065
    %v2087 = vsel %vm2079, 0.0, %v2064
    %v2088 = vsel %vm2080, 0.0, %v2063
    %v2089 = vsel %vm2081, 0.0, %v2062
    %v2090 = vsel %vm2082, 0.0, %v2061
    %v2091 = vsel %vm2083, 0.0, %v2060
    %v2092 = vpack.c.bf16 %v2085, %v2084
    %v2093 = vpack.c.bf16 %v2087, %v2086
    %v2094 = vpack.c.bf16 %v2089, %v2088
    %v2095 = vpack.c.bf16 %v2091, %v2090
    %vm2096 = vcmp.eq.s32.totalorder %v2036, 15
    %vm2097 = vcmp.eq.s32.totalorder %v2037, 15
    %vm2098 = vcmp.eq.s32.totalorder %v2038, 15
    %vm2099 = vcmp.eq.s32.totalorder %v2039, 15
    %vm2100 = vcmp.eq.s32.totalorder %v2040, 15
    %vm2101 = vcmp.eq.s32.totalorder %v2041, 15
    %vm2102 = vcmp.eq.s32.totalorder %v2042, 15
    %vm2103 = vcmp.eq.s32.totalorder %v2043, 15
    %v2104 = vrot.slane %v2028, 1
    %v2105 = vrot.slane %v2029, 1
    %v2106 = vrot.slane %v2030, 1
    %v2107 = vrot.slane %v2031, 1
    %v2108 = vrot.slane %v2032, 1
    %v2109 = vrot.slane %v2033, 1
    %v2110 = vrot.slane %v2034, 1
    %v2111 = vrot.slane %v2035, 1
    %v2112 = vsel %vm444, %v2110, %v2111
    %v2113 = vsel %vm444, %v2109, %v2110
    %v2114 = vsel %vm444, %v2108, %v2109
    %v2115 = vsel %vm444, %v2107, %v2108
    %v2116 = vsel %vm444, %v2106, %v2107
    %v2117 = vsel %vm444, %v2105, %v2106
    %v2118 = vsel %vm444, %v2104, %v2105
    %v2119 = vsel %vm444, %v2111, %v2104
    %v2120 = vsel %vm2096, 1, 0
    %v2121 = vsel %vm2097, 1, 0
    %v2122 = vsel %vm2098, 1, 0
    %v2123 = vsel %vm2099, 1, 0
    %v2124 = vsel %vm2100, 1, 0
    %v2125 = vsel %vm2101, 1, 0
    %v2126 = vsel %vm2102, 1, 0
    %v2127 = vsel %vm2103, 1, 0
    %vm2128 = vcmp.eq.s32.totalorder %v2120, 1
    %vm2129 = vcmp.eq.s32.totalorder %v2121, 1
    %vm2130 = vcmp.eq.s32.totalorder %v2122, 1
    %vm2131 = vcmp.eq.s32.totalorder %v2123, 1
    %vm2132 = vcmp.eq.s32.totalorder %v2124, 1
    %vm2133 = vcmp.eq.s32.totalorder %v2125, 1
    %vm2134 = vcmp.eq.s32.totalorder %v2126, 1
    %vm2135 = vcmp.eq.s32.totalorder %v2127, 1
    %v2136 = vsel %vm2128, 0.0, %v2118
    %v2137 = vsel %vm2129, 0.0, %v2117
    %v2138 = vsel %vm2130, 0.0, %v2116
    %v2139 = vsel %vm2131, 0.0, %v2115
    %v2140 = vsel %vm2132, 0.0, %v2114
    %v2141 = vsel %vm2133, 0.0, %v2113
    %v2142 = vsel %vm2134, 0.0, %v2112
    %v2143 = vsel %vm2135, 0.0, %v2119
    %v2144 = vpack.c.bf16 %v2137, %v2136
    %v2145 = vpack.c.bf16 %v2139, %v2138
    %v2146 = vpack.c.bf16 %v2141, %v2140
    %v2147 = vpack.c.bf16 %v2143, %v2142
    %v2148 = vpack.c.bf16 %v2029, %v2028
    %v2149 = vpack.c.bf16 %v2031, %v2030
    %v2150 = vpack.c.bf16 %v2033, %v2032
    %v2151 = vpack.c.bf16 %v2035, %v2034
    %v2152 = vld [vmem:[%s5] sm:$0xf]
    %v2153 = vld [vmem:[%s5 + $0x4] sm:$0xf]
    %v2154 = vld [vmem:[%s5 + $0x8] sm:$0xf]
    %v2155 = vld [vmem:[%s5 + $0xc] sm:$0xf]
    %v2156 = vld [vmem:[%s5 + $0x10] sm:$0xf]
    %v2157 = vld [vmem:[%s5 + $0x14] sm:$0xf]
    %v2158 = vld [vmem:[%s5 + $0x18] sm:$0xf]
    %v2159 = vld [vmem:[%s5 + $0x1c] sm:$0xf]
    %v2160 = vld [vmem:[%s5 + $0x20] sm:$0xf]
    %v2161 = vld [vmem:[%s5 + $0x24] sm:$0xf]
    %v2162 = vld [vmem:[%s5 + $0x28] sm:$0xf]
    %v2163 = vld [vmem:[%s5 + $0x2c] sm:$0xf]
    %v2164 = vld [vmem:[%s5 + $0x30] sm:$0xf]
    %v2165 = vld [vmem:[%s5 + $0x34] sm:$0xf]
    %v2166 = vld [vmem:[%s5 + $0x38] sm:$0xf]
    %v2167 = vld [vmem:[%s5 + $0x3c] sm:$0xf]
    %s2168 = scalar_lea.vmem %s5, 64
    %v2169 = vld [vmem:[%s2168] sm:$0xf]
    %v2170 = vld [vmem:[%s2168 + $0x4] sm:$0xf]
    %v2171 = vld [vmem:[%s2168 + $0x8] sm:$0xf]
    %v2172 = vld [vmem:[%s2168 + $0xc] sm:$0xf]
    %v2173 = vld [vmem:[%s2168 + $0x10] sm:$0xf]
    %v2174 = vld [vmem:[%s2168 + $0x14] sm:$0xf]
    %v2175 = vld [vmem:[%s2168 + $0x18] sm:$0xf]
    %v2176 = vld [vmem:[%s2168 + $0x1c] sm:$0xf]
    %v2177 = vld [vmem:[%s2168 + $0x20] sm:$0xf]
    %v2178 = vld [vmem:[%s2168 + $0x24] sm:$0xf]
    %v2179 = vld [vmem:[%s2168 + $0x28] sm:$0xf]
    %v2180 = vld [vmem:[%s2168 + $0x2c] sm:$0xf]
    %v2181 = vld [vmem:[%s2168 + $0x30] sm:$0xf]
    %v2182 = vld [vmem:[%s2168 + $0x34] sm:$0xf]
    %v2183 = vld [vmem:[%s2168 + $0x38] sm:$0xf]
    %v2184 = vld [vmem:[%s2168 + $0x3c] sm:$0xf]
    %v2201 = vunpack.c.l.b16 %v2169
    %v2202 = vunpack.c.l.b16 %v2170
    %v2203 = vunpack.c.l.b16 %v2171
    %v2204 = vunpack.c.l.b16 %v2172
    %v2205 = vunpack.c.l.b16 %v2173
    %v2206 = vunpack.c.l.b16 %v2174
    %v2207 = vunpack.c.l.b16 %v2175
    %v2208 = vunpack.c.l.b16 %v2176
    %v2209 = vunpack.c.l.b16 %v2177
    %v2210 = vunpack.c.l.b16 %v2178
    %v2211 = vunpack.c.l.b16 %v2179
    %v2212 = vunpack.c.l.b16 %v2180
    %v2213 = vunpack.c.l.b16 %v2181
    %v2214 = vunpack.c.l.b16 %v2182
    %v2215 = vunpack.c.l.b16 %v2183
    %v2216 = vunpack.c.l.b16 %v2184
    %v2217 = vpack.c.b16 %v2202, %v2201
    %v2218 = vpack.c.b16 %v2204, %v2203
    %v2219 = vpack.c.b16 %v2206, %v2205
    %v2220 = vpack.c.b16 %v2208, %v2207
    %v2221 = vpack.c.b16 %v2210, %v2209
    %v2222 = vpack.c.b16 %v2212, %v2211
    %v2223 = vpack.c.b16 %v2214, %v2213
    %v2224 = vpack.c.b16 %v2216, %v2215
    %2233 = vmatpush.bf16.msra.mxu0 %v2224
    %2234 = vmatpush.bf16.msra.mxu0 %v2223
    %2235 = vmatpush.bf16.msra.mxu0 %v2222
    %2236 = vmatpush.bf16.msra.mxu0 %v2221
    %2237 = vmatpush.bf16.msra.mxu0 %v2220
    %2238 = vmatpush.bf16.msra.mxu0 %v2219
    %2239 = vmatpush.bf16.msra.mxu0 %v2218
    %2240 = vmatpush.bf16.msra.mxu0 %v2217
    %2241 = vmatmul.bf16.gmra.mxu0 %v2148
    %v2242 = vpop.f32.mrf.mxu0
    %v2243 = vadd.f32 0.0, %v2242
    %v2244 = vpop.f32.mrf.mxu0
    %v2245 = vadd.f32 0.0, %v2244
    %2246 = vmatmul.bf16.gmra.mxu0 %v2149
    %v2247 = vpop.f32.mrf.mxu0
    %v2248 = vadd.f32 0.0, %v2247
    %v2249 = vpop.f32.mrf.mxu0
    %v2250 = vadd.f32 0.0, %v2249
    %2251 = vmatmul.bf16.gmra.mxu0 %v2150
    %v2252 = vpop.f32.mrf.mxu0
    %v2253 = vadd.f32 0.0, %v2252
    %v2254 = vpop.f32.mrf.mxu0
    %v2255 = vadd.f32 0.0, %v2254
    %2256 = vmatmul.bf16.gmra.mxu0 %v2151
    %v2257 = vpop.f32.mrf.mxu0
    %v2258 = vadd.f32 0.0, %v2257
    %v2259 = vpop.f32.mrf.mxu0
    %v2260 = vadd.f32 0.0, %v2259
    %2261 = vdwg.mxu0
    %v2278 = vunpack.c.l.b16 %v2152
    %v2279 = vunpack.c.l.b16 %v2153
    %v2280 = vunpack.c.l.b16 %v2154
    %v2281 = vunpack.c.l.b16 %v2155
    %v2282 = vunpack.c.l.b16 %v2156
    %v2283 = vunpack.c.l.b16 %v2157
    %v2284 = vunpack.c.l.b16 %v2158
    %v2285 = vunpack.c.l.b16 %v2159
    %v2286 = vunpack.c.l.b16 %v2160
    %v2287 = vunpack.c.l.b16 %v2161
    %v2288 = vunpack.c.l.b16 %v2162
    %v2289 = vunpack.c.l.b16 %v2163
    %v2290 = vunpack.c.l.b16 %v2164
    %v2291 = vunpack.c.l.b16 %v2165
    %v2292 = vunpack.c.l.b16 %v2166
    %v2293 = vunpack.c.l.b16 %v2167
    %v2294 = vpack.c.b16 %v2279, %v2278
    %v2295 = vpack.c.b16 %v2281, %v2280
    %v2296 = vpack.c.b16 %v2283, %v2282
    %v2297 = vpack.c.b16 %v2285, %v2284
    %v2298 = vpack.c.b16 %v2287, %v2286
    %v2299 = vpack.c.b16 %v2289, %v2288
    %v2300 = vpack.c.b16 %v2291, %v2290
    %v2301 = vpack.c.b16 %v2293, %v2292
    %2310 = vmatpush.bf16.msra.mxu0 %v2301
    %2311 = vmatpush.bf16.msra.mxu0 %v2300
    %2312 = vmatpush.bf16.msra.mxu0 %v2299
    %2313 = vmatpush.bf16.msra.mxu0 %v2298
    %2314 = vmatpush.bf16.msra.mxu0 %v2297
    %2315 = vmatpush.bf16.msra.mxu0 %v2296
    %2316 = vmatpush.bf16.msra.mxu0 %v2295
    %2317 = vmatpush.bf16.msra.mxu0 %v2294
    %2318 = vmatmul.bf16.gmra.mxu0 %v2092
    %v2319 = vpop.f32.mrf.mxu0
    %v2320 = vadd.f32 %v2243, %v2319
    %v2321 = vpop.f32.mrf.mxu0
    %v2322 = vadd.f32 %v2245, %v2321
    %2323 = vmatmul.bf16.gmra.mxu0 %v2093
    %v2324 = vpop.f32.mrf.mxu0
    %v2325 = vadd.f32 %v2248, %v2324
    %v2326 = vpop.f32.mrf.mxu0
    %v2327 = vadd.f32 %v2250, %v2326
    %2328 = vmatmul.bf16.gmra.mxu0 %v2094
    %v2329 = vpop.f32.mrf.mxu0
    %v2330 = vadd.f32 %v2253, %v2329
    %v2331 = vpop.f32.mrf.mxu0
    %v2332 = vadd.f32 %v2255, %v2331
    %2333 = vmatmul.bf16.gmra.mxu0 %v2095
    %v2334 = vpop.f32.mrf.mxu0
    %v2335 = vadd.f32 %v2258, %v2334
    %v2336 = vpop.f32.mrf.mxu0
    %v2337 = vadd.f32 %v2260, %v2336
    %2338 = vdwg.mxu0
    %s2339 = scalar_lea.vmem %s5, 128
    %v2340 = vld [vmem:[%s2339] sm:$0xf]
    %v2341 = vld [vmem:[%s2339 + $0x4] sm:$0xf]
    %v2342 = vld [vmem:[%s2339 + $0x8] sm:$0xf]
    %v2343 = vld [vmem:[%s2339 + $0xc] sm:$0xf]
    %v2344 = vld [vmem:[%s2339 + $0x10] sm:$0xf]
    %v2345 = vld [vmem:[%s2339 + $0x14] sm:$0xf]
    %v2346 = vld [vmem:[%s2339 + $0x18] sm:$0xf]
    %v2347 = vld [vmem:[%s2339 + $0x1c] sm:$0xf]
    %v2348 = vld [vmem:[%s2339 + $0x20] sm:$0xf]
    %v2349 = vld [vmem:[%s2339 + $0x24] sm:$0xf]
    %v2350 = vld [vmem:[%s2339 + $0x28] sm:$0xf]
    %v2351 = vld [vmem:[%s2339 + $0x2c] sm:$0xf]
    %v2352 = vld [vmem:[%s2339 + $0x30] sm:$0xf]
    %v2353 = vld [vmem:[%s2339 + $0x34] sm:$0xf]
    %v2354 = vld [vmem:[%s2339 + $0x38] sm:$0xf]
    %v2355 = vld [vmem:[%s2339 + $0x3c] sm:$0xf]
    %v2372 = vunpack.c.l.b16 %v2340
    %v2373 = vunpack.c.l.b16 %v2341
    %v2374 = vunpack.c.l.b16 %v2342
    %v2375 = vunpack.c.l.b16 %v2343
    %v2376 = vunpack.c.l.b16 %v2344
    %v2377 = vunpack.c.l.b16 %v2345
    %v2378 = vunpack.c.l.b16 %v2346
    %v2379 = vunpack.c.l.b16 %v2347
    %v2380 = vunpack.c.l.b16 %v2348
    %v2381 = vunpack.c.l.b16 %v2349
    %v2382 = vunpack.c.l.b16 %v2350
    %v2383 = vunpack.c.l.b16 %v2351
    %v2384 = vunpack.c.l.b16 %v2352
    %v2385 = vunpack.c.l.b16 %v2353
    %v2386 = vunpack.c.l.b16 %v2354
    %v2387 = vunpack.c.l.b16 %v2355
    %v2388 = vpack.c.b16 %v2373, %v2372
    %v2389 = vpack.c.b16 %v2375, %v2374
    %v2390 = vpack.c.b16 %v2377, %v2376
    %v2391 = vpack.c.b16 %v2379, %v2378
    %v2392 = vpack.c.b16 %v2381, %v2380
    %v2393 = vpack.c.b16 %v2383, %v2382
    %v2394 = vpack.c.b16 %v2385, %v2384
    %v2395 = vpack.c.b16 %v2387, %v2386
    %2404 = vmatpush.bf16.msra.mxu0 %v2395
    %2405 = vmatpush.bf16.msra.mxu0 %v2394
    %2406 = vmatpush.bf16.msra.mxu0 %v2393
    %2407 = vmatpush.bf16.msra.mxu0 %v2392
    %2408 = vmatpush.bf16.msra.mxu0 %v2391
    %2409 = vmatpush.bf16.msra.mxu0 %v2390
    %2410 = vmatpush.bf16.msra.mxu0 %v2389
    %2411 = vmatpush.bf16.msra.mxu0 %v2388
    %2412 = vmatmul.bf16.gmra.mxu0 %v2144
    %v2413 = vpop.f32.mrf.mxu0
    %v2414 = vadd.f32 0.0, %v2413
    %v2415 = vpop.f32.mrf.mxu0
    %v2416 = vadd.f32 0.0, %v2415
    %2417 = vmatmul.bf16.gmra.mxu0 %v2145
    %v2418 = vpop.f32.mrf.mxu0
    %v2419 = vadd.f32 0.0, %v2418
    %v2420 = vpop.f32.mrf.mxu0
    %v2421 = vadd.f32 0.0, %v2420
    %2422 = vmatmul.bf16.gmra.mxu0 %v2146
    %v2423 = vpop.f32.mrf.mxu0
    %v2424 = vadd.f32 0.0, %v2423
    %v2425 = vpop.f32.mrf.mxu0
    %v2426 = vadd.f32 0.0, %v2425
    %2427 = vmatmul.bf16.gmra.mxu0 %v2147
    %v2428 = vpop.f32.mrf.mxu0
    %v2429 = vadd.f32 0.0, %v2428
    %v2430 = vpop.f32.mrf.mxu0
    %v2431 = vadd.f32 0.0, %v2430
    %2432 = vdwg.mxu0
    %v2433 = vadd.f32 %v2320, %v2414
    %v2434 = vadd.f32 %v2322, %v2416
    %v2435 = vadd.f32 %v2325, %v2419
    %v2436 = vadd.f32 %v2327, %v2421
    %v2437 = vadd.f32 %v2330, %v2424
    %v2438 = vadd.f32 %v2332, %v2426
    %v2439 = vadd.f32 %v2335, %v2429
    %v2440 = vadd.f32 %v2337, %v2431
    %v2441 = vld [vmem:[%s6] sm:$0x1]
    %v2443 = vperm.slane %v2441, 0
    %v2445 = vadd.f32 %v2433, %v2443
    %v2446 = vadd.f32 %v2434, %v2443
    %v2447 = vadd.f32 %v2435, %v2443
    %v2448 = vadd.f32 %v2436, %v2443
    %v2449 = vadd.f32 %v2437, %v2443
    %v2450 = vadd.f32 %v2438, %v2443
    %v2451 = vadd.f32 %v2439, %v2443
    %v2452 = vadd.f32 %v2440, %v2443
    %v2453 = vmax.f32 %v2445, 0.0
    %v2454 = vmax.f32 %v2446, 0.0
    %v2455 = vmax.f32 %v2447, 0.0
    %v2456 = vmax.f32 %v2448, 0.0
    %v2457 = vmax.f32 %v2449, 0.0
    %v2458 = vmax.f32 %v2450, 0.0
    %v2459 = vmax.f32 %v2451, 0.0
    %v2460 = vmax.f32 %v2452, 0.0
    %v2461 = vpack.c.bf16 %v2453, %v2453
    %v2462 = vpack.c.bf16 %v2454, %v2454
    %v2463 = vpack.c.bf16 %v2455, %v2455
    %v2464 = vpack.c.bf16 %v2456, %v2456
    %v2465 = vpack.c.bf16 %v2457, %v2457
    %v2466 = vpack.c.bf16 %v2458, %v2458
    %v2467 = vpack.c.bf16 %v2459, %v2459
    %v2468 = vpack.c.bf16 %v2460, %v2460
    %2469 = vst [vmem:[%s11] sm:$0xf] %v2461
    %2470 = vst [vmem:[%s11 + $0x4] sm:$0xf] %v2462
    %2471 = vst [vmem:[%s11 + $0x8] sm:$0xf] %v2463
    %2472 = vst [vmem:[%s11 + $0xc] sm:$0xf] %v2464
    %2473 = vst [vmem:[%s11 + $0x10] sm:$0xf] %v2465
    %2474 = vst [vmem:[%s11 + $0x14] sm:$0xf] %v2466
    %2475 = vst [vmem:[%s11 + $0x18] sm:$0xf] %v2467
    %2476 = vst [vmem:[%s11 + $0x1c] sm:$0xf] %v2468
    %v2485 = vunpack.c.l.b16 %v2461
    %v2486 = vunpack.c.l.b16 %v2462
    %v2487 = vunpack.c.l.b16 %v2463
    %v2488 = vunpack.c.l.b16 %v2464
    %v2489 = vunpack.c.l.b16 %v2465
    %v2490 = vunpack.c.l.b16 %v2466
    %v2491 = vunpack.c.l.b16 %v2467
    %v2492 = vunpack.c.l.b16 %v2468
    %v2493 = vld [vmem:[%s7] sm:$0xff]
    %v2494 = vld [vmem:[%s7 + $0x8] sm:$0xff]
    %v2495 = vld [vmem:[%s7 + $0x10] sm:$0xff]
    %v2496 = vld [vmem:[%s7 + $0x18] sm:$0xff]
    %v2497 = vld [vmem:[%s7 + $0x20] sm:$0xff]
    %v2498 = vld [vmem:[%s7 + $0x28] sm:$0xff]
    %v2499 = vld [vmem:[%s7 + $0x30] sm:$0xff]
    %v2500 = vld [vmem:[%s7 + $0x38] sm:$0xff]
    %v2501 = vld [vmem:[%s7 + $0x40] sm:$0xff]
    %v2502 = vld [vmem:[%s7 + $0x48] sm:$0xff]
    %v2503 = vld [vmem:[%s7 + $0x50] sm:$0xff]
    %v2504 = vld [vmem:[%s7 + $0x58] sm:$0xff]
    %v2505 = vld [vmem:[%s7 + $0x60] sm:$0xff]
    %v2506 = vld [vmem:[%s7 + $0x68] sm:$0xff]
    %v2507 = vld [vmem:[%s7 + $0x70] sm:$0xff]
    %v2508 = vld [vmem:[%s7 + $0x78] sm:$0xff]
    %v2509 = vld [vmem:[%s7 + $0x80] sm:$0xff]
    %v2510 = vld [vmem:[%s7 + $0x88] sm:$0xff]
    %v2511 = vld [vmem:[%s7 + $0x90] sm:$0xff]
    %v2512 = vld [vmem:[%s7 + $0x98] sm:$0xff]
    %v2513 = vld [vmem:[%s7 + $0xa0] sm:$0xff]
    %v2514 = vld [vmem:[%s7 + $0xa8] sm:$0xff]
    %v2515 = vld [vmem:[%s7 + $0xb0] sm:$0xff]
    %v2516 = vld [vmem:[%s7 + $0xb8] sm:$0xff]
    %v2517 = vld [vmem:[%s7 + $0xc0] sm:$0xff]
    %v2518 = vld [vmem:[%s7 + $0xc8] sm:$0xff]
    %v2519 = vld [vmem:[%s7 + $0xd0] sm:$0xff]
    %v2520 = vld [vmem:[%s7 + $0xd8] sm:$0xff]
    %v2521 = vld [vmem:[%s7 + $0xe0] sm:$0xff]
    %v2522 = vld [vmem:[%s7 + $0xe8] sm:$0xff]
    %v2523 = vld [vmem:[%s7 + $0xf0] sm:$0xff]
    %v2524 = vld [vmem:[%s7 + $0xf8] sm:$0xff]
    %v2525 = vld [vmem:[%s7 + $0x100] sm:$0xff]
    %v2526 = vld [vmem:[%s7 + $0x108] sm:$0xff]
    %v2527 = vld [vmem:[%s7 + $0x110] sm:$0xff]
    %v2528 = vld [vmem:[%s7 + $0x118] sm:$0xff]
    %v2529 = vld [vmem:[%s7 + $0x120] sm:$0xff]
    %v2530 = vld [vmem:[%s7 + $0x128] sm:$0xff]
    %v2531 = vld [vmem:[%s7 + $0x130] sm:$0xff]
    %v2532 = vld [vmem:[%s7 + $0x138] sm:$0xff]
    %v2533 = vld [vmem:[%s7 + $0x140] sm:$0xff]
    %v2534 = vld [vmem:[%s7 + $0x148] sm:$0xff]
    %v2535 = vld [vmem:[%s7 + $0x150] sm:$0xff]
    %v2536 = vld [vmem:[%s7 + $0x158] sm:$0xff]
    %v2537 = vld [vmem:[%s7 + $0x160] sm:$0xff]
    %v2538 = vld [vmem:[%s7 + $0x168] sm:$0xff]
    %v2539 = vld [vmem:[%s7 + $0x170] sm:$0xff]
    %v2540 = vld [vmem:[%s7 + $0x178] sm:$0xff]
    %v2541 = vld [vmem:[%s7 + $0x180] sm:$0xff]
    %v2542 = vld [vmem:[%s7 + $0x188] sm:$0xff]
    %v2543 = vld [vmem:[%s7 + $0x190] sm:$0xff]
    %v2544 = vld [vmem:[%s7 + $0x198] sm:$0xff]
    %v2545 = vld [vmem:[%s7 + $0x1a0] sm:$0xff]
    %v2546 = vld [vmem:[%s7 + $0x1a8] sm:$0xff]
    %v2547 = vld [vmem:[%s7 + $0x1b0] sm:$0xff]
    %v2548 = vld [vmem:[%s7 + $0x1b8] sm:$0xff]
    %v2549 = vld [vmem:[%s7 + $0x1c0] sm:$0xff]
    %v2550 = vld [vmem:[%s7 + $0x1c8] sm:$0xff]
    %v2551 = vld [vmem:[%s7 + $0x1d0] sm:$0xff]
    %v2552 = vld [vmem:[%s7 + $0x1d8] sm:$0xff]
    %v2553 = vld [vmem:[%s7 + $0x1e0] sm:$0xff]
    %v2554 = vld [vmem:[%s7 + $0x1e8] sm:$0xff]
    %v2555 = vld [vmem:[%s7 + $0x1f0] sm:$0xff]
    %v2556 = vld [vmem:[%s7 + $0x1f8] sm:$0xff]
    %v2557 = vld [vmem:[%s7 + $0x200] sm:$0xff]
    %v2558 = vld [vmem:[%s7 + $0x208] sm:$0xff]
    %v2559 = vld [vmem:[%s7 + $0x210] sm:$0xff]
    %v2560 = vld [vmem:[%s7 + $0x218] sm:$0xff]
    %v2561 = vld [vmem:[%s7 + $0x220] sm:$0xff]
    %v2562 = vld [vmem:[%s7 + $0x228] sm:$0xff]
    %v2563 = vld [vmem:[%s7 + $0x230] sm:$0xff]
    %v2564 = vld [vmem:[%s7 + $0x238] sm:$0xff]
    %v2565 = vld [vmem:[%s7 + $0x240] sm:$0xff]
    %v2566 = vld [vmem:[%s7 + $0x248] sm:$0xff]
    %v2567 = vld [vmem:[%s7 + $0x250] sm:$0xff]
    %v2568 = vld [vmem:[%s7 + $0x258] sm:$0xff]
    %v2569 = vld [vmem:[%s7 + $0x260] sm:$0xff]
    %v2570 = vld [vmem:[%s7 + $0x268] sm:$0xff]
    %v2571 = vld [vmem:[%s7 + $0x270] sm:$0xff]
    %v2572 = vld [vmem:[%s7 + $0x278] sm:$0xff]
    %v2573 = vld [vmem:[%s7 + $0x280] sm:$0xff]
    %v2574 = vld [vmem:[%s7 + $0x288] sm:$0xff]
    %v2575 = vld [vmem:[%s7 + $0x290] sm:$0xff]
    %v2576 = vld [vmem:[%s7 + $0x298] sm:$0xff]
    %v2577 = vld [vmem:[%s7 + $0x2a0] sm:$0xff]
    %v2578 = vld [vmem:[%s7 + $0x2a8] sm:$0xff]
    %v2579 = vld [vmem:[%s7 + $0x2b0] sm:$0xff]
    %v2580 = vld [vmem:[%s7 + $0x2b8] sm:$0xff]
    %v2581 = vld [vmem:[%s7 + $0x2c0] sm:$0xff]
    %v2582 = vld [vmem:[%s7 + $0x2c8] sm:$0xff]
    %v2583 = vld [vmem:[%s7 + $0x2d0] sm:$0xff]
    %v2584 = vld [vmem:[%s7 + $0x2d8] sm:$0xff]
    %v2585 = vld [vmem:[%s7 + $0x2e0] sm:$0xff]
    %v2586 = vld [vmem:[%s7 + $0x2e8] sm:$0xff]
    %v2587 = vld [vmem:[%s7 + $0x2f0] sm:$0xff]
    %v2588 = vld [vmem:[%s7 + $0x2f8] sm:$0xff]
    %v2589 = vld [vmem:[%s7 + $0x300] sm:$0xff]
    %v2590 = vld [vmem:[%s7 + $0x308] sm:$0xff]
    %v2591 = vld [vmem:[%s7 + $0x310] sm:$0xff]
    %v2592 = vld [vmem:[%s7 + $0x318] sm:$0xff]
    %v2593 = vld [vmem:[%s7 + $0x320] sm:$0xff]
    %v2594 = vld [vmem:[%s7 + $0x328] sm:$0xff]
    %v2595 = vld [vmem:[%s7 + $0x330] sm:$0xff]
    %v2596 = vld [vmem:[%s7 + $0x338] sm:$0xff]
    %v2597 = vld [vmem:[%s7 + $0x340] sm:$0xff]
    %v2598 = vld [vmem:[%s7 + $0x348] sm:$0xff]
    %v2599 = vld [vmem:[%s7 + $0x350] sm:$0xff]
    %v2600 = vld [vmem:[%s7 + $0x358] sm:$0xff]
    %v2601 = vld [vmem:[%s7 + $0x360] sm:$0xff]
    %v2602 = vld [vmem:[%s7 + $0x368] sm:$0xff]
    %v2603 = vld [vmem:[%s7 + $0x370] sm:$0xff]
    %v2604 = vld [vmem:[%s7 + $0x378] sm:$0xff]
    %v2605 = vld [vmem:[%s7 + $0x380] sm:$0xff]
    %v2606 = vld [vmem:[%s7 + $0x388] sm:$0xff]
    %v2607 = vld [vmem:[%s7 + $0x390] sm:$0xff]
    %v2608 = vld [vmem:[%s7 + $0x398] sm:$0xff]
    %v2609 = vld [vmem:[%s7 + $0x3a0] sm:$0xff]
    %v2610 = vld [vmem:[%s7 + $0x3a8] sm:$0xff]
    %v2611 = vld [vmem:[%s7 + $0x3b0] sm:$0xff]
    %v2612 = vld [vmem:[%s7 + $0x3b8] sm:$0xff]
    %v2613 = vld [vmem:[%s7 + $0x3c0] sm:$0xff]
    %v2614 = vld [vmem:[%s7 + $0x3c8] sm:$0xff]
    %v2615 = vld [vmem:[%s7 + $0x3d0] sm:$0xff]
    %v2616 = vld [vmem:[%s7 + $0x3d8] sm:$0xff]
    %v2617 = vld [vmem:[%s7 + $0x3e0] sm:$0xff]
    %v2618 = vld [vmem:[%s7 + $0x3e8] sm:$0xff]
    %v2619 = vld [vmem:[%s7 + $0x3f0] sm:$0xff]
    %v2620 = vld [vmem:[%s7 + $0x3f8] sm:$0xff]
    %v2621 = vld [vmem:[%s7 + $0x400] sm:$0xff]
    %v2622 = vld [vmem:[%s7 + $0x408] sm:$0xff]
    %v2623 = vld [vmem:[%s7 + $0x410] sm:$0xff]
    %v2624 = vld [vmem:[%s7 + $0x418] sm:$0xff]
    %v2625 = vld [vmem:[%s7 + $0x420] sm:$0xff]
    %v2626 = vld [vmem:[%s7 + $0x428] sm:$0xff]
    %v2627 = vld [vmem:[%s7 + $0x430] sm:$0xff]
    %v2628 = vld [vmem:[%s7 + $0x438] sm:$0xff]
    %v2629 = vld [vmem:[%s7 + $0x440] sm:$0xff]
    %v2630 = vld [vmem:[%s7 + $0x448] sm:$0xff]
    %v2631 = vld [vmem:[%s7 + $0x450] sm:$0xff]
    %v2632 = vld [vmem:[%s7 + $0x458] sm:$0xff]
    %v2633 = vld [vmem:[%s7 + $0x460] sm:$0xff]
    %v2634 = vld [vmem:[%s7 + $0x468] sm:$0xff]
    %v2635 = vld [vmem:[%s7 + $0x470] sm:$0xff]
    %v2636 = vld [vmem:[%s7 + $0x478] sm:$0xff]
    %v2637 = vld [vmem:[%s7 + $0x480] sm:$0xff]
    %v2638 = vld [vmem:[%s7 + $0x488] sm:$0xff]
    %v2639 = vld [vmem:[%s7 + $0x490] sm:$0xff]
    %v2640 = vld [vmem:[%s7 + $0x498] sm:$0xff]
    %v2641 = vld [vmem:[%s7 + $0x4a0] sm:$0xff]
    %v2642 = vld [vmem:[%s7 + $0x4a8] sm:$0xff]
    %v2643 = vld [vmem:[%s7 + $0x4b0] sm:$0xff]
    %v2644 = vld [vmem:[%s7 + $0x4b8] sm:$0xff]
    %v2645 = vld [vmem:[%s7 + $0x4c0] sm:$0xff]
    %v2646 = vld [vmem:[%s7 + $0x4c8] sm:$0xff]
    %v2647 = vld [vmem:[%s7 + $0x4d0] sm:$0xff]
    %v2648 = vld [vmem:[%s7 + $0x4d8] sm:$0xff]
    %v2649 = vld [vmem:[%s7 + $0x4e0] sm:$0xff]
    %v2650 = vld [vmem:[%s7 + $0x4e8] sm:$0xff]
    %v2651 = vld [vmem:[%s7 + $0x4f0] sm:$0xff]
    %v2652 = vld [vmem:[%s7 + $0x4f8] sm:$0xff]
    %v2653 = vld [vmem:[%s7 + $0x500] sm:$0xff]
    %v2654 = vld [vmem:[%s7 + $0x508] sm:$0xff]
    %v2655 = vld [vmem:[%s7 + $0x510] sm:$0xff]
    %v2656 = vld [vmem:[%s7 + $0x518] sm:$0xff]
    %v2657 = vld [vmem:[%s7 + $0x520] sm:$0xff]
    %v2658 = vld [vmem:[%s7 + $0x528] sm:$0xff]
    %v2659 = vld [vmem:[%s7 + $0x530] sm:$0xff]
    %v2660 = vld [vmem:[%s7 + $0x538] sm:$0xff]
    %v2661 = vld [vmem:[%s7 + $0x540] sm:$0xff]
    %v2662 = vld [vmem:[%s7 + $0x548] sm:$0xff]
    %v2663 = vld [vmem:[%s7 + $0x550] sm:$0xff]
    %v2664 = vld [vmem:[%s7 + $0x558] sm:$0xff]
    %v2665 = vld [vmem:[%s7 + $0x560] sm:$0xff]
    %v2666 = vld [vmem:[%s7 + $0x568] sm:$0xff]
    %v2667 = vld [vmem:[%s7 + $0x570] sm:$0xff]
    %v2668 = vld [vmem:[%s7 + $0x578] sm:$0xff]
    %v2669 = vld [vmem:[%s7 + $0x580] sm:$0xff]
    %v2670 = vld [vmem:[%s7 + $0x588] sm:$0xff]
    %v2671 = vld [vmem:[%s7 + $0x590] sm:$0xff]
    %v2672 = vld [vmem:[%s7 + $0x598] sm:$0xff]
    %v2673 = vld [vmem:[%s7 + $0x5a0] sm:$0xff]
    %v2674 = vld [vmem:[%s7 + $0x5a8] sm:$0xff]
    %v2675 = vld [vmem:[%s7 + $0x5b0] sm:$0xff]
    %v2676 = vld [vmem:[%s7 + $0x5b8] sm:$0xff]
    %v2677 = vld [vmem:[%s7 + $0x5c0] sm:$0xff]
    %v2678 = vld [vmem:[%s7 + $0x5c8] sm:$0xff]
    %v2679 = vld [vmem:[%s7 + $0x5d0] sm:$0xff]
    %v2680 = vld [vmem:[%s7 + $0x5d8] sm:$0xff]
    %v2681 = vld [vmem:[%s7 + $0x5e0] sm:$0xff]
    %v2682 = vld [vmem:[%s7 + $0x5e8] sm:$0xff]
    %v2683 = vld [vmem:[%s7 + $0x5f0] sm:$0xff]
    %v2684 = vld [vmem:[%s7 + $0x5f8] sm:$0xff]
    %v2685 = vld [vmem:[%s7 + $0x600] sm:$0xff]
    %v2686 = vld [vmem:[%s7 + $0x608] sm:$0xff]
    %v2687 = vld [vmem:[%s7 + $0x610] sm:$0xff]
    %v2688 = vld [vmem:[%s7 + $0x618] sm:$0xff]
    %v2689 = vld [vmem:[%s7 + $0x620] sm:$0xff]
    %v2690 = vld [vmem:[%s7 + $0x628] sm:$0xff]
    %v2691 = vld [vmem:[%s7 + $0x630] sm:$0xff]
    %v2692 = vld [vmem:[%s7 + $0x638] sm:$0xff]
    %v2693 = vld [vmem:[%s7 + $0x640] sm:$0xff]
    %v2694 = vld [vmem:[%s7 + $0x648] sm:$0xff]
    %v2695 = vld [vmem:[%s7 + $0x650] sm:$0xff]
    %v2696 = vld [vmem:[%s7 + $0x658] sm:$0xff]
    %v2697 = vld [vmem:[%s7 + $0x660] sm:$0xff]
    %v2698 = vld [vmem:[%s7 + $0x668] sm:$0xff]
    %v2699 = vld [vmem:[%s7 + $0x670] sm:$0xff]
    %v2700 = vld [vmem:[%s7 + $0x678] sm:$0xff]
    %v2701 = vld [vmem:[%s7 + $0x680] sm:$0xff]
    %v2702 = vld [vmem:[%s7 + $0x688] sm:$0xff]
    %v2703 = vld [vmem:[%s7 + $0x690] sm:$0xff]
    %v2704 = vld [vmem:[%s7 + $0x698] sm:$0xff]
    %v2705 = vld [vmem:[%s7 + $0x6a0] sm:$0xff]
    %v2706 = vld [vmem:[%s7 + $0x6a8] sm:$0xff]
    %v2707 = vld [vmem:[%s7 + $0x6b0] sm:$0xff]
    %v2708 = vld [vmem:[%s7 + $0x6b8] sm:$0xff]
    %v2709 = vld [vmem:[%s7 + $0x6c0] sm:$0xff]
    %v2710 = vld [vmem:[%s7 + $0x6c8] sm:$0xff]
    %v2711 = vld [vmem:[%s7 + $0x6d0] sm:$0xff]
    %v2712 = vld [vmem:[%s7 + $0x6d8] sm:$0xff]
    %v2713 = vld [vmem:[%s7 + $0x6e0] sm:$0xff]
    %v2714 = vld [vmem:[%s7 + $0x6e8] sm:$0xff]
    %v2715 = vld [vmem:[%s7 + $0x6f0] sm:$0xff]
    %v2716 = vld [vmem:[%s7 + $0x6f8] sm:$0xff]
    %v2717 = vld [vmem:[%s7 + $0x700] sm:$0xff]
    %v2718 = vld [vmem:[%s7 + $0x708] sm:$0xff]
    %v2719 = vld [vmem:[%s7 + $0x710] sm:$0xff]
    %v2720 = vld [vmem:[%s7 + $0x718] sm:$0xff]
    %v2721 = vld [vmem:[%s7 + $0x720] sm:$0xff]
    %v2722 = vld [vmem:[%s7 + $0x728] sm:$0xff]
    %v2723 = vld [vmem:[%s7 + $0x730] sm:$0xff]
    %v2724 = vld [vmem:[%s7 + $0x738] sm:$0xff]
    %v2725 = vld [vmem:[%s7 + $0x740] sm:$0xff]
    %v2726 = vld [vmem:[%s7 + $0x748] sm:$0xff]
    %v2727 = vld [vmem:[%s7 + $0x750] sm:$0xff]
    %v2728 = vld [vmem:[%s7 + $0x758] sm:$0xff]
    %v2729 = vld [vmem:[%s7 + $0x760] sm:$0xff]
    %v2730 = vld [vmem:[%s7 + $0x768] sm:$0xff]
    %v2731 = vld [vmem:[%s7 + $0x770] sm:$0xff]
    %v2732 = vld [vmem:[%s7 + $0x778] sm:$0xff]
    %v2733 = vld [vmem:[%s7 + $0x780] sm:$0xff]
    %v2734 = vld [vmem:[%s7 + $0x788] sm:$0xff]
    %v2735 = vld [vmem:[%s7 + $0x790] sm:$0xff]
    %v2736 = vld [vmem:[%s7 + $0x798] sm:$0xff]
    %v2737 = vld [vmem:[%s7 + $0x7a0] sm:$0xff]
    %v2738 = vld [vmem:[%s7 + $0x7a8] sm:$0xff]
    %v2739 = vld [vmem:[%s7 + $0x7b0] sm:$0xff]
    %v2740 = vld [vmem:[%s7 + $0x7b8] sm:$0xff]
    %v2741 = vld [vmem:[%s7 + $0x7c0] sm:$0xff]
    %v2742 = vld [vmem:[%s7 + $0x7c8] sm:$0xff]
    %v2743 = vld [vmem:[%s7 + $0x7d0] sm:$0xff]
    %v2744 = vld [vmem:[%s7 + $0x7d8] sm:$0xff]
    %v2745 = vld [vmem:[%s7 + $0x7e0] sm:$0xff]
    %v2746 = vld [vmem:[%s7 + $0x7e8] sm:$0xff]
    %v2747 = vld [vmem:[%s7 + $0x7f0] sm:$0xff]
    %v2748 = vld [vmem:[%s7 + $0x7f8] sm:$0xff]
    %v2749 = vld [vmem:[%s8] sm:$0x3]
    %v2751 = vperm.slane %v2749, 0
    %v2752 = vperm.slane %v2749, 1
    %v2755 = vpack.i.b16 %v2487, %v2485
    %v2756 = vpack.i.b16 %v2488, %v2486
    %v2757 = vpack.i.b16 %v2491, %v2489
    %v2758 = vpack.i.b16 %v2492, %v2490
    %2760 = vst [vmem:[#allocation1] ss:$9 sm:$0xff] %v2755
    %s2762 = scalar_lea.vmem [#allocation1], 1
    %2763 = vst [vmem:[%s2762] ss:$9 sm:$0xff] %v2757
    %v2764 = vld [vmem:[#allocation1] sm:$0xff]
    %v2765 = vld [vmem:[#allocation1 + $0x9] sm:$0xff]
    %v2766 = vld [vmem:[#allocation1 + $0x12] sm:$0xff]
    %v2767 = vld [vmem:[#allocation1 + $0x1b] sm:$0xff]
    %v2768 = vld [vmem:[#allocation1 + $0x24] sm:$0xff]
    %v2769 = vld [vmem:[#allocation1 + $0x2d] sm:$0xff]
    %v2770 = vld [vmem:[#allocation1 + $0x36] sm:$0xff]
    %v2771 = vld [vmem:[#allocation1 + $0x3f] sm:$0xff]
    %2773 = vst [vmem:[#allocation1] ss:$9 sm:$0xff] %v2756
    %2775 = vst [vmem:[%s2762] ss:$9 sm:$0xff] %v2758
    %v2776 = vld [vmem:[#allocation1] sm:$0xff]
    %v2777 = vld [vmem:[#allocation1 + $0x9] sm:$0xff]
    %v2778 = vld [vmem:[#allocation1 + $0x12] sm:$0xff]
    %v2779 = vld [vmem:[#allocation1 + $0x1b] sm:$0xff]
    %v2780 = vld [vmem:[#allocation1 + $0x24] sm:$0xff]
    %v2781 = vld [vmem:[#allocation1 + $0x2d] sm:$0xff]
    %v2782 = vld [vmem:[#allocation1 + $0x36] sm:$0xff]
    %v2783 = vld [vmem:[#allocation1 + $0x3f] sm:$0xff]
    %v3056 = vunpack.c.l.b16 %v2493
    %v3057 = vunpack.c.h.b16 %v2493
    %v3058 = vunpack.c.l.b16 %v2494
    %v3059 = vunpack.c.h.b16 %v2494
    %v3060 = vunpack.c.l.b16 %v2495
    %v3061 = vunpack.c.h.b16 %v2495
    %v3062 = vunpack.c.l.b16 %v2496
    %v3063 = vunpack.c.h.b16 %v2496
    %v3064 = vunpack.c.l.b16 %v2497
    %v3065 = vunpack.c.h.b16 %v2497
    %v3066 = vunpack.c.l.b16 %v2498
    %v3067 = vunpack.c.h.b16 %v2498
    %v3068 = vunpack.c.l.b16 %v2499
    %v3069 = vunpack.c.h.b16 %v2499
    %v3070 = vunpack.c.l.b16 %v2500
    %v3071 = vunpack.c.h.b16 %v2500
    %v3072 = vunpack.c.l.b16 %v2501
    %v3073 = vunpack.c.h.b16 %v2501
    %v3074 = vunpack.c.l.b16 %v2502
    %v3075 = vunpack.c.h.b16 %v2502
    %v3076 = vunpack.c.l.b16 %v2503
    %v3077 = vunpack.c.h.b16 %v2503
    %v3078 = vunpack.c.l.b16 %v2504
    %v3079 = vunpack.c.h.b16 %v2504
    %v3080 = vunpack.c.l.b16 %v2505
    %v3081 = vunpack.c.h.b16 %v2505
    %v3082 = vunpack.c.l.b16 %v2506
    %v3083 = vunpack.c.h.b16 %v2506
    %v3084 = vunpack.c.l.b16 %v2507
    %v3085 = vunpack.c.h.b16 %v2507
    %v3086 = vunpack.c.l.b16 %v2508
    %v3087 = vunpack.c.h.b16 %v2508
    %v3088 = vunpack.c.l.b16 %v2509
    %v3089 = vunpack.c.h.b16 %v2509
    %v3090 = vunpack.c.l.b16 %v2510
    %v3091 = vunpack.c.h.b16 %v2510
    %v3092 = vunpack.c.l.b16 %v2511
    %v3093 = vunpack.c.h.b16 %v2511
    %v3094 = vunpack.c.l.b16 %v2512
    %v3095 = vunpack.c.h.b16 %v2512
    %v3096 = vunpack.c.l.b16 %v2513
    %v3097 = vunpack.c.h.b16 %v2513
    %v3098 = vunpack.c.l.b16 %v2514
    %v3099 = vunpack.c.h.b16 %v2514
    %v3100 = vunpack.c.l.b16 %v2515
    %v3101 = vunpack.c.h.b16 %v2515
    %v3102 = vunpack.c.l.b16 %v2516
    %v3103 = vunpack.c.h.b16 %v2516
    %v3104 = vunpack.c.l.b16 %v2517
    %v3105 = vunpack.c.h.b16 %v2517
    %v3106 = vunpack.c.l.b16 %v2518
    %v3107 = vunpack.c.h.b16 %v2518
    %v3108 = vunpack.c.l.b16 %v2519
    %v3109 = vunpack.c.h.b16 %v2519
    %v3110 = vunpack.c.l.b16 %v2520
    %v3111 = vunpack.c.h.b16 %v2520
    %v3112 = vunpack.c.l.b16 %v2521
    %v3113 = vunpack.c.h.b16 %v2521
    %v3114 = vunpack.c.l.b16 %v2522
    %v3115 = vunpack.c.h.b16 %v2522
    %v3116 = vunpack.c.l.b16 %v2523
    %v3117 = vunpack.c.h.b16 %v2523
    %v3118 = vunpack.c.l.b16 %v2524
    %v3119 = vunpack.c.h.b16 %v2524
    %v3120 = vunpack.c.l.b16 %v2525
    %v3121 = vunpack.c.h.b16 %v2525
    %v3122 = vunpack.c.l.b16 %v2526
    %v3123 = vunpack.c.h.b16 %v2526
    %v3124 = vunpack.c.l.b16 %v2527
    %v3125 = vunpack.c.h.b16 %v2527
    %v3126 = vunpack.c.l.b16 %v2528
    %v3127 = vunpack.c.h.b16 %v2528
    %v3128 = vunpack.c.l.b16 %v2529
    %v3129 = vunpack.c.h.b16 %v2529
    %v3130 = vunpack.c.l.b16 %v2530
    %v3131 = vunpack.c.h.b16 %v2530
    %v3132 = vunpack.c.l.b16 %v2531
    %v3133 = vunpack.c.h.b16 %v2531
    %v3134 = vunpack.c.l.b16 %v2532
    %v3135 = vunpack.c.h.b16 %v2532
    %v3136 = vunpack.c.l.b16 %v2533
    %v3137 = vunpack.c.h.b16 %v2533
    %v3138 = vunpack.c.l.b16 %v2534
    %v3139 = vunpack.c.h.b16 %v2534
    %v3140 = vunpack.c.l.b16 %v2535
    %v3141 = vunpack.c.h.b16 %v2535
    %v3142 = vunpack.c.l.b16 %v2536
    %v3143 = vunpack.c.h.b16 %v2536
    %v3144 = vunpack.c.l.b16 %v2537
    %v3145 = vunpack.c.h.b16 %v2537
    %v3146 = vunpack.c.l.b16 %v2538
    %v3147 = vunpack.c.h.b16 %v2538
    %v3148 = vunpack.c.l.b16 %v2539
    %v3149 = vunpack.c.h.b16 %v2539
    %v3150 = vunpack.c.l.b16 %v2540
    %v3151 = vunpack.c.h.b16 %v2540
    %v3152 = vunpack.c.l.b16 %v2541
    %v3153 = vunpack.c.h.b16 %v2541
    %v3154 = vunpack.c.l.b16 %v2542
    %v3155 = vunpack.c.h.b16 %v2542
    %v3156 = vunpack.c.l.b16 %v2543
    %v3157 = vunpack.c.h.b16 %v2543
    %v3158 = vunpack.c.l.b16 %v2544
    %v3159 = vunpack.c.h.b16 %v2544
    %v3160 = vunpack.c.l.b16 %v2545
    %v3161 = vunpack.c.h.b16 %v2545
    %v3162 = vunpack.c.l.b16 %v2546
    %v3163 = vunpack.c.h.b16 %v2546
    %v3164 = vunpack.c.l.b16 %v2547
    %v3165 = vunpack.c.h.b16 %v2547
    %v3166 = vunpack.c.l.b16 %v2548
    %v3167 = vunpack.c.h.b16 %v2548
    %v3168 = vunpack.c.l.b16 %v2549
    %v3169 = vunpack.c.h.b16 %v2549
    %v3170 = vunpack.c.l.b16 %v2550
    %v3171 = vunpack.c.h.b16 %v2550
    %v3172 = vunpack.c.l.b16 %v2551
    %v3173 = vunpack.c.h.b16 %v2551
    %v3174 = vunpack.c.l.b16 %v2552
    %v3175 = vunpack.c.h.b16 %v2552
    %v3176 = vunpack.c.l.b16 %v2553
    %v3177 = vunpack.c.h.b16 %v2553
    %v3178 = vunpack.c.l.b16 %v2554
    %v3179 = vunpack.c.h.b16 %v2554
    %v3180 = vunpack.c.l.b16 %v2555
    %v3181 = vunpack.c.h.b16 %v2555
    %v3182 = vunpack.c.l.b16 %v2556
    %v3183 = vunpack.c.h.b16 %v2556
    %v3184 = vunpack.c.l.b16 %v2557
    %v3185 = vunpack.c.h.b16 %v2557
    %v3186 = vunpack.c.l.b16 %v2558
    %v3187 = vunpack.c.h.b16 %v2558
    %v3188 = vunpack.c.l.b16 %v2559
    %v3189 = vunpack.c.h.b16 %v2559
    %v3190 = vunpack.c.l.b16 %v2560
    %v3191 = vunpack.c.h.b16 %v2560
    %v3192 = vunpack.c.l.b16 %v2561
    %v3193 = vunpack.c.h.b16 %v2561
    %v3194 = vunpack.c.l.b16 %v2562
    %v3195 = vunpack.c.h.b16 %v2562
    %v3196 = vunpack.c.l.b16 %v2563
    %v3197 = vunpack.c.h.b16 %v2563
    %v3198 = vunpack.c.l.b16 %v2564
    %v3199 = vunpack.c.h.b16 %v2564
    %v3200 = vunpack.c.l.b16 %v2565
    %v3201 = vunpack.c.h.b16 %v2565
    %v3202 = vunpack.c.l.b16 %v2566
    %v3203 = vunpack.c.h.b16 %v2566
    %v3204 = vunpack.c.l.b16 %v2567
    %v3205 = vunpack.c.h.b16 %v2567
    %v3206 = vunpack.c.l.b16 %v2568
    %v3207 = vunpack.c.h.b16 %v2568
    %v3208 = vunpack.c.l.b16 %v2569
    %v3209 = vunpack.c.h.b16 %v2569
    %v3210 = vunpack.c.l.b16 %v2570
    %v3211 = vunpack.c.h.b16 %v2570
    %v3212 = vunpack.c.l.b16 %v2571
    %v3213 = vunpack.c.h.b16 %v2571
    %v3214 = vunpack.c.l.b16 %v2572
    %v3215 = vunpack.c.h.b16 %v2572
    %v3216 = vunpack.c.l.b16 %v2573
    %v3217 = vunpack.c.h.b16 %v2573
    %v3218 = vunpack.c.l.b16 %v2574
    %v3219 = vunpack.c.h.b16 %v2574
    %v3220 = vunpack.c.l.b16 %v2575
    %v3221 = vunpack.c.h.b16 %v2575
    %v3222 = vunpack.c.l.b16 %v2576
    %v3223 = vunpack.c.h.b16 %v2576
    %v3224 = vunpack.c.l.b16 %v2577
    %v3225 = vunpack.c.h.b16 %v2577
    %v3226 = vunpack.c.l.b16 %v2578
    %v3227 = vunpack.c.h.b16 %v2578
    %v3228 = vunpack.c.l.b16 %v2579
    %v3229 = vunpack.c.h.b16 %v2579
    %v3230 = vunpack.c.l.b16 %v2580
    %v3231 = vunpack.c.h.b16 %v2580
    %v3232 = vunpack.c.l.b16 %v2581
    %v3233 = vunpack.c.h.b16 %v2581
    %v3234 = vunpack.c.l.b16 %v2582
    %v3235 = vunpack.c.h.b16 %v2582
    %v3236 = vunpack.c.l.b16 %v2583
    %v3237 = vunpack.c.h.b16 %v2583
    %v3238 = vunpack.c.l.b16 %v2584
    %v3239 = vunpack.c.h.b16 %v2584
    %v3240 = vunpack.c.l.b16 %v2585
    %v3241 = vunpack.c.h.b16 %v2585
    %v3242 = vunpack.c.l.b16 %v2586
    %v3243 = vunpack.c.h.b16 %v2586
    %v3244 = vunpack.c.l.b16 %v2587
    %v3245 = vunpack.c.h.b16 %v2587
    %v3246 = vunpack.c.l.b16 %v2588
    %v3247 = vunpack.c.h.b16 %v2588
    %v3248 = vunpack.c.l.b16 %v2589
    %v3249 = vunpack.c.h.b16 %v2589
    %v3250 = vunpack.c.l.b16 %v2590
    %v3251 = vunpack.c.h.b16 %v2590
    %v3252 = vunpack.c.l.b16 %v2591
    %v3253 = vunpack.c.h.b16 %v2591
    %v3254 = vunpack.c.l.b16 %v2592
    %v3255 = vunpack.c.h.b16 %v2592
    %v3256 = vunpack.c.l.b16 %v2593
    %v3257 = vunpack.c.h.b16 %v2593
    %v3258 = vunpack.c.l.b16 %v2594
    %v3259 = vunpack.c.h.b16 %v2594
    %v3260 = vunpack.c.l.b16 %v2595
    %v3261 = vunpack.c.h.b16 %v2595
    %v3262 = vunpack.c.l.b16 %v2596
    %v3263 = vunpack.c.h.b16 %v2596
    %v3264 = vunpack.c.l.b16 %v2597
    %v3265 = vunpack.c.h.b16 %v2597
    %v3266 = vunpack.c.l.b16 %v2598
    %v3267 = vunpack.c.h.b16 %v2598
    %v3268 = vunpack.c.l.b16 %v2599
    %v3269 = vunpack.c.h.b16 %v2599
    %v3270 = vunpack.c.l.b16 %v2600
    %v3271 = vunpack.c.h.b16 %v2600
    %v3272 = vunpack.c.l.b16 %v2601
    %v3273 = vunpack.c.h.b16 %v2601
    %v3274 = vunpack.c.l.b16 %v2602
    %v3275 = vunpack.c.h.b16 %v2602
    %v3276 = vunpack.c.l.b16 %v2603
    %v3277 = vunpack.c.h.b16 %v2603
    %v3278 = vunpack.c.l.b16 %v2604
    %v3279 = vunpack.c.h.b16 %v2604
    %v3280 = vunpack.c.l.b16 %v2605
    %v3281 = vunpack.c.h.b16 %v2605
    %v3282 = vunpack.c.l.b16 %v2606
    %v3283 = vunpack.c.h.b16 %v2606
    %v3284 = vunpack.c.l.b16 %v2607
    %v3285 = vunpack.c.h.b16 %v2607
    %v3286 = vunpack.c.l.b16 %v2608
    %v3287 = vunpack.c.h.b16 %v2608
    %v3288 = vunpack.c.l.b16 %v2609
    %v3289 = vunpack.c.h.b16 %v2609
    %v3290 = vunpack.c.l.b16 %v2610
    %v3291 = vunpack.c.h.b16 %v2610
    %v3292 = vunpack.c.l.b16 %v2611
    %v3293 = vunpack.c.h.b16 %v2611
    %v3294 = vunpack.c.l.b16 %v2612
    %v3295 = vunpack.c.h.b16 %v2612
    %v3296 = vunpack.c.l.b16 %v2613
    %v3297 = vunpack.c.h.b16 %v2613
    %v3298 = vunpack.c.l.b16 %v2614
    %v3299 = vunpack.c.h.b16 %v2614
    %v3300 = vunpack.c.l.b16 %v2615
    %v3301 = vunpack.c.h.b16 %v2615
    %v3302 = vunpack.c.l.b16 %v2616
    %v3303 = vunpack.c.h.b16 %v2616
    %v3304 = vunpack.c.l.b16 %v2617
    %v3305 = vunpack.c.h.b16 %v2617
    %v3306 = vunpack.c.l.b16 %v2618
    %v3307 = vunpack.c.h.b16 %v2618
    %v3308 = vunpack.c.l.b16 %v2619
    %v3309 = vunpack.c.h.b16 %v2619
    %v3310 = vunpack.c.l.b16 %v2620
    %v3311 = vunpack.c.h.b16 %v2620
    %v3312 = vunpack.c.l.b16 %v2621
    %v3313 = vunpack.c.h.b16 %v2621
    %v3314 = vunpack.c.l.b16 %v2622
    %v3315 = vunpack.c.h.b16 %v2622
    %v3316 = vunpack.c.l.b16 %v2623
    %v3317 = vunpack.c.h.b16 %v2623
    %v3318 = vunpack.c.l.b16 %v2624
    %v3319 = vunpack.c.h.b16 %v2624
    %v3320 = vunpack.c.l.b16 %v2625
    %v3321 = vunpack.c.h.b16 %v2625
    %v3322 = vunpack.c.l.b16 %v2626
    %v3323 = vunpack.c.h.b16 %v2626
    %v3324 = vunpack.c.l.b16 %v2627
    %v3325 = vunpack.c.h.b16 %v2627
    %v3326 = vunpack.c.l.b16 %v2628
    %v3327 = vunpack.c.h.b16 %v2628
    %v3328 = vunpack.c.l.b16 %v2629
    %v3329 = vunpack.c.h.b16 %v2629
    %v3330 = vunpack.c.l.b16 %v2630
    %v3331 = vunpack.c.h.b16 %v2630
    %v3332 = vunpack.c.l.b16 %v2631
    %v3333 = vunpack.c.h.b16 %v2631
    %v3334 = vunpack.c.l.b16 %v2632
    %v3335 = vunpack.c.h.b16 %v2632
    %v3336 = vunpack.c.l.b16 %v2633
    %v3337 = vunpack.c.h.b16 %v2633
    %v3338 = vunpack.c.l.b16 %v2634
    %v3339 = vunpack.c.h.b16 %v2634
    %v3340 = vunpack.c.l.b16 %v2635
    %v3341 = vunpack.c.h.b16 %v2635
    %v3342 = vunpack.c.l.b16 %v2636
    %v3343 = vunpack.c.h.b16 %v2636
    %v3344 = vunpack.c.l.b16 %v2637
    %v3345 = vunpack.c.h.b16 %v2637
    %v3346 = vunpack.c.l.b16 %v2638
    %v3347 = vunpack.c.h.b16 %v2638
    %v3348 = vunpack.c.l.b16 %v2639
    %v3349 = vunpack.c.h.b16 %v2639
    %v3350 = vunpack.c.l.b16 %v2640
    %v3351 = vunpack.c.h.b16 %v2640
    %v3352 = vunpack.c.l.b16 %v2641
    %v3353 = vunpack.c.h.b16 %v2641
    %v3354 = vunpack.c.l.b16 %v2642
    %v3355 = vunpack.c.h.b16 %v2642
    %v3356 = vunpack.c.l.b16 %v2643
    %v3357 = vunpack.c.h.b16 %v2643
    %v3358 = vunpack.c.l.b16 %v2644
    %v3359 = vunpack.c.h.b16 %v2644
    %v3360 = vunpack.c.l.b16 %v2645
    %v3361 = vunpack.c.h.b16 %v2645
    %v3362 = vunpack.c.l.b16 %v2646
    %v3363 = vunpack.c.h.b16 %v2646
    %v3364 = vunpack.c.l.b16 %v2647
    %v3365 = vunpack.c.h.b16 %v2647
    %v3366 = vunpack.c.l.b16 %v2648
    %v3367 = vunpack.c.h.b16 %v2648
    %v3368 = vunpack.c.l.b16 %v2649
    %v3369 = vunpack.c.h.b16 %v2649
    %v3370 = vunpack.c.l.b16 %v2650
    %v3371 = vunpack.c.h.b16 %v2650
    %v3372 = vunpack.c.l.b16 %v2651
    %v3373 = vunpack.c.h.b16 %v2651
    %v3374 = vunpack.c.l.b16 %v2652
    %v3375 = vunpack.c.h.b16 %v2652
    %v3376 = vunpack.c.l.b16 %v2653
    %v3377 = vunpack.c.h.b16 %v2653
    %v3378 = vunpack.c.l.b16 %v2654
    %v3379 = vunpack.c.h.b16 %v2654
    %v3380 = vunpack.c.l.b16 %v2655
    %v3381 = vunpack.c.h.b16 %v2655
    %v3382 = vunpack.c.l.b16 %v2656
    %v3383 = vunpack.c.h.b16 %v2656
    %v3384 = vunpack.c.l.b16 %v2657
    %v3385 = vunpack.c.h.b16 %v2657
    %v3386 = vunpack.c.l.b16 %v2658
    %v3387 = vunpack.c.h.b16 %v2658
    %v3388 = vunpack.c.l.b16 %v2659
    %v3389 = vunpack.c.h.b16 %v2659
    %v3390 = vunpack.c.l.b16 %v2660
    %v3391 = vunpack.c.h.b16 %v2660
    %v3392 = vunpack.c.l.b16 %v2661
    %v3393 = vunpack.c.h.b16 %v2661
    %v3394 = vunpack.c.l.b16 %v2662
    %v3395 = vunpack.c.h.b16 %v2662
    %v3396 = vunpack.c.l.b16 %v2663
    %v3397 = vunpack.c.h.b16 %v2663
    %v3398 = vunpack.c.l.b16 %v2664
    %v3399 = vunpack.c.h.b16 %v2664
    %v3400 = vunpack.c.l.b16 %v2665
    %v3401 = vunpack.c.h.b16 %v2665
    %v3402 = vunpack.c.l.b16 %v2666
    %v3403 = vunpack.c.h.b16 %v2666
    %v3404 = vunpack.c.l.b16 %v2667
    %v3405 = vunpack.c.h.b16 %v2667
    %v3406 = vunpack.c.l.b16 %v2668
    %v3407 = vunpack.c.h.b16 %v2668
    %v3408 = vunpack.c.l.b16 %v2669
    %v3409 = vunpack.c.h.b16 %v2669
    %v3410 = vunpack.c.l.b16 %v2670
    %v3411 = vunpack.c.h.b16 %v2670
    %v3412 = vunpack.c.l.b16 %v2671
    %v3413 = vunpack.c.h.b16 %v2671
    %v3414 = vunpack.c.l.b16 %v2672
    %v3415 = vunpack.c.h.b16 %v2672
    %v3416 = vunpack.c.l.b16 %v2673
    %v3417 = vunpack.c.h.b16 %v2673
    %v3418 = vunpack.c.l.b16 %v2674
    %v3419 = vunpack.c.h.b16 %v2674
    %v3420 = vunpack.c.l.b16 %v2675
    %v3421 = vunpack.c.h.b16 %v2675
    %v3422 = vunpack.c.l.b16 %v2676
    %v3423 = vunpack.c.h.b16 %v2676
    %v3424 = vunpack.c.l.b16 %v2677
    %v3425 = vunpack.c.h.b16 %v2677
    %v3426 = vunpack.c.l.b16 %v2678
    %v3427 = vunpack.c.h.b16 %v2678
    %v3428 = vunpack.c.l.b16 %v2679
    %v3429 = vunpack.c.h.b16 %v2679
    %v3430 = vunpack.c.l.b16 %v2680
    %v3431 = vunpack.c.h.b16 %v2680
    %v3432 = vunpack.c.l.b16 %v2681
    %v3433 = vunpack.c.h.b16 %v2681
    %v3434 = vunpack.c.l.b16 %v2682
    %v3435 = vunpack.c.h.b16 %v2682
    %v3436 = vunpack.c.l.b16 %v2683
    %v3437 = vunpack.c.h.b16 %v2683
    %v3438 = vunpack.c.l.b16 %v2684
    %v3439 = vunpack.c.h.b16 %v2684
    %v3440 = vunpack.c.l.b16 %v2685
    %v3441 = vunpack.c.h.b16 %v2685
    %v3442 = vunpack.c.l.b16 %v2686
    %v3443 = vunpack.c.h.b16 %v2686
    %v3444 = vunpack.c.l.b16 %v2687
    %v3445 = vunpack.c.h.b16 %v2687
    %v3446 = vunpack.c.l.b16 %v2688
    %v3447 = vunpack.c.h.b16 %v2688
    %v3448 = vunpack.c.l.b16 %v2689
    %v3449 = vunpack.c.h.b16 %v2689
    %v3450 = vunpack.c.l.b16 %v2690
    %v3451 = vunpack.c.h.b16 %v2690
    %v3452 = vunpack.c.l.b16 %v2691
    %v3453 = vunpack.c.h.b16 %v2691
    %v3454 = vunpack.c.l.b16 %v2692
    %v3455 = vunpack.c.h.b16 %v2692
    %v3456 = vunpack.c.l.b16 %v2693
    %v3457 = vunpack.c.h.b16 %v2693
    %v3458 = vunpack.c.l.b16 %v2694
    %v3459 = vunpack.c.h.b16 %v2694
    %v3460 = vunpack.c.l.b16 %v2695
    %v3461 = vunpack.c.h.b16 %v2695
    %v3462 = vunpack.c.l.b16 %v2696
    %v3463 = vunpack.c.h.b16 %v2696
    %v3464 = vunpack.c.l.b16 %v2697
    %v3465 = vunpack.c.h.b16 %v2697
    %v3466 = vunpack.c.l.b16 %v2698
    %v3467 = vunpack.c.h.b16 %v2698
    %v3468 = vunpack.c.l.b16 %v2699
    %v3469 = vunpack.c.h.b16 %v2699
    %v3470 = vunpack.c.l.b16 %v2700
    %v3471 = vunpack.c.h.b16 %v2700
    %v3472 = vunpack.c.l.b16 %v2701
    %v3473 = vunpack.c.h.b16 %v2701
    %v3474 = vunpack.c.l.b16 %v2702
    %v3475 = vunpack.c.h.b16 %v2702
    %v3476 = vunpack.c.l.b16 %v2703
    %v3477 = vunpack.c.h.b16 %v2703
    %v3478 = vunpack.c.l.b16 %v2704
    %v3479 = vunpack.c.h.b16 %v2704
    %v3480 = vunpack.c.l.b16 %v2705
    %v3481 = vunpack.c.h.b16 %v2705
    %v3482 = vunpack.c.l.b16 %v2706
    %v3483 = vunpack.c.h.b16 %v2706
    %v3484 = vunpack.c.l.b16 %v2707
    %v3485 = vunpack.c.h.b16 %v2707
    %v3486 = vunpack.c.l.b16 %v2708
    %v3487 = vunpack.c.h.b16 %v2708
    %v3488 = vunpack.c.l.b16 %v2709
    %v3489 = vunpack.c.h.b16 %v2709
    %v3490 = vunpack.c.l.b16 %v2710
    %v3491 = vunpack.c.h.b16 %v2710
    %v3492 = vunpack.c.l.b16 %v2711
    %v3493 = vunpack.c.h.b16 %v2711
    %v3494 = vunpack.c.l.b16 %v2712
    %v3495 = vunpack.c.h.b16 %v2712
    %v3496 = vunpack.c.l.b16 %v2713
    %v3497 = vunpack.c.h.b16 %v2713
    %v3498 = vunpack.c.l.b16 %v2714
    %v3499 = vunpack.c.h.b16 %v2714
    %v3500 = vunpack.c.l.b16 %v2715
    %v3501 = vunpack.c.h.b16 %v2715
    %v3502 = vunpack.c.l.b16 %v2716
    %v3503 = vunpack.c.h.b16 %v2716
    %v3504 = vunpack.c.l.b16 %v2717
    %v3505 = vunpack.c.h.b16 %v2717
    %v3506 = vunpack.c.l.b16 %v2718
    %v3507 = vunpack.c.h.b16 %v2718
    %v3508 = vunpack.c.l.b16 %v2719
    %v3509 = vunpack.c.h.b16 %v2719
    %v3510 = vunpack.c.l.b16 %v2720
    %v3511 = vunpack.c.h.b16 %v2720
    %v3512 = vunpack.c.l.b16 %v2721
    %v3513 = vunpack.c.h.b16 %v2721
    %v3514 = vunpack.c.l.b16 %v2722
    %v3515 = vunpack.c.h.b16 %v2722
    %v3516 = vunpack.c.l.b16 %v2723
    %v3517 = vunpack.c.h.b16 %v2723
    %v3518 = vunpack.c.l.b16 %v2724
    %v3519 = vunpack.c.h.b16 %v2724
    %v3520 = vunpack.c.l.b16 %v2725
    %v3521 = vunpack.c.h.b16 %v2725
    %v3522 = vunpack.c.l.b16 %v2726
    %v3523 = vunpack.c.h.b16 %v2726
    %v3524 = vunpack.c.l.b16 %v2727
    %v3525 = vunpack.c.h.b16 %v2727
    %v3526 = vunpack.c.l.b16 %v2728
    %v3527 = vunpack.c.h.b16 %v2728
    %v3528 = vunpack.c.l.b16 %v2729
    %v3529 = vunpack.c.h.b16 %v2729
    %v3530 = vunpack.c.l.b16 %v2730
    %v3531 = vunpack.c.h.b16 %v2730
    %v3532 = vunpack.c.l.b16 %v2731
    %v3533 = vunpack.c.h.b16 %v2731
    %v3534 = vunpack.c.l.b16 %v2732
    %v3535 = vunpack.c.h.b16 %v2732
    %v3536 = vunpack.c.l.b16 %v2733
    %v3537 = vunpack.c.h.b16 %v2733
    %v3538 = vunpack.c.l.b16 %v2734
    %v3539 = vunpack.c.h.b16 %v2734
    %v3540 = vunpack.c.l.b16 %v2735
    %v3541 = vunpack.c.h.b16 %v2735
    %v3542 = vunpack.c.l.b16 %v2736
    %v3543 = vunpack.c.h.b16 %v2736
    %v3544 = vunpack.c.l.b16 %v2737
    %v3545 = vunpack.c.h.b16 %v2737
    %v3546 = vunpack.c.l.b16 %v2738
    %v3547 = vunpack.c.h.b16 %v2738
    %v3548 = vunpack.c.l.b16 %v2739
    %v3549 = vunpack.c.h.b16 %v2739
    %v3550 = vunpack.c.l.b16 %v2740
    %v3551 = vunpack.c.h.b16 %v2740
    %v3552 = vunpack.c.l.b16 %v2741
    %v3553 = vunpack.c.h.b16 %v2741
    %v3554 = vunpack.c.l.b16 %v2742
    %v3555 = vunpack.c.h.b16 %v2742
    %v3556 = vunpack.c.l.b16 %v2743
    %v3557 = vunpack.c.h.b16 %v2743
    %v3558 = vunpack.c.l.b16 %v2744
    %v3559 = vunpack.c.h.b16 %v2744
    %v3560 = vunpack.c.l.b16 %v2745
    %v3561 = vunpack.c.h.b16 %v2745
    %v3562 = vunpack.c.l.b16 %v2746
    %v3563 = vunpack.c.h.b16 %v2746
    %v3564 = vunpack.c.l.b16 %v2747
    %v3565 = vunpack.c.h.b16 %v2747
    %v3566 = vunpack.c.l.b16 %v2748
    %v3567 = vunpack.c.h.b16 %v2748
    %v3568 = vpack.c.b16 %v3058, %v3056
    %v3569 = vpack.c.b16 %v3059, %v3057
    %v3570 = vpack.c.b16 %v3062, %v3060
    %v3571 = vpack.c.b16 %v3063, %v3061
    %v3572 = vpack.c.b16 %v3066, %v3064
    %v3573 = vpack.c.b16 %v3067, %v3065
    %v3574 = vpack.c.b16 %v3070, %v3068
    %v3575 = vpack.c.b16 %v3071, %v3069
    %v3576 = vpack.c.b16 %v3074, %v3072
    %v3577 = vpack.c.b16 %v3075, %v3073
    %v3578 = vpack.c.b16 %v3078, %v3076
    %v3579 = vpack.c.b16 %v3079, %v3077
    %v3580 = vpack.c.b16 %v3082, %v3080
    %v3581 = vpack.c.b16 %v3083, %v3081
    %v3582 = vpack.c.b16 %v3086, %v3084
    %v3583 = vpack.c.b16 %v3087, %v3085
    %v3584 = vpack.c.b16 %v3090, %v3088
    %v3585 = vpack.c.b16 %v3091, %v3089
    %v3586 = vpack.c.b16 %v3094, %v3092
    %v3587 = vpack.c.b16 %v3095, %v3093
    %v3588 = vpack.c.b16 %v3098, %v3096
    %v3589 = vpack.c.b16 %v3099, %v3097
    %v3590 = vpack.c.b16 %v3102, %v3100
    %v3591 = vpack.c.b16 %v3103, %v3101
    %v3592 = vpack.c.b16 %v3106, %v3104
    %v3593 = vpack.c.b16 %v3107, %v3105
    %v3594 = vpack.c.b16 %v3110, %v3108
    %v3595 = vpack.c.b16 %v3111, %v3109
    %v3596 = vpack.c.b16 %v3114, %v3112
    %v3597 = vpack.c.b16 %v3115, %v3113
    %v3598 = vpack.c.b16 %v3118, %v3116
    %v3599 = vpack.c.b16 %v3119, %v3117
    %v3600 = vpack.c.b16 %v3122, %v3120
    %v3601 = vpack.c.b16 %v3123, %v3121
    %v3602 = vpack.c.b16 %v3126, %v3124
    %v3603 = vpack.c.b16 %v3127, %v3125
    %v3604 = vpack.c.b16 %v3130, %v3128
    %v3605 = vpack.c.b16 %v3131, %v3129
    %v3606 = vpack.c.b16 %v3134, %v3132
    %v3607 = vpack.c.b16 %v3135, %v3133
    %v3608 = vpack.c.b16 %v3138, %v3136
    %v3609 = vpack.c.b16 %v3139, %v3137
    %v3610 = vpack.c.b16 %v3142, %v3140
    %v3611 = vpack.c.b16 %v3143, %v3141
    %v3612 = vpack.c.b16 %v3146, %v3144
    %v3613 = vpack.c.b16 %v3147, %v3145
    %v3614 = vpack.c.b16 %v3150, %v3148
    %v3615 = vpack.c.b16 %v3151, %v3149
    %v3616 = vpack.c.b16 %v3154, %v3152
    %v3617 = vpack.c.b16 %v3155, %v3153
    %v3618 = vpack.c.b16 %v3158, %v3156
    %v3619 = vpack.c.b16 %v3159, %v3157
    %v3620 = vpack.c.b16 %v3162, %v3160
    %v3621 = vpack.c.b16 %v3163, %v3161
    %v3622 = vpack.c.b16 %v3166, %v3164
    %v3623 = vpack.c.b16 %v3167, %v3165
    %v3624 = vpack.c.b16 %v3170, %v3168
    %v3625 = vpack.c.b16 %v3171, %v3169
    %v3626 = vpack.c.b16 %v3174, %v3172
    %v3627 = vpack.c.b16 %v3175, %v3173
    %v3628 = vpack.c.b16 %v3178, %v3176
    %v3629 = vpack.c.b16 %v3179, %v3177
    %v3630 = vpack.c.b16 %v3182, %v3180
    %v3631 = vpack.c.b16 %v3183, %v3181
    %v3632 = vpack.c.b16 %v3186, %v3184
    %v3633 = vpack.c.b16 %v3187, %v3185
    %v3634 = vpack.c.b16 %v3190, %v3188
    %v3635 = vpack.c.b16 %v3191, %v3189
    %v3636 = vpack.c.b16 %v3194, %v3192
    %v3637 = vpack.c.b16 %v3195, %v3193
    %v3638 = vpack.c.b16 %v3198, %v3196
    %v3639 = vpack.c.b16 %v3199, %v3197
    %v3640 = vpack.c.b16 %v3202, %v3200
    %v3641 = vpack.c.b16 %v3203, %v3201
    %v3642 = vpack.c.b16 %v3206, %v3204
    %v3643 = vpack.c.b16 %v3207, %v3205
    %v3644 = vpack.c.b16 %v3210, %v3208
    %v3645 = vpack.c.b16 %v3211, %v3209
    %v3646 = vpack.c.b16 %v3214, %v3212
    %v3647 = vpack.c.b16 %v3215, %v3213
    %v3648 = vpack.c.b16 %v3218, %v3216
    %v3649 = vpack.c.b16 %v3219, %v3217
    %v3650 = vpack.c.b16 %v3222, %v3220
    %v3651 = vpack.c.b16 %v3223, %v3221
    %v3652 = vpack.c.b16 %v3226, %v3224
    %v3653 = vpack.c.b16 %v3227, %v3225
    %v3654 = vpack.c.b16 %v3230, %v3228
    %v3655 = vpack.c.b16 %v3231, %v3229
    %v3656 = vpack.c.b16 %v3234, %v3232
    %v3657 = vpack.c.b16 %v3235, %v3233
    %v3658 = vpack.c.b16 %v3238, %v3236
    %v3659 = vpack.c.b16 %v3239, %v3237
    %v3660 = vpack.c.b16 %v3242, %v3240
    %v3661 = vpack.c.b16 %v3243, %v3241
    %v3662 = vpack.c.b16 %v3246, %v3244
    %v3663 = vpack.c.b16 %v3247, %v3245
    %v3664 = vpack.c.b16 %v3250, %v3248
    %v3665 = vpack.c.b16 %v3251, %v3249
    %v3666 = vpack.c.b16 %v3254, %v3252
    %v3667 = vpack.c.b16 %v3255, %v3253
    %v3668 = vpack.c.b16 %v3258, %v3256
    %v3669 = vpack.c.b16 %v3259, %v3257
    %v3670 = vpack.c.b16 %v3262, %v3260
    %v3671 = vpack.c.b16 %v3263, %v3261
    %v3672 = vpack.c.b16 %v3266, %v3264
    %v3673 = vpack.c.b16 %v3267, %v3265
    %v3674 = vpack.c.b16 %v3270, %v3268
    %v3675 = vpack.c.b16 %v3271, %v3269
    %v3676 = vpack.c.b16 %v3274, %v3272
    %v3677 = vpack.c.b16 %v3275, %v3273
    %v3678 = vpack.c.b16 %v3278, %v3276
    %v3679 = vpack.c.b16 %v3279, %v3277
    %v3680 = vpack.c.b16 %v3282, %v3280
    %v3681 = vpack.c.b16 %v3283, %v3281
    %v3682 = vpack.c.b16 %v3286, %v3284
    %v3683 = vpack.c.b16 %v3287, %v3285
    %v3684 = vpack.c.b16 %v3290, %v3288
    %v3685 = vpack.c.b16 %v3291, %v3289
    %v3686 = vpack.c.b16 %v3294, %v3292
    %v3687 = vpack.c.b16 %v3295, %v3293
    %v3688 = vpack.c.b16 %v3298, %v3296
    %v3689 = vpack.c.b16 %v3299, %v3297
    %v3690 = vpack.c.b16 %v3302, %v3300
    %v3691 = vpack.c.b16 %v3303, %v3301
    %v3692 = vpack.c.b16 %v3306, %v3304
    %v3693 = vpack.c.b16 %v3307, %v3305
    %v3694 = vpack.c.b16 %v3310, %v3308
    %v3695 = vpack.c.b16 %v3311, %v3309
    %v3696 = vpack.c.b16 %v3314, %v3312
    %v3697 = vpack.c.b16 %v3315, %v3313
    %v3698 = vpack.c.b16 %v3318, %v3316
    %v3699 = vpack.c.b16 %v3319, %v3317
    %v3700 = vpack.c.b16 %v3322, %v3320
    %v3701 = vpack.c.b16 %v3323, %v3321
    %v3702 = vpack.c.b16 %v3326, %v3324
    %v3703 = vpack.c.b16 %v3327, %v3325
    %v3704 = vpack.c.b16 %v3330, %v3328
    %v3705 = vpack.c.b16 %v3331, %v3329
    %v3706 = vpack.c.b16 %v3334, %v3332
    %v3707 = vpack.c.b16 %v3335, %v3333
    %v3708 = vpack.c.b16 %v3338, %v3336
    %v3709 = vpack.c.b16 %v3339, %v3337
    %v3710 = vpack.c.b16 %v3342, %v3340
    %v3711 = vpack.c.b16 %v3343, %v3341
    %v3712 = vpack.c.b16 %v3346, %v3344
    %v3713 = vpack.c.b16 %v3347, %v3345
    %v3714 = vpack.c.b16 %v3350, %v3348
    %v3715 = vpack.c.b16 %v3351, %v3349
    %v3716 = vpack.c.b16 %v3354, %v3352
    %v3717 = vpack.c.b16 %v3355, %v3353
    %v3718 = vpack.c.b16 %v3358, %v3356
    %v3719 = vpack.c.b16 %v3359, %v3357
    %v3720 = vpack.c.b16 %v3362, %v3360
    %v3721 = vpack.c.b16 %v3363, %v3361
    %v3722 = vpack.c.b16 %v3366, %v3364
    %v3723 = vpack.c.b16 %v3367, %v3365
    %v3724 = vpack.c.b16 %v3370, %v3368
    %v3725 = vpack.c.b16 %v3371, %v3369
    %v3726 = vpack.c.b16 %v3374, %v3372
    %v3727 = vpack.c.b16 %v3375, %v3373
    %v3728 = vpack.c.b16 %v3378, %v3376
    %v3729 = vpack.c.b16 %v3379, %v3377
    %v3730 = vpack.c.b16 %v3382, %v3380
    %v3731 = vpack.c.b16 %v3383, %v3381
    %v3732 = vpack.c.b16 %v3386, %v3384
    %v3733 = vpack.c.b16 %v3387, %v3385
    %v3734 = vpack.c.b16 %v3390, %v3388
    %v3735 = vpack.c.b16 %v3391, %v3389
    %v3736 = vpack.c.b16 %v3394, %v3392
    %v3737 = vpack.c.b16 %v3395, %v3393
    %v3738 = vpack.c.b16 %v3398, %v3396
    %v3739 = vpack.c.b16 %v3399, %v3397
    %v3740 = vpack.c.b16 %v3402, %v3400
    %v3741 = vpack.c.b16 %v3403, %v3401
    %v3742 = vpack.c.b16 %v3406, %v3404
    %v3743 = vpack.c.b16 %v3407, %v3405
    %v3744 = vpack.c.b16 %v3410, %v3408
    %v3745 = vpack.c.b16 %v3411, %v3409
    %v3746 = vpack.c.b16 %v3414, %v3412
    %v3747 = vpack.c.b16 %v3415, %v3413
    %v3748 = vpack.c.b16 %v3418, %v3416
    %v3749 = vpack.c.b16 %v3419, %v3417
    %v3750 = vpack.c.b16 %v3422, %v3420
    %v3751 = vpack.c.b16 %v3423, %v3421
    %v3752 = vpack.c.b16 %v3426, %v3424
    %v3753 = vpack.c.b16 %v3427, %v3425
    %v3754 = vpack.c.b16 %v3430, %v3428
    %v3755 = vpack.c.b16 %v3431, %v3429
    %v3756 = vpack.c.b16 %v3434, %v3432
    %v3757 = vpack.c.b16 %v3435, %v3433
    %v3758 = vpack.c.b16 %v3438, %v3436
    %v3759 = vpack.c.b16 %v3439, %v3437
    %v3760 = vpack.c.b16 %v3442, %v3440
    %v3761 = vpack.c.b16 %v3443, %v3441
    %v3762 = vpack.c.b16 %v3446, %v3444
    %v3763 = vpack.c.b16 %v3447, %v3445
    %v3764 = vpack.c.b16 %v3450, %v3448
    %v3765 = vpack.c.b16 %v3451, %v3449
    %v3766 = vpack.c.b16 %v3454, %v3452
    %v3767 = vpack.c.b16 %v3455, %v3453
    %v3768 = vpack.c.b16 %v3458, %v3456
    %v3769 = vpack.c.b16 %v3459, %v3457
    %v3770 = vpack.c.b16 %v3462, %v3460
    %v3771 = vpack.c.b16 %v3463, %v3461
    %v3772 = vpack.c.b16 %v3466, %v3464
    %v3773 = vpack.c.b16 %v3467, %v3465
    %v3774 = vpack.c.b16 %v3470, %v3468
    %v3775 = vpack.c.b16 %v3471, %v3469
    %v3776 = vpack.c.b16 %v3474, %v3472
    %v3777 = vpack.c.b16 %v3475, %v3473
    %v3778 = vpack.c.b16 %v3478, %v3476
    %v3779 = vpack.c.b16 %v3479, %v3477
    %v3780 = vpack.c.b16 %v3482, %v3480
    %v3781 = vpack.c.b16 %v3483, %v3481
    %v3782 = vpack.c.b16 %v3486, %v3484
    %v3783 = vpack.c.b16 %v3487, %v3485
    %v3784 = vpack.c.b16 %v3490, %v3488
    %v3785 = vpack.c.b16 %v3491, %v3489
    %v3786 = vpack.c.b16 %v3494, %v3492
    %v3787 = vpack.c.b16 %v3495, %v3493
    %v3788 = vpack.c.b16 %v3498, %v3496
    %v3789 = vpack.c.b16 %v3499, %v3497
    %v3790 = vpack.c.b16 %v3502, %v3500
    %v3791 = vpack.c.b16 %v3503, %v3501
    %v3792 = vpack.c.b16 %v3506, %v3504
    %v3793 = vpack.c.b16 %v3507, %v3505
    %v3794 = vpack.c.b16 %v3510, %v3508
    %v3795 = vpack.c.b16 %v3511, %v3509
    %v3796 = vpack.c.b16 %v3514, %v3512
    %v3797 = vpack.c.b16 %v3515, %v3513
    %v3798 = vpack.c.b16 %v3518, %v3516
    %v3799 = vpack.c.b16 %v3519, %v3517
    %v3800 = vpack.c.b16 %v3522, %v3520
    %v3801 = vpack.c.b16 %v3523, %v3521
    %v3802 = vpack.c.b16 %v3526, %v3524
    %v3803 = vpack.c.b16 %v3527, %v3525
    %v3804 = vpack.c.b16 %v3530, %v3528
    %v3805 = vpack.c.b16 %v3531, %v3529
    %v3806 = vpack.c.b16 %v3534, %v3532
    %v3807 = vpack.c.b16 %v3535, %v3533
    %v3808 = vpack.c.b16 %v3538, %v3536
    %v3809 = vpack.c.b16 %v3539, %v3537
    %v3810 = vpack.c.b16 %v3542, %v3540
    %v3811 = vpack.c.b16 %v3543, %v3541
    %v3812 = vpack.c.b16 %v3546, %v3544
    %v3813 = vpack.c.b16 %v3547, %v3545
    %v3814 = vpack.c.b16 %v3550, %v3548
    %v3815 = vpack.c.b16 %v3551, %v3549
    %v3816 = vpack.c.b16 %v3554, %v3552
    %v3817 = vpack.c.b16 %v3555, %v3553
    %v3818 = vpack.c.b16 %v3558, %v3556
    %v3819 = vpack.c.b16 %v3559, %v3557
    %v3820 = vpack.c.b16 %v3562, %v3560
    %v3821 = vpack.c.b16 %v3563, %v3561
    %v3822 = vpack.c.b16 %v3566, %v3564
    %v3823 = vpack.c.b16 %v3567, %v3565
    %4080 = vmatpush.bf16.msra.mxu0 %v3582
    %4081 = vmatpush.bf16.msra.mxu0 %v3580
    %4082 = vmatpush.bf16.msra.mxu0 %v3578
    %4083 = vmatpush.bf16.msra.mxu0 %v3576
    %4084 = vmatpush.bf16.msra.mxu0 %v3574
    %4085 = vmatpush.bf16.msra.mxu0 %v3572
    %4086 = vmatpush.bf16.msra.mxu0 %v3570
    %4087 = vmatpush.bf16.msra.mxu0 %v3568
    %4088 = vmatmul.bf16.gmra.mxu0 %v2764
    %v4089 = vpop.f32.mrf.mxu0
    %v4090 = vadd.f32 %v2751, %v4089
    %v4091 = vpop.f32.mrf.mxu0
    %4092 = vdwg.mxu0
    %4093 = vmatpush.bf16.msra.mxu0 %v3598
    %4094 = vmatpush.bf16.msra.mxu0 %v3596
    %4095 = vmatpush.bf16.msra.mxu0 %v3594
    %4096 = vmatpush.bf16.msra.mxu0 %v3592
    %4097 = vmatpush.bf16.msra.mxu0 %v3590
    %4098 = vmatpush.bf16.msra.mxu0 %v3588
    %4099 = vmatpush.bf16.msra.mxu0 %v3586
    %4100 = vmatpush.bf16.msra.mxu0 %v3584
    %4101 = vmatmul.bf16.gmra.mxu0 %v2765
    %v4102 = vpop.f32.mrf.mxu0
    %v4103 = vadd.f32 %v4090, %v4102
    %v4104 = vpop.f32.mrf.mxu0
    %4105 = vdwg.mxu0
    %4106 = vmatpush.bf16.msra.mxu0 %v3614
    %4107 = vmatpush.bf16.msra.mxu0 %v3612
    %4108 = vmatpush.bf16.msra.mxu0 %v3610
    %4109 = vmatpush.bf16.msra.mxu0 %v3608
    %4110 = vmatpush.bf16.msra.mxu0 %v3606
    %4111 = vmatpush.bf16.msra.mxu0 %v3604
    %4112 = vmatpush.bf16.msra.mxu0 %v3602
    %4113 = vmatpush.bf16.msra.mxu0 %v3600
    %4114 = vmatmul.bf16.gmra.mxu0 %v2766
    %v4115 = vpop.f32.mrf.mxu0
    %v4116 = vadd.f32 %v4103, %v4115
    %v4117 = vpop.f32.mrf.mxu0
    %4118 = vdwg.mxu0
    %4119 = vmatpush.bf16.msra.mxu0 %v3630
    %4120 = vmatpush.bf16.msra.mxu0 %v3628
    %4121 = vmatpush.bf16.msra.mxu0 %v3626
    %4122 = vmatpush.bf16.msra.mxu0 %v3624
    %4123 = vmatpush.bf16.msra.mxu0 %v3622
    %4124 = vmatpush.bf16.msra.mxu0 %v3620
    %4125 = vmatpush.bf16.msra.mxu0 %v3618
    %4126 = vmatpush.bf16.msra.mxu0 %v3616
    %4127 = vmatmul.bf16.gmra.mxu0 %v2767
    %v4128 = vpop.f32.mrf.mxu0
    %v4129 = vadd.f32 %v4116, %v4128
    %v4130 = vpop.f32.mrf.mxu0
    %4131 = vdwg.mxu0
    %4132 = vmatpush.bf16.msra.mxu0 %v3646
    %4133 = vmatpush.bf16.msra.mxu0 %v3644
    %4134 = vmatpush.bf16.msra.mxu0 %v3642
    %4135 = vmatpush.bf16.msra.mxu0 %v3640
    %4136 = vmatpush.bf16.msra.mxu0 %v3638
    %4137 = vmatpush.bf16.msra.mxu0 %v3636
    %4138 = vmatpush.bf16.msra.mxu0 %v3634
    %4139 = vmatpush.bf16.msra.mxu0 %v3632
    %4140 = vmatmul.bf16.gmra.mxu0 %v2768
    %v4141 = vpop.f32.mrf.mxu0
    %v4142 = vadd.f32 %v4129, %v4141
    %v4143 = vpop.f32.mrf.mxu0
    %4144 = vdwg.mxu0
    %4145 = vmatpush.bf16.msra.mxu0 %v3662
    %4146 = vmatpush.bf16.msra.mxu0 %v3660
    %4147 = vmatpush.bf16.msra.mxu0 %v3658
    %4148 = vmatpush.bf16.msra.mxu0 %v3656
    %4149 = vmatpush.bf16.msra.mxu0 %v3654
    %4150 = vmatpush.bf16.msra.mxu0 %v3652
    %4151 = vmatpush.bf16.msra.mxu0 %v3650
    %4152 = vmatpush.bf16.msra.mxu0 %v3648
    %4153 = vmatmul.bf16.gmra.mxu0 %v2769
    %v4154 = vpop.f32.mrf.mxu0
    %v4155 = vadd.f32 %v4142, %v4154
    %v4156 = vpop.f32.mrf.mxu0
    %4157 = vdwg.mxu0
    %4158 = vmatpush.bf16.msra.mxu0 %v3678
    %4159 = vmatpush.bf16.msra.mxu0 %v3676
    %4160 = vmatpush.bf16.msra.mxu0 %v3674
    %4161 = vmatpush.bf16.msra.mxu0 %v3672
    %4162 = vmatpush.bf16.msra.mxu0 %v3670
    %4163 = vmatpush.bf16.msra.mxu0 %v3668
    %4164 = vmatpush.bf16.msra.mxu0 %v3666
    %4165 = vmatpush.bf16.msra.mxu0 %v3664
    %4166 = vmatmul.bf16.gmra.mxu0 %v2770
    %v4167 = vpop.f32.mrf.mxu0
    %v4168 = vadd.f32 %v4155, %v4167
    %v4169 = vpop.f32.mrf.mxu0
    %4170 = vdwg.mxu0
    %4171 = vmatpush.bf16.msra.mxu0 %v3694
    %4172 = vmatpush.bf16.msra.mxu0 %v3692
    %4173 = vmatpush.bf16.msra.mxu0 %v3690
    %4174 = vmatpush.bf16.msra.mxu0 %v3688
    %4175 = vmatpush.bf16.msra.mxu0 %v3686
    %4176 = vmatpush.bf16.msra.mxu0 %v3684
    %4177 = vmatpush.bf16.msra.mxu0 %v3682
    %4178 = vmatpush.bf16.msra.mxu0 %v3680
    %4179 = vmatmul.bf16.gmra.mxu0 %v2771
    %v4180 = vpop.f32.mrf.mxu0
    %v4181 = vadd.f32 %v4168, %v4180
    %v4182 = vpop.f32.mrf.mxu0
    %4183 = vdwg.mxu0
    %4184 = vmatpush.bf16.msra.mxu0 %v3710
    %4185 = vmatpush.bf16.msra.mxu0 %v3708
    %4186 = vmatpush.bf16.msra.mxu0 %v3706
    %4187 = vmatpush.bf16.msra.mxu0 %v3704
    %4188 = vmatpush.bf16.msra.mxu0 %v3702
    %4189 = vmatpush.bf16.msra.mxu0 %v3700
    %4190 = vmatpush.bf16.msra.mxu0 %v3698
    %4191 = vmatpush.bf16.msra.mxu0 %v3696
    %4192 = vmatmul.bf16.gmra.mxu0 %v2776
    %v4193 = vpop.f32.mrf.mxu0
    %v4194 = vadd.f32 %v4181, %v4193
    %v4195 = vpop.f32.mrf.mxu0
    %4196 = vdwg.mxu0
    %4197 = vmatpush.bf16.msra.mxu0 %v3726
    %4198 = vmatpush.bf16.msra.mxu0 %v3724
    %4199 = vmatpush.bf16.msra.mxu0 %v3722
    %4200 = vmatpush.bf16.msra.mxu0 %v3720
    %4201 = vmatpush.bf16.msra.mxu0 %v3718
    %4202 = vmatpush.bf16.msra.mxu0 %v3716
    %4203 = vmatpush.bf16.msra.mxu0 %v3714
    %4204 = vmatpush.bf16.msra.mxu0 %v3712
    %4205 = vmatmul.bf16.gmra.mxu0 %v2777
    %v4206 = vpop.f32.mrf.mxu0
    %v4207 = vadd.f32 %v4194, %v4206
    %v4208 = vpop.f32.mrf.mxu0
    %4209 = vdwg.mxu0
    %4210 = vmatpush.bf16.msra.mxu0 %v3742
    %4211 = vmatpush.bf16.msra.mxu0 %v3740
    %4212 = vmatpush.bf16.msra.mxu0 %v3738
    %4213 = vmatpush.bf16.msra.mxu0 %v3736
    %4214 = vmatpush.bf16.msra.mxu0 %v3734
    %4215 = vmatpush.bf16.msra.mxu0 %v3732
    %4216 = vmatpush.bf16.msra.mxu0 %v3730
    %4217 = vmatpush.bf16.msra.mxu0 %v3728
    %4218 = vmatmul.bf16.gmra.mxu0 %v2778
    %v4219 = vpop.f32.mrf.mxu0
    %v4220 = vadd.f32 %v4207, %v4219
    %v4221 = vpop.f32.mrf.mxu0
    %4222 = vdwg.mxu0
    %4223 = vmatpush.bf16.msra.mxu0 %v3758
    %4224 = vmatpush.bf16.msra.mxu0 %v3756
    %4225 = vmatpush.bf16.msra.mxu0 %v3754
    %4226 = vmatpush.bf16.msra.mxu0 %v3752
    %4227 = vmatpush.bf16.msra.mxu0 %v3750
    %4228 = vmatpush.bf16.msra.mxu0 %v3748
    %4229 = vmatpush.bf16.msra.mxu0 %v3746
    %4230 = vmatpush.bf16.msra.mxu0 %v3744
    %4231 = vmatmul.bf16.gmra.mxu0 %v2779
    %v4232 = vpop.f32.mrf.mxu0
    %v4233 = vadd.f32 %v4220, %v4232
    %v4234 = vpop.f32.mrf.mxu0
    %4235 = vdwg.mxu0
    %4236 = vmatpush.bf16.msra.mxu0 %v3774
    %4237 = vmatpush.bf16.msra.mxu0 %v3772
    %4238 = vmatpush.bf16.msra.mxu0 %v3770
    %4239 = vmatpush.bf16.msra.mxu0 %v3768
    %4240 = vmatpush.bf16.msra.mxu0 %v3766
    %4241 = vmatpush.bf16.msra.mxu0 %v3764
    %4242 = vmatpush.bf16.msra.mxu0 %v3762
    %4243 = vmatpush.bf16.msra.mxu0 %v3760
    %4244 = vmatmul.bf16.gmra.mxu0 %v2780
    %v4245 = vpop.f32.mrf.mxu0
    %v4246 = vadd.f32 %v4233, %v4245
    %v4247 = vpop.f32.mrf.mxu0
    %4248 = vdwg.mxu0
    %4249 = vmatpush.bf16.msra.mxu0 %v3790
    %4250 = vmatpush.bf16.msra.mxu0 %v3788
    %4251 = vmatpush.bf16.msra.mxu0 %v3786
    %4252 = vmatpush.bf16.msra.mxu0 %v3784
    %4253 = vmatpush.bf16.msra.mxu0 %v3782
    %4254 = vmatpush.bf16.msra.mxu0 %v3780
    %4255 = vmatpush.bf16.msra.mxu0 %v3778
    %4256 = vmatpush.bf16.msra.mxu0 %v3776
    %4257 = vmatmul.bf16.gmra.mxu0 %v2781
    %v4258 = vpop.f32.mrf.mxu0
    %v4259 = vadd.f32 %v4246, %v4258
    %v4260 = vpop.f32.mrf.mxu0
    %4261 = vdwg.mxu0
    %4262 = vmatpush.bf16.msra.mxu0 %v3806
    %4263 = vmatpush.bf16.msra.mxu0 %v3804
    %4264 = vmatpush.bf16.msra.mxu0 %v3802
    %4265 = vmatpush.bf16.msra.mxu0 %v3800
    %4266 = vmatpush.bf16.msra.mxu0 %v3798
    %4267 = vmatpush.bf16.msra.mxu0 %v3796
    %4268 = vmatpush.bf16.msra.mxu0 %v3794
    %4269 = vmatpush.bf16.msra.mxu0 %v3792
    %4270 = vmatmul.bf16.gmra.mxu0 %v2782
    %v4271 = vpop.f32.mrf.mxu0
    %v4272 = vadd.f32 %v4259, %v4271
    %v4273 = vpop.f32.mrf.mxu0
    %4274 = vdwg.mxu0
    %4275 = vmatpush.bf16.msra.mxu0 %v3822
    %4276 = vmatpush.bf16.msra.mxu0 %v3820
    %4277 = vmatpush.bf16.msra.mxu0 %v3818
    %4278 = vmatpush.bf16.msra.mxu0 %v3816
    %4279 = vmatpush.bf16.msra.mxu0 %v3814
    %4280 = vmatpush.bf16.msra.mxu0 %v3812
    %4281 = vmatpush.bf16.msra.mxu0 %v3810
    %4282 = vmatpush.bf16.msra.mxu0 %v3808
    %4283 = vmatmul.bf16.gmra.mxu0 %v2783
    %v4284 = vpop.f32.mrf.mxu0
    %v4285 = vadd.f32 %v4272, %v4284
    %v4286 = vpop.f32.mrf.mxu0
    %4287 = vdwg.mxu0
    %4288 = vmatpush.bf16.msra.mxu0 %v3583
    %4289 = vmatpush.bf16.msra.mxu0 %v3581
    %4290 = vmatpush.bf16.msra.mxu0 %v3579
    %4291 = vmatpush.bf16.msra.mxu0 %v3577
    %4292 = vmatpush.bf16.msra.mxu0 %v3575
    %4293 = vmatpush.bf16.msra.mxu0 %v3573
    %4294 = vmatpush.bf16.msra.mxu0 %v3571
    %4295 = vmatpush.bf16.msra.mxu0 %v3569
    %4296 = vmatmul.bf16.gmra.mxu0 %v2764
    %v4297 = vpop.f32.mrf.mxu0
    %v4298 = vadd.f32 %v2752, %v4297
    %v4299 = vpop.f32.mrf.mxu0
    %4300 = vdwg.mxu0
    %4301 = vmatpush.bf16.msra.mxu0 %v3599
    %4302 = vmatpush.bf16.msra.mxu0 %v3597
    %4303 = vmatpush.bf16.msra.mxu0 %v3595
    %4304 = vmatpush.bf16.msra.mxu0 %v3593
    %4305 = vmatpush.bf16.msra.mxu0 %v3591
    %4306 = vmatpush.bf16.msra.mxu0 %v3589
    %4307 = vmatpush.bf16.msra.mxu0 %v3587
    %4308 = vmatpush.bf16.msra.mxu0 %v3585
    %4309 = vmatmul.bf16.gmra.mxu0 %v2765
    %v4310 = vpop.f32.mrf.mxu0
    %v4311 = vadd.f32 %v4298, %v4310
    %v4312 = vpop.f32.mrf.mxu0
    %4313 = vdwg.mxu0
    %4314 = vmatpush.bf16.msra.mxu0 %v3615
    %4315 = vmatpush.bf16.msra.mxu0 %v3613
    %4316 = vmatpush.bf16.msra.mxu0 %v3611
    %4317 = vmatpush.bf16.msra.mxu0 %v3609
    %4318 = vmatpush.bf16.msra.mxu0 %v3607
    %4319 = vmatpush.bf16.msra.mxu0 %v3605
    %4320 = vmatpush.bf16.msra.mxu0 %v3603
    %4321 = vmatpush.bf16.msra.mxu0 %v3601
    %4322 = vmatmul.bf16.gmra.mxu0 %v2766
    %v4323 = vpop.f32.mrf.mxu0
    %v4324 = vadd.f32 %v4311, %v4323
    %v4325 = vpop.f32.mrf.mxu0
    %4326 = vdwg.mxu0
    %4327 = vmatpush.bf16.msra.mxu0 %v3631
    %4328 = vmatpush.bf16.msra.mxu0 %v3629
    %4329 = vmatpush.bf16.msra.mxu0 %v3627
    %4330 = vmatpush.bf16.msra.mxu0 %v3625
    %4331 = vmatpush.bf16.msra.mxu0 %v3623
    %4332 = vmatpush.bf16.msra.mxu0 %v3621
    %4333 = vmatpush.bf16.msra.mxu0 %v3619
    %4334 = vmatpush.bf16.msra.mxu0 %v3617
    %4335 = vmatmul.bf16.gmra.mxu0 %v2767
    %v4336 = vpop.f32.mrf.mxu0
    %v4337 = vadd.f32 %v4324, %v4336
    %v4338 = vpop.f32.mrf.mxu0
    %4339 = vdwg.mxu0
    %4340 = vmatpush.bf16.msra.mxu0 %v3647
    %4341 = vmatpush.bf16.msra.mxu0 %v3645
    %4342 = vmatpush.bf16.msra.mxu0 %v3643
    %4343 = vmatpush.bf16.msra.mxu0 %v3641
    %4344 = vmatpush.bf16.msra.mxu0 %v3639
    %4345 = vmatpush.bf16.msra.mxu0 %v3637
    %4346 = vmatpush.bf16.msra.mxu0 %v3635
    %4347 = vmatpush.bf16.msra.mxu0 %v3633
    %4348 = vmatmul.bf16.gmra.mxu0 %v2768
    %v4349 = vpop.f32.mrf.mxu0
    %v4350 = vadd.f32 %v4337, %v4349
    %v4351 = vpop.f32.mrf.mxu0
    %4352 = vdwg.mxu0
    %4353 = vmatpush.bf16.msra.mxu0 %v3663
    %4354 = vmatpush.bf16.msra.mxu0 %v3661
    %4355 = vmatpush.bf16.msra.mxu0 %v3659
    %4356 = vmatpush.bf16.msra.mxu0 %v3657
    %4357 = vmatpush.bf16.msra.mxu0 %v3655
    %4358 = vmatpush.bf16.msra.mxu0 %v3653
    %4359 = vmatpush.bf16.msra.mxu0 %v3651
    %4360 = vmatpush.bf16.msra.mxu0 %v3649
    %4361 = vmatmul.bf16.gmra.mxu0 %v2769
    %v4362 = vpop.f32.mrf.mxu0
    %v4363 = vadd.f32 %v4350, %v4362
    %v4364 = vpop.f32.mrf.mxu0
    %4365 = vdwg.mxu0
    %4366 = vmatpush.bf16.msra.mxu0 %v3679
    %4367 = vmatpush.bf16.msra.mxu0 %v3677
    %4368 = vmatpush.bf16.msra.mxu0 %v3675
    %4369 = vmatpush.bf16.msra.mxu0 %v3673
    %4370 = vmatpush.bf16.msra.mxu0 %v3671
    %4371 = vmatpush.bf16.msra.mxu0 %v3669
    %4372 = vmatpush.bf16.msra.mxu0 %v3667
    %4373 = vmatpush.bf16.msra.mxu0 %v3665
    %4374 = vmatmul.bf16.gmra.mxu0 %v2770
    %v4375 = vpop.f32.mrf.mxu0
    %v4376 = vadd.f32 %v4363, %v4375
    %v4377 = vpop.f32.mrf.mxu0
    %4378 = vdwg.mxu0
    %4379 = vmatpush.bf16.msra.mxu0 %v3695
    %4380 = vmatpush.bf16.msra.mxu0 %v3693
    %4381 = vmatpush.bf16.msra.mxu0 %v3691
    %4382 = vmatpush.bf16.msra.mxu0 %v3689
    %4383 = vmatpush.bf16.msra.mxu0 %v3687
    %4384 = vmatpush.bf16.msra.mxu0 %v3685
    %4385 = vmatpush.bf16.msra.mxu0 %v3683
    %4386 = vmatpush.bf16.msra.mxu0 %v3681
    %4387 = vmatmul.bf16.gmra.mxu0 %v2771
    %v4388 = vpop.f32.mrf.mxu0
    %v4389 = vadd.f32 %v4376, %v4388
    %v4390 = vpop.f32.mrf.mxu0
    %4391 = vdwg.mxu0
    %4392 = vmatpush.bf16.msra.mxu0 %v3711
    %4393 = vmatpush.bf16.msra.mxu0 %v3709
    %4394 = vmatpush.bf16.msra.mxu0 %v3707
    %4395 = vmatpush.bf16.msra.mxu0 %v3705
    %4396 = vmatpush.bf16.msra.mxu0 %v3703
    %4397 = vmatpush.bf16.msra.mxu0 %v3701
    %4398 = vmatpush.bf16.msra.mxu0 %v3699
    %4399 = vmatpush.bf16.msra.mxu0 %v3697
    %4400 = vmatmul.bf16.gmra.mxu0 %v2776
    %v4401 = vpop.f32.mrf.mxu0
    %v4402 = vadd.f32 %v4389, %v4401
    %v4403 = vpop.f32.mrf.mxu0
    %4404 = vdwg.mxu0
    %4405 = vmatpush.bf16.msra.mxu0 %v3727
    %4406 = vmatpush.bf16.msra.mxu0 %v3725
    %4407 = vmatpush.bf16.msra.mxu0 %v3723
    %4408 = vmatpush.bf16.msra.mxu0 %v3721
    %4409 = vmatpush.bf16.msra.mxu0 %v3719
    %4410 = vmatpush.bf16.msra.mxu0 %v3717
    %4411 = vmatpush.bf16.msra.mxu0 %v3715
    %4412 = vmatpush.bf16.msra.mxu0 %v3713
    %4413 = vmatmul.bf16.gmra.mxu0 %v2777
    %v4414 = vpop.f32.mrf.mxu0
    %v4415 = vadd.f32 %v4402, %v4414
    %v4416 = vpop.f32.mrf.mxu0
    %4417 = vdwg.mxu0
    %4418 = vmatpush.bf16.msra.mxu0 %v3743
    %4419 = vmatpush.bf16.msra.mxu0 %v3741
    %4420 = vmatpush.bf16.msra.mxu0 %v3739
    %4421 = vmatpush.bf16.msra.mxu0 %v3737
    %4422 = vmatpush.bf16.msra.mxu0 %v3735
    %4423 = vmatpush.bf16.msra.mxu0 %v3733
    %4424 = vmatpush.bf16.msra.mxu0 %v3731
    %4425 = vmatpush.bf16.msra.mxu0 %v3729
    %4426 = vmatmul.bf16.gmra.mxu0 %v2778
    %v4427 = vpop.f32.mrf.mxu0
    %v4428 = vadd.f32 %v4415, %v4427
    %v4429 = vpop.f32.mrf.mxu0
    %4430 = vdwg.mxu0
    %4431 = vmatpush.bf16.msra.mxu0 %v3759
    %4432 = vmatpush.bf16.msra.mxu0 %v3757
    %4433 = vmatpush.bf16.msra.mxu0 %v3755
    %4434 = vmatpush.bf16.msra.mxu0 %v3753
    %4435 = vmatpush.bf16.msra.mxu0 %v3751
    %4436 = vmatpush.bf16.msra.mxu0 %v3749
    %4437 = vmatpush.bf16.msra.mxu0 %v3747
    %4438 = vmatpush.bf16.msra.mxu0 %v3745
    %4439 = vmatmul.bf16.gmra.mxu0 %v2779
    %v4440 = vpop.f32.mrf.mxu0
    %v4441 = vadd.f32 %v4428, %v4440
    %v4442 = vpop.f32.mrf.mxu0
    %4443 = vdwg.mxu0
    %4444 = vmatpush.bf16.msra.mxu0 %v3775
    %4445 = vmatpush.bf16.msra.mxu0 %v3773
    %4446 = vmatpush.bf16.msra.mxu0 %v3771
    %4447 = vmatpush.bf16.msra.mxu0 %v3769
    %4448 = vmatpush.bf16.msra.mxu0 %v3767
    %4449 = vmatpush.bf16.msra.mxu0 %v3765
    %4450 = vmatpush.bf16.msra.mxu0 %v3763
    %4451 = vmatpush.bf16.msra.mxu0 %v3761
    %4452 = vmatmul.bf16.gmra.mxu0 %v2780
    %v4453 = vpop.f32.mrf.mxu0
    %v4454 = vadd.f32 %v4441, %v4453
    %v4455 = vpop.f32.mrf.mxu0
    %4456 = vdwg.mxu0
    %4457 = vmatpush.bf16.msra.mxu0 %v3791
    %4458 = vmatpush.bf16.msra.mxu0 %v3789
    %4459 = vmatpush.bf16.msra.mxu0 %v3787
    %4460 = vmatpush.bf16.msra.mxu0 %v3785
    %4461 = vmatpush.bf16.msra.mxu0 %v3783
    %4462 = vmatpush.bf16.msra.mxu0 %v3781
    %4463 = vmatpush.bf16.msra.mxu0 %v3779
    %4464 = vmatpush.bf16.msra.mxu0 %v3777
    %4465 = vmatmul.bf16.gmra.mxu0 %v2781
    %v4466 = vpop.f32.mrf.mxu0
    %v4467 = vadd.f32 %v4454, %v4466
    %v4468 = vpop.f32.mrf.mxu0
    %4469 = vdwg.mxu0
    %4470 = vmatpush.bf16.msra.mxu0 %v3807
    %4471 = vmatpush.bf16.msra.mxu0 %v3805
    %4472 = vmatpush.bf16.msra.mxu0 %v3803
    %4473 = vmatpush.bf16.msra.mxu0 %v3801
    %4474 = vmatpush.bf16.msra.mxu0 %v3799
    %4475 = vmatpush.bf16.msra.mxu0 %v3797
    %4476 = vmatpush.bf16.msra.mxu0 %v3795
    %4477 = vmatpush.bf16.msra.mxu0 %v3793
    %4478 = vmatmul.bf16.gmra.mxu0 %v2782
    %v4479 = vpop.f32.mrf.mxu0
    %v4480 = vadd.f32 %v4467, %v4479
    %v4481 = vpop.f32.mrf.mxu0
    %4482 = vdwg.mxu0
    %4483 = vmatpush.bf16.msra.mxu0 %v3823
    %4484 = vmatpush.bf16.msra.mxu0 %v3821
    %4485 = vmatpush.bf16.msra.mxu0 %v3819
    %4486 = vmatpush.bf16.msra.mxu0 %v3817
    %4487 = vmatpush.bf16.msra.mxu0 %v3815
    %4488 = vmatpush.bf16.msra.mxu0 %v3813
    %4489 = vmatpush.bf16.msra.mxu0 %v3811
    %4490 = vmatpush.bf16.msra.mxu0 %v3809
    %4491 = vmatmul.bf16.gmra.mxu0 %v2783
    %v4492 = vpop.f32.mrf.mxu0
    %v4493 = vadd.f32 %v4480, %v4492
    %v4494 = vpop.f32.mrf.mxu0
    %4495 = vdwg.mxu0
    %v4496 = vmax.f32 %v4285, 0.0
    %v4497 = vmax.f32 %v4493, 0.0
    %v4498 = vpack.c.bf16 %v4496, %v4496
    %v4499 = vpack.c.bf16 %v4497, %v4497
    %v4500 = vld [vmem:[%s9] sm:$0xf]
    %v4501 = vld [vmem:[%s9 + $0x4] sm:$0xf]
    %v4502 = vld [vmem:[%s9 + $0x8] sm:$0xf]
    %v4503 = vld [vmem:[%s9 + $0xc] sm:$0xf]
    %v4504 = vld [vmem:[%s9 + $0x10] sm:$0xf]
    %v4505 = vld [vmem:[%s9 + $0x14] sm:$0xf]
    %v4506 = vld [vmem:[%s9 + $0x18] sm:$0xf]
    %v4507 = vld [vmem:[%s9 + $0x1c] sm:$0xf]
    %v4508 = vld [vmem:[%s9 + $0x20] sm:$0xf]
    %v4509 = vld [vmem:[%s9 + $0x24] sm:$0xf]
    %v4510 = vld [vmem:[%s9 + $0x28] sm:$0xf]
    %v4511 = vld [vmem:[%s9 + $0x2c] sm:$0xf]
    %v4512 = vld [vmem:[%s9 + $0x30] sm:$0xf]
    %v4513 = vld [vmem:[%s9 + $0x34] sm:$0xf]
    %v4514 = vld [vmem:[%s9 + $0x38] sm:$0xf]
    %v4515 = vld [vmem:[%s9 + $0x3c] sm:$0xf]
    %v4516 = vld [vmem:[%s9 + $0x40] sm:$0xf]
    %v4517 = vld [vmem:[%s9 + $0x44] sm:$0xf]
    %v4518 = vld [vmem:[%s9 + $0x48] sm:$0xf]
    %v4519 = vld [vmem:[%s9 + $0x4c] sm:$0xf]
    %v4520 = vld [vmem:[%s9 + $0x50] sm:$0xf]
    %v4521 = vld [vmem:[%s9 + $0x54] sm:$0xf]
    %v4522 = vld [vmem:[%s9 + $0x58] sm:$0xf]
    %v4523 = vld [vmem:[%s9 + $0x5c] sm:$0xf]
    %v4524 = vld [vmem:[%s9 + $0x60] sm:$0xf]
    %v4525 = vld [vmem:[%s9 + $0x64] sm:$0xf]
    %v4526 = vld [vmem:[%s9 + $0x68] sm:$0xf]
    %v4527 = vld [vmem:[%s9 + $0x6c] sm:$0xf]
    %v4528 = vld [vmem:[%s9 + $0x70] sm:$0xf]
    %v4529 = vld [vmem:[%s9 + $0x74] sm:$0xf]
    %v4530 = vld [vmem:[%s9 + $0x78] sm:$0xf]
    %v4531 = vld [vmem:[%s9 + $0x7c] sm:$0xf]
    %v4532 = vld [vmem:[%s10] sm:$0x1]
    %v4534 = vperm.slane %v4532, 0
    %v4568 = vunpack.c.l.b16 %v4500
    %v4569 = vunpack.c.l.b16 %v4501
    %v4570 = vunpack.c.l.b16 %v4502
    %v4571 = vunpack.c.l.b16 %v4503
    %v4572 = vunpack.c.l.b16 %v4504
    %v4573 = vunpack.c.l.b16 %v4505
    %v4574 = vunpack.c.l.b16 %v4506
    %v4575 = vunpack.c.l.b16 %v4507
    %v4576 = vunpack.c.l.b16 %v4508
    %v4577 = vunpack.c.l.b16 %v4509
    %v4578 = vunpack.c.l.b16 %v4510
    %v4579 = vunpack.c.l.b16 %v4511
    %v4580 = vunpack.c.l.b16 %v4512
    %v4581 = vunpack.c.l.b16 %v4513
    %v4582 = vunpack.c.l.b16 %v4514
    %v4583 = vunpack.c.l.b16 %v4515
    %v4584 = vunpack.c.l.b16 %v4516
    %v4585 = vunpack.c.l.b16 %v4517
    %v4586 = vunpack.c.l.b16 %v4518
    %v4587 = vunpack.c.l.b16 %v4519
    %v4588 = vunpack.c.l.b16 %v4520
    %v4589 = vunpack.c.l.b16 %v4521
    %v4590 = vunpack.c.l.b16 %v4522
    %v4591 = vunpack.c.l.b16 %v4523
    %v4592 = vunpack.c.l.b16 %v4524
    %v4593 = vunpack.c.l.b16 %v4525
    %v4594 = vunpack.c.l.b16 %v4526
    %v4595 = vunpack.c.l.b16 %v4527
    %v4596 = vunpack.c.l.b16 %v4528
    %v4597 = vunpack.c.l.b16 %v4529
    %v4598 = vunpack.c.l.b16 %v4530
    %v4599 = vunpack.c.l.b16 %v4531
    %v4600 = vpack.c.b16 %v4569, %v4568
    %v4601 = vpack.c.b16 %v4571, %v4570
    %v4602 = vpack.c.b16 %v4573, %v4572
    %v4603 = vpack.c.b16 %v4575, %v4574
    %v4604 = vpack.c.b16 %v4577, %v4576
    %v4605 = vpack.c.b16 %v4579, %v4578
    %v4606 = vpack.c.b16 %v4581, %v4580
    %v4607 = vpack.c.b16 %v4583, %v4582
    %v4608 = vpack.c.b16 %v4585, %v4584
    %v4609 = vpack.c.b16 %v4587, %v4586
    %v4610 = vpack.c.b16 %v4589, %v4588
    %v4611 = vpack.c.b16 %v4591, %v4590
    %v4612 = vpack.c.b16 %v4593, %v4592
    %v4613 = vpack.c.b16 %v4595, %v4594
    %v4614 = vpack.c.b16 %v4597, %v4596
    %v4615 = vpack.c.b16 %v4599, %v4598
    %4632 = vmatpush.bf16.msra.mxu0 %v4607
    %4633 = vmatpush.bf16.msra.mxu0 %v4606
    %4634 = vmatpush.bf16.msra.mxu0 %v4605
    %4635 = vmatpush.bf16.msra.mxu0 %v4604
    %4636 = vmatpush.bf16.msra.mxu0 %v4603
    %4637 = vmatpush.bf16.msra.mxu0 %v4602
    %4638 = vmatpush.bf16.msra.mxu0 %v4601
    %4639 = vmatpush.bf16.msra.mxu0 %v4600
    %4640 = vmatmul.bf16.gmra.mxu0 %v4498
    %v4641 = vpop.f32.mrf.mxu0
    %v4642 = vadd.f32 %v4534, %v4641
    %v4643 = vpop.f32.mrf.mxu0
    %4644 = vdwg.mxu0
    %4645 = vmatpush.bf16.msra.mxu0 %v4615
    %4646 = vmatpush.bf16.msra.mxu0 %v4614
    %4647 = vmatpush.bf16.msra.mxu0 %v4613
    %4648 = vmatpush.bf16.msra.mxu0 %v4612
    %4649 = vmatpush.bf16.msra.mxu0 %v4611
    %4650 = vmatpush.bf16.msra.mxu0 %v4610
    %4651 = vmatpush.bf16.msra.mxu0 %v4609
    %4652 = vmatpush.bf16.msra.mxu0 %v4608
    %4653 = vmatmul.bf16.gmra.mxu0 %v4499
    %v4654 = vpop.f32.mrf.mxu0
    %v4655 = vadd.f32 %v4642, %v4654
    %v4656 = vpop.f32.mrf.mxu0
    %4657 = vdwg.mxu0
    %4658 = vst [vmem:[#allocation3] sm:$0xf] %v4655
    // Predicated region
    $region46: #{dcnn1d_forward.1} parent=1 // pred_check
      _
    $region47: #{dcnn1d_forward.1} parent=1 // pred_check_branch
      %4660 = sbr.rel (0) target = $region49
    $region48: #{dcnn1d_forward.1} parent=1 // pred_region
      _
    $region49: #{dcnn1d_forward.1} parent=1 // pred_fallthru
      _
    // Predicated region
    $region50: #{dcnn1d_forward.1} parent=1 // pred_check
      _
    $region51: #{dcnn1d_forward.1} parent=1 // pred_check_branch
      %4662 = sbr.rel (0) target = $region53
    $region52: #{dcnn1d_forward.1} parent=1 // pred_region
      %4664 = vsyncadd [#allocation4], 0
      %s4666 = sshll.u32 [#allocation3], 4
      %s4667 = int_to_ptr.vmem [resolvable:$true] %s4666
      %s4668 = sshll.u32 %s12, 4
      %s4669 = int_to_ptr.hbm [resolvable:$true] %s4668
      %4671 = dma.vmem_to_hbm [thread:$0]  %s4667, 64, %s4669, [#allocation4]
    $region53: #{dcnn1d_forward.1} parent=1 // pred_fallthru
      _
    // Predicated region
    $region54: #{dcnn1d_forward.1} parent=1 // pred_check
      _
    $region55: #{dcnn1d_forward.1} parent=1 // pred_check_branch
      %4673 = sbr.rel (0) target = $region57
    $region56: #{dcnn1d_forward.1} parent=1 // pred_region
      _
    $region57: #{dcnn1d_forward.1} parent=1 // pred_fallthru
      _
    // Predicated region
    $region58: #{dcnn1d_forward.1} parent=1 // pred_check
      _
    $region59: #{dcnn1d_forward.1} parent=1 // pred_check_branch
      %4675 = sbr.rel (0) target = $region61
    $region60: #{dcnn1d_forward.1} parent=1 // pred_region
      %4677 = dma.done [#allocation4], 64
    $region61: #{dcnn1d_forward.1} parent=1 // pred_fallthru
      _
    %4678 = vsyncpa [#allocation4], 1

</llo_original>
